<compile_context>
chip_gen: v5e
topology: v5e:2x2
jax: 0.10.0
libtpu: 0.0.40
codegen_flags: <defaults>
</compile_context>

<pallas_src>
import functools
import math

import jax
import jax.numpy as jnp
from jax.experimental import pallas as pl
from jax.experimental.pallas import tpu as pltpu


# ----------------------------- global tiling / VMEM config -----------------------------

def _round_up(x, m):
    return ((x + m - 1) // m) * m


def _tile_m(M):
    """Row-tile size and padded M. tm is a multiple of 8, capped at 512 rows."""
    Mp = _round_up(M, 8)
    if Mp <= 512:
        return Mp, Mp
    return 512, _round_up(Mp, 512)


def _pick_cn(C):
    for cand in (256, 128):
        if C % cand == 0:
            return cand
    return C


def _default_vmem_limit():
    # Size against the actual generation: ~3/4 of physical VMEM, capped at 96 MiB
    # (v5e/v6e have 128 MiB, v7x only 64 MiB per TensorCore).
    try:
        cap = pltpu.get_tpu_info().vmem_capacity_bytes
        return int(min(cap * 3 // 4, 96 * 1024 * 1024))
    except Exception:
        return 48 * 1024 * 1024


_VMEM_LIMIT = _default_vmem_limit()


# ----------------------------- Pallas kernels -----------------------------

def _matmul_kernel(*refs, act, pre_act, has_res):
    """One conv tile: (tm, K) bf16 patches @ (K, tn) bf16 weights -> f32 epilogue -> bf16."""
    if has_res:
        p_ref, w_ref, b_ref, r_ref, o_ref = refs
    else:
        p_ref, w_ref, b_ref, o_ref = refs
    p = p_ref[0]                                    # (tm, K) bf16
    if pre_act == "relu":                           # folded input ReLU (decoder stages)
        p = jnp.maximum(p, 0)
    acc = jnp.dot(p, w_ref[0], preferred_element_type=jnp.float32)
    acc = acc + b_ref[...]                          # (1, tn) f32 bias broadcast
    if has_res:                                     # folded shortcut add (decoder up-paths)
        acc = acc + r_ref[0].astype(jnp.float32)
    if act == "relu":
        acc = jnp.maximum(acc, 0.0)
    elif act == "lrelu":
        acc = jnp.where(acc > 0, acc, 0.2 * acc)
    elif act == "tanh":
        acc = jnp.tanh(acc)
    o_ref[0] = acc.astype(o_ref.dtype)


def _bn_stats_kernel(x_ref, s_ref):
    """Accumulate per-channel sum / sumsq over the HW grid axis (reduction axis last)."""
    @pl.when(pl.program_id(1) == 0)
    def _():
        s_ref[...] = jnp.zeros_like(s_ref)
    x = x_ref[...].astype(jnp.float32)
    s = jnp.sum(x, axis=0, keepdims=True)
    sq = jnp.sum(x * x, axis=0, keepdims=True)
    s_ref[...] += jnp.concatenate([s, sq], axis=0)


def _bn_norm_kernel(x_ref, s_ref, o_ref, *, inv_n):
    """Normalize with batch statistics (training-mode BN, gamma=1, beta=0, eps=1e-5)."""
    x = x_ref[...].astype(jnp.float32)
    st = s_ref[...]
    mean = st[0:1, :] * inv_n
    var = st[1:2, :] * inv_n - mean * mean
    o_ref[...] = ((x - mean) * jax.lax.rsqrt(var + 1e-5)).astype(o_ref.dtype)


def _fuse_kernel(lg_ref, ft_ref, o_ref):
    """WeightGenerator tail: softmax over K mask logits + weighted feature sum.
    lg_ref: (tm, K) f32 logits; ft_ref: (K, tm, cn) bf16 features; o_ref: (tm, cn) bf16."""
    lg = lg_ref[...]
    m = jnp.max(lg, axis=-1, keepdims=True)
    e = jnp.exp(lg - m)
    w = e * pl.reciprocal(jnp.sum(e, axis=-1, keepdims=True), approx=True)
    acc = jnp.zeros(o_ref.shape, jnp.float32)
    for kk in range(ft_ref.shape[0]):
        acc = acc + w[:, kk:kk + 1] * ft_ref[kk].astype(jnp.float32)
    o_ref[...] = acc.astype(o_ref.dtype)


# ----------------------------- cached pallas_call builders -----------------------------

@functools.lru_cache(maxsize=None)
def _get_matmul_call(B, Mp, K, Coutp, tm, tn, act, pre_act, has_res):
    kern = functools.partial(_matmul_kernel, act=act, pre_act=pre_act, has_res=has_res)
    in_specs = [
        pl.BlockSpec((1, tm, K), lambda b, j, i: (b, i, 0)),   # patches (M inner)
        pl.BlockSpec((1, K, tn), lambda b, j, i: (b, 0, j)),   # weights resident across M
        pl.BlockSpec((1, tn), lambda b, j, i: (0, j)),         # bias
    ]
    if has_res:
        in_specs.append(pl.BlockSpec((1, tm, tn), lambda b, j, i: (b, i, j)))
    return pl.pallas_call(
        kern,
        out_shape=jax.ShapeDtypeStruct((B, Mp, Coutp), jnp.bfloat16),
        grid=(B, Coutp // tn, Mp // tm),
        in_specs=in_specs,
        out_specs=pl.BlockSpec((1, tm, tn), lambda b, j, i: (b, i, j)),
        compiler_params=pltpu.CompilerParams(
            dimension_semantics=("parallel", "parallel", "parallel"),
            vmem_limit_bytes=_VMEM_LIMIT),
    )


@functools.lru_cache(maxsize=None)
def _get_bn_stats_call(Mp, C, tm, cn):
    return pl.pallas_call(
        _bn_stats_kernel,
        out_shape=jax.ShapeDtypeStruct((2, C), jnp.float32),
        grid=(C // cn, Mp // tm),
        in_specs=[pl.BlockSpec((tm, cn), lambda j, i: (i, j))],
        out_specs=pl.BlockSpec((2, cn), lambda j, i: (0, j)),
        compiler_params=pltpu.CompilerParams(
            dimension_semantics=("parallel", "arbitrary"),
            vmem_limit_bytes=_VMEM_LIMIT),
    )


@functools.lru_cache(maxsize=None)
def _get_bn_norm_call(Mp, C, tm, cn, n_true):
    kern = functools.partial(_bn_norm_kernel, inv_n=1.0 / float(n_true))
    return pl.pallas_call(
        kern,
        out_shape=jax.ShapeDtypeStruct((Mp, C), jnp.bfloat16),
        grid=(Mp // tm, C // cn),
        in_specs=[pl.BlockSpec((tm, cn), lambda i, j: (i, j)),
                  pl.BlockSpec((2, cn), lambda i, j: (0, j))],
        out_specs=pl.BlockSpec((tm, cn), lambda i, j: (i, j)),
        compiler_params=pltpu.CompilerParams(
            dimension_semantics=("parallel", "parallel"),
            vmem_limit_bytes=_VMEM_LIMIT),
    )


@functools.lru_cache(maxsize=None)
def _get_fuse_call(K, Mp, C, tm, cn):
    return pl.pallas_call(
        _fuse_kernel,
        out_shape=jax.ShapeDtypeStruct((Mp, C), jnp.bfloat16),
        grid=(Mp // tm, C // cn),
        in_specs=[pl.BlockSpec((tm, K), lambda i, j: (i, 0)),
                  pl.BlockSpec((K, tm, cn), lambda i, j: (0, i, j))],
        out_specs=pl.BlockSpec((tm, cn), lambda i, j: (i, j)),
        compiler_params=pltpu.CompilerParams(
            dimension_semantics=("parallel", "parallel"),
            vmem_limit_bytes=_VMEM_LIMIT),
    )


# ----------------------------- op wrappers (glue + Pallas) -----------------------------

def _matmul_apply(patches, w, bias_p, residual, act, pre_act):
    """patches: (B, M, K) bf16; w: (B, K, Coutp) bf16; bias_p: (1, Coutp) f32."""
    B, M, K = patches.shape
    Coutp = w.shape[-1]
    tm, Mp = _tile_m(M)
    tn = 256 if Coutp % 256 == 0 else 128
    if Mp != M:
        patches = jnp.pad(patches, ((0, 0), (0, Mp - M), (0, 0)))
    args = [patches, w, bias_p]
    if residual is not None:
        r = residual.astype(jnp.bfloat16)
        r = jnp.pad(r, ((0, 0), (0, Mp - r.shape[1]), (0, Coutp - r.shape[-1])))
        args.append(r)
    fn = _get_matmul_call(B, Mp, K, Coutp, tm, tn, act, pre_act, residual is not None)
    return fn(*args)


def _padded_bias(p):
    coutp = p["wm"].shape[-1]
    cout = p["bm"].shape[-1]
    if coutp == cout:
        return p["bm"]
    return jnp.pad(p["bm"], ((0, 0), (0, coutp - cout)))


def conv2d(x, p, *, k=3, dil=1, act="relu", pre_act="none", residual=None):
    """Conv2d(k, stride=1, padding=dil*(k//2), dilation=dil, bias=True) on (H, W, Cin)."""
    H, W, Cin = x.shape
    Cout = p["bm"].shape[-1]
    pad = dil * (k // 2)
    xb = x.astype(jnp.bfloat16)                                  # bf16 BEFORE im2col
    xp = jnp.pad(xb, ((pad, pad), (pad, pad), (0, 0))) if pad else xb
    if k == 1:
        patches = xb.reshape(H * W, Cin)
    else:
        patches = jnp.concatenate(
            [xp[kh * dil:kh * dil + H, kw * dil:kw * dil + W, :]
             for kh in range(k) for kw in range(k)], axis=-1
        ).reshape(H * W, k * k * Cin)
    res = None
    if residual is not None:
        res = residual.reshape(1, H * W, residual.shape[-1])
    out = _matmul_apply(patches[None], p["wm"], _padded_bias(p), res, act, pre_act)
    return out[0, :H * W, :Cout].reshape(H, W, Cout)


# Sub-pixel decomposition of ConvTranspose2d(k=4, stride=2, padding=1): output parity a
# (per spatial dim) uses two taps; entries are (row/col start in the 1-padded input,
# kernel index along that dim).
_SUBPIX_TAPS = {0: ((0, 3), (1, 1)),
                1: ((1, 2), (2, 0))}


def conv_transpose2d(x, p):
    """ConvTranspose2d(4, stride=2, padding=1, bias=True) as one pallas_call over the
    4 sub-pixel 2x2 convs (leading parallel grid axis of 4)."""
    H, W, Cin = x.shape
    Cout = p["bm"].shape[-1]
    xb = x.astype(jnp.bfloat16)
    xp = jnp.pad(xb, ((1, 1), (1, 1), (0, 0)))
    pats = []
    for a in (0, 1):
        for b in (0, 1):
            ty, tx = _SUBPIX_TAPS[a], _SUBPIX_TAPS[b]
            pats.append(jnp.concatenate(
                [xp[sy:sy + H, sx:sx + W, :] for (sy, _) in ty for (sx, _) in tx],
                axis=-1).reshape(H * W, 4 * Cin))
    patches = jnp.stack(pats, 0)                                  # (4, HW, 4*Cin)
    out = _matmul_apply(patches, p["wm"], _padded_bias(p), None, "none", "none")
    out = out[:, :H * W, :Cout].reshape(2, 2, H, W, Cout)
    return out.transpose(2, 0, 3, 1, 4).reshape(2 * H, 2 * W, Cout)   # pixel shuffle


def batchnorm(x):
    """Training-mode BatchNorm2d (batch stats, gamma=1, beta=0) — two tiled passes."""
    H, W, C = x.shape
    M = H * W
    tm, Mp = _tile_m(M)
    cn = _pick_cn(C)
    xb = x.astype(jnp.bfloat16).reshape(M, C)
    if Mp != M:
        xb = jnp.pad(xb, ((0, Mp - M), (0, 0)))    # zero rows don't change sum/sumsq
    stats = _get_bn_stats_call(Mp, C, tm, cn)(xb)
    out = _get_bn_norm_call(Mp, C, tm, cn, M)(xb, stats)
    return out[:M].reshape(H, W, C)


def fuse_masks(logits_hwk, feats_khwc):
    """logits: (H, W, K) f32; feats: (K, H, W, C) bf16 -> fused (H, W, C) bf16."""
    H, W, K = logits_hwk.shape
    C = feats_khwc.shape[-1]
    M = H * W
    tm, Mp = _tile_m(M)
    cn = _pick_cn(C)
    lg = logits_hwk.reshape(M, K).astype(jnp.float32)
    ft = feats_khwc.reshape(K, M, C).astype(jnp.bfloat16)
    if Mp != M:
        lg = jnp.pad(lg, ((0, Mp - M), (0, 0)))
        ft = jnp.pad(ft, ((0, 0), (0, Mp - M), (0, 0)))
    out = _get_fuse_call(K, Mp, C, tm, cn)(lg, ft)
    return out[:M].reshape(H, W, C)


def resize_and_pad(x, box):
    # matches WeightGenerator.resize_and_pad: bilinear resize to (Hd, Wd) then zero pad.
    # TODO(synk): jax.image.resize(bilinear, antialias=False) matches
    #             F.interpolate(align_corners=False) for up-/same-size scaling.
    L, R, T, B, Wd, Hd = box
    x = jax.image.resize(x, (Hd, Wd, x.shape[-1]), method="bilinear", antialias=False)
    return jnp.pad(x, ((T, B), (L, R), (0, 0)))


# ----------------------------- WeightGenerator -----------------------------

def _wg_conv_seq(ps, x):
    # TODO(synk): fuse the Cin->16->16->1 chain into one kernel with VMEM intermediates.
    x = conv2d(x, ps[0], act="relu")
    x = conv2d(x, ps[1], act="relu")
    x = conv2d(x, ps[2], act="relu")
    return x


def weight_generator(wp, inst_feat, bg_feat, boxes):
    """inst_feat: (N, h, w, C) bf16; bg_feat: (H, W, C) bf16; boxes: static tuples."""
    H, W, C = bg_feat.shape
    N = inst_feat.shape[0]
    logits, feats = [], []
    mask_sum = jnp.zeros((H, W, 1), jnp.float32)
    for i in range(N):
        crop = inst_feat[i]
        pm = _wg_conv_seq(wp["inst"], crop)                          # (h, w, 1)
        L, R, T, B, Wd, Hd = boxes[i]
        pred_mask = resize_and_pad(pm.astype(jnp.float32), boxes[i])
        crop_rp = resize_and_pad(crop, boxes[i])
        m = jnp.zeros((H, W, 1), jnp.float32).at[T:T + Hd, L:L + Wd, :].set(1.0)
        mask_sum = jnp.clip(mask_sum + m, 0.0, 1.0)
        logits.append(pred_mask)
        feats.append(crop_rp)
    bg_mask = _wg_conv_seq(wp["bg"], bg_feat).astype(jnp.float32)    # (H, W, 1)
    logits.append(bg_mask + (1.0 - mask_sum) * 100000.0)
    feats.append(bg_feat.astype(jnp.bfloat16))
    lg = jnp.concatenate(logits, axis=-1)                            # (H, W, N+1)
    ft = jnp.stack(feats, 0)                                         # (N+1, H, W, C)
    return fuse_masks(lg, ft)


# ----------------------------- parameters -----------------------------

def _conv_p(key, cin, cout, k=3):
    k1, k2 = jax.random.split(key)
    bound = 1.0 / math.sqrt(cin * k * k)
    return {"w": jax.random.uniform(k1, (k, k, cin, cout), jnp.float32, -bound, bound),
            "b": jax.random.uniform(k2, (cout,), jnp.float32, -bound, bound)}


def _convT_p(key, cin, cout, k=4):
    k1, k2 = jax.random.split(key)
    bound = 1.0 / math.sqrt(cin * k * k)
    return {"w": jax.random.uniform(k1, (cin, cout, k, k), jnp.float32, -bound, bound),
            "b": jax.random.uniform(k2, (cout,), jnp.float32, -bound, bound)}


def _wg_p(key, input_ch, inner=16):
    ks = jax.random.split(key, 6)
    return {"inst": [_conv_p(ks[0], input_ch, inner), _conv_p(ks[1], inner, inner), _conv_p(ks[2], inner, 1)],
            "bg":   [_conv_p(ks[3], input_ch, inner), _conv_p(ks[4], inner, inner), _conv_p(ks[5], inner, 1)]}


def init_params(key, input_nc=4):
    ks = iter(jax.random.split(key, 64))
    nxt = lambda: next(ks)
    P = {}
    P["model1"] = [_conv_p(nxt(), input_nc, 64), _conv_p(nxt(), 64, 64)]
    P["model2"] = [_conv_p(nxt(), 64, 128), _conv_p(nxt(), 128, 128)]
    P["model3"] = [_conv_p(nxt(), 128, 256), _conv_p(nxt(), 256, 256), _conv_p(nxt(), 256, 256)]
    P["model4"] = [_conv_p(nxt(), 256, 512), _conv_p(nxt(), 512, 512), _conv_p(nxt(), 512, 512)]
    P["model5"] = [_conv_p(nxt(), 512, 512) for _ in range(3)]
    P["model6"] = [_conv_p(nxt(), 512, 512) for _ in range(3)]
    P["model7"] = [_conv_p(nxt(), 512, 512) for _ in range(3)]
    P["model8up"] = _convT_p(nxt(), 512, 256)
    P["model3short8"] = _conv_p(nxt(), 256, 256)
    P["model8"] = [_conv_p(nxt(), 256, 256), _conv_p(nxt(), 256, 256)]
    P["model9up"] = _convT_p(nxt(), 256, 128)
    P["model2short9"] = _conv_p(nxt(), 128, 128)
    P["model9"] = [_conv_p(nxt(), 128, 128)]
    P["model10up"] = _convT_p(nxt(), 128, 128)
    P["model1short10"] = _conv_p(nxt(), 64, 128)
    P["model10"] = [_conv_p(nxt(), 128, 128)]
    P["model_out"] = _conv_p(nxt(), 128, 2, k=1)
    # model_class (256->529 1x1) and weight_layerout are defined in __init__ but never used in forward.
    P["wl1"] = _wg_p(nxt(), 64)
    P["wl2"] = _wg_p(nxt(), 128)
    P["wl3"] = _wg_p(nxt(), 256)
    P["wl4"] = _wg_p(nxt(), 512)
    P["wl5"] = _wg_p(nxt(), 512)
    P["wl6"] = _wg_p(nxt(), 512)
    P["wl7"] = _wg_p(nxt(), 512)
    P["wl8_1"] = _wg_p(nxt(), 256)
    P["wl8_2"] = _wg_p(nxt(), 256)
    P["wl9_1"] = _wg_p(nxt(), 128)
    P["wl9_2"] = _wg_p(nxt(), 128)
    P["wl10_1"] = _wg_p(nxt(), 128)
    P["wl10_2"] = _wg_p(nxt(), 128)
    return P


# ----------------------------- one-time weight packing -----------------------------

def _pack_conv(p):
    k, _, cin, cout = p["w"].shape
    coutp = _round_up(cout, 128)
    wm = p["w"].reshape(k * k * cin, cout)
    wm = jnp.pad(wm, ((0, 0), (0, coutp - cout))).astype(jnp.bfloat16)[None]  # (1, K, Coutp)
    return {"wm": wm, "bm": p["b"].reshape(1, cout).astype(jnp.float32)}


def _pack_convT(p):
    cin, cout = p["w"].shape[0], p["w"].shape[1]
    coutp = _round_up(cout, 128)
    mats = []
    for a in (0, 1):
        for b in (0, 1):
            ty, tx = _SUBPIX_TAPS[a], _SUBPIX_TAPS[b]
            mats.append(jnp.concatenate(
                [p["w"][:, :, ky, kx] for (_, ky) in ty for (_, kx) in tx], axis=0))
    wm = jnp.stack(mats, 0)                                        # (4, 4*Cin, Cout)
    wm = jnp.pad(wm, ((0, 0), (0, 0), (0, coutp - cout))).astype(jnp.bfloat16)
    return {"wm": wm, "bm": p["b"].reshape(1, cout).astype(jnp.float32)}


def pack_params(P):
    def conv_list(lst):
        return [_pack_conv(p) for p in lst]
    Q = {}
    for key in ("model1", "model2", "model3", "model4", "model5",
                "model6", "model7", "model8", "model9", "model10"):
        Q[key] = conv_list(P[key])
    for key in ("model3short8", "model2short9", "model1short10", "model_out"):
        Q[key] = _pack_conv(P[key])
    for key in ("model8up", "model9up", "model10up"):
        Q[key] = _pack_convT(P[key])
    for key in P:
        if key.startswith("wl"):
            Q[key] = {"inst": conv_list(P[key]["inst"]), "bg": conv_list(P[key]["bg"])}
    return Q


# ----------------------------- FusionGenerator forward -----------------------------

def fusion_forward(P, input_A, input_B, mask_B, instance_feature, box_info_list):
    """Inputs NCHW (batch 1); instance_feature dict values are (Ninst, C, h, w).
    box_info_list must be a (static) nested tuple of per-instance boxes."""
    to_hwc = lambda a: jnp.transpose(a[0], (1, 2, 0)).astype(jnp.bfloat16)
    inst = {k: jnp.transpose(v, (0, 2, 3, 1)).astype(jnp.bfloat16)
            for k, v in instance_feature.items()}

    x = jnp.concatenate([to_hwc(input_A), to_hwc(input_B), to_hwc(mask_B)], axis=-1)

    # model1
    h = conv2d(x, P["model1"][0]); h = conv2d(h, P["model1"][1]); conv1_2 = batchnorm(h)
    conv1_2 = weight_generator(P["wl1"], inst["conv1_2"], conv1_2, box_info_list[0])

    # model2
    h = conv1_2[::2, ::2, :]
    h = conv2d(h, P["model2"][0]); h = conv2d(h, P["model2"][1]); conv2_2 = batchnorm(h)
    conv2_2 = weight_generator(P["wl2"], inst["conv2_2"], conv2_2, box_info_list[1])

    # model3
    h = conv2_2[::2, ::2, :]
    for p in P["model3"]:
        h = conv2d(h, p)
    conv3_3 = batchnorm(h)
    conv3_3 = weight_generator(P["wl3"], inst["conv3_3"], conv3_3, box_info_list[2])

    # TODO(synk): the reference forward builds nn.Linear(256, self.latent_dim) on the fly,
    # but self.latent_dim is never defined and the Linear is applied to a 4-D conv map with
    # a mismatched last dim — that VAE branch (z_mu/z_log_var/z_expand/kl_div) cannot execute
    # in PyTorch either; it is skipped here and kl_div is returned as 0.0.
    kl_div = jnp.asarray(0.0, jnp.float32)

    # model4
    h = conv3_3[::2, ::2, :]
    for p in P["model4"]:
        h = conv2d(h, p)
    conv4_3 = batchnorm(h)
    conv4_3 = weight_generator(P["wl4"], inst["conv4_3"], conv4_3, box_info_list[3])

    # model5 (dilated)
    h = conv4_3
    for p in P["model5"]:
        h = conv2d(h, p, dil=2)
    conv5_3 = batchnorm(h)
    conv5_3 = weight_generator(P["wl5"], inst["conv5_3"], conv5_3, box_info_list[3])

    # model6 (dilated)
    h = conv5_3
    for p in P["model6"]:
        h = conv2d(h, p, dil=2)
    conv6_3 = batchnorm(h)
    conv6_3 = weight_generator(P["wl6"], inst["conv6_3"], conv6_3, box_info_list[3])

    # model7
    h = conv6_3
    for p in P["model7"]:
        h = conv2d(h, p)
    conv7_3 = batchnorm(h)
    conv7_3 = weight_generator(P["wl7"], inst["conv7_3"], conv7_3, box_info_list[3])

    # model8 — shortcut add folded into the shortcut conv epilogue; ReLU folded into model8[0].
    up8 = conv_transpose2d(conv7_3, P["model8up"])
    conv8_up = conv2d(conv3_3, P["model3short8"], act="none", residual=up8)
    conv8_up = weight_generator(P["wl8_1"], inst["conv8_up"], conv8_up, box_info_list[2])
    h = conv2d(conv8_up, P["model8"][0], pre_act="relu")
    h = conv2d(h, P["model8"][1])
    conv8_3 = batchnorm(h)
    conv8_3 = weight_generator(P["wl8_2"], inst["conv8_3"], conv8_3, box_info_list[2])

    # model9
    up9 = conv_transpose2d(conv8_3, P["model9up"])
    conv9_up = conv2d(conv2_2, P["model2short9"], act="none", residual=up9)
    conv9_up = weight_generator(P["wl9_1"], inst["conv9_up"], conv9_up, box_info_list[1])
    h = conv2d(conv9_up, P["model9"][0], pre_act="relu")
    conv9_3 = batchnorm(h)
    conv9_3 = weight_generator(P["wl9_2"], inst["conv9_3"], conv9_3, box_info_list[1])

    # model10
    up10 = conv_transpose2d(conv9_3, P["model10up"])
    conv10_up = conv2d(conv1_2, P["model1short10"], act="none", residual=up10)
    conv10_up = weight_generator(P["wl10_1"], inst["conv10_up"], conv10_up, box_info_list[0])
    conv10_2 = conv2d(conv10_up, P["model10"][0], pre_act="relu", act="lrelu")
    conv10_2 = weight_generator(P["wl10_2"], inst["conv10_2"], conv10_2, box_info_list[0])

    # model_out (1x1 conv + tanh)
    out_reg = conv2d(conv10_2, P["model_out"], k=1, act="tanh")
    out_reg = jnp.transpose(out_reg, (2, 0, 1))[None].astype(jnp.float32)  # (1, 2, H, W)
    return {"out_reg": out_reg, "kl_div": kl_div}


# jit the whole forward: boxes are static (they determine shapes / slice bounds).
fusion_forward_jit = jax.jit(fusion_forward, static_argnums=(5,))


# ----------------------------- demo -----------------------------

if __name__ == "__main__":
    key = jax.random.PRNGKey(0)
    pkey, dkey = jax.random.split(key)
    params = pack_params(init_params(pkey, input_nc=4))   # pre-packed bf16 matmul weights

    H = W = 16
    ks = jax.random.split(dkey, 20)
    input_A = jax.random.normal(ks[0], (1, 1, H, W), jnp.float32)
    input_B = jax.random.normal(ks[1], (1, 2, H, W), jnp.float32)
    mask_B = jax.random.normal(ks[2], (1, 1, H, W), jnp.float32)

    # one instance per level; (Ninst, C, h, w) matching each fused feature level
    instance_feature = {
        "conv1_2":  jax.random.normal(ks[3],  (1, 64, 8, 8), jnp.float32),
        "conv2_2":  jax.random.normal(ks[4],  (1, 128, 4, 4), jnp.float32),
        "conv3_3":  jax.random.normal(ks[5],  (1, 256, 2, 2), jnp.float32),
        "conv4_3":  jax.random.normal(ks[6],  (1, 512, 1, 1), jnp.float32),
        "conv5_3":  jax.random.normal(ks[7],  (1, 512, 1, 1), jnp.float32),
        "conv6_3":  jax.random.normal(ks[8],  (1, 512, 1, 1), jnp.float32),
        "conv7_3":  jax.random.normal(ks[9],  (1, 512, 1, 1), jnp.float32),
        "conv8_up": jax.random.normal(ks[10], (1, 256, 2, 2), jnp.float32),
        "conv8_3":  jax.random.normal(ks[11], (1, 256, 2, 2), jnp.float32),
        "conv9_up": jax.random.normal(ks[12], (1, 128, 4, 4), jnp.float32),
        "conv9_3":  jax.random.normal(ks[13], (1, 128, 4, 4), jnp.float32),
        "conv10_up": jax.random.normal(ks[14], (1, 128, 8, 8), jnp.float32),
        "conv10_2":  jax.random.normal(ks[15], (1, 128, 8, 8), jnp.float32),
    }
    # box format per instance: (pad_left, pad_right, pad_top, pad_bottom, width, height)
    box_info_list = (
        ((4, 4, 4, 4, 8, 8),),   # 16x16 level
        ((2, 2, 2, 2, 4, 4),),   # 8x8 level
        ((1, 1, 1, 1, 2, 2),),   # 4x4 level
        ((0, 1, 0, 1, 1, 1),),   # 2x2 level
    )

    out = fusion_forward_jit(params, input_A, input_B, mask_B, instance_feature, box_info_list)
    jax.block_until_ready(out["out_reg"])
    jax.block_until_ready(out["kl_div"])
    assert out["out_reg"].shape == (1, 2, H, W)
    print("KERNEL_OK")
</pallas_src>

<mosaic_0001>
module attributes {stable_mosaic.version = 11 : i64} {
  func.func @_matmul_kernel(%arg0: i32, %arg1: i32, %arg2: i32, %arg3: memref<1x256x36xbf16, #tpu.memory_space<vmem>>, %arg4: memref<1x36x128xbf16, #tpu.memory_space<vmem>>, %arg5: memref<1x128xf32, #tpu.memory_space<vmem>>, %arg6: memref<1x256x128xbf16, #tpu.memory_space<vmem>>) attributes {dimension_semantics = [#tpu.dimension_semantics<parallel>, #tpu.dimension_semantics<parallel>, #tpu.dimension_semantics<parallel>], iteration_bounds = array<i64: 1, 1, 1>, scalar_prefetch = 0 : i64, scratch_operands = 0 : i64, tpu.core_type = #tpu.core_type<tc>, window_params = [{transform_indices = @transform_0, window_bounds = array<i64: 1, 256, 36>}, {transform_indices = @transform_1, window_bounds = array<i64: 1, 36, 128>}, {transform_indices = @transform_2, window_bounds = array<i64: 1, 128>}, {transform_indices = @transform_3, window_bounds = array<i64: 1, 256, 128>}]} {
    %c0 = arith.constant 0 : index
    %c0_0 = arith.constant 0 : index
    %c0_1 = arith.constant 0 : index
    %0 = vector.load %arg3[%c0, %c0_0, %c0_1] : memref<1x256x36xbf16, #tpu.memory_space<vmem>>, vector<1x256x36xbf16>
    %1 = vector.shape_cast %0 : vector<1x256x36xbf16> to vector<256x36xbf16>
    %c0_2 = arith.constant 0 : index
    %c0_3 = arith.constant 0 : index
    %c0_4 = arith.constant 0 : index
    %2 = vector.load %arg4[%c0_2, %c0_3, %c0_4] : memref<1x36x128xbf16, #tpu.memory_space<vmem>>, vector<1x36x128xbf16>
    %3 = vector.shape_cast %2 : vector<1x36x128xbf16> to vector<36x128xbf16>
    %cst = arith.constant dense<0.000000e+00> : vector<256x128xf32>
    %4 = tpu.matmul %1, %3, %cst {dimension_numbers = #tpu.dot_dimension_numbers<[1], [0], [0], [1], [0, 0, 1, 1], [], []>} : vector<256x36xbf16>, vector<36x128xbf16>, vector<256x128xf32> -> vector<256x128xf32>
    %c0_5 = arith.constant 0 : index
    %c0_6 = arith.constant 0 : index
    %5 = vector.load %arg5[%c0_5, %c0_6] : memref<1x128xf32, #tpu.memory_space<vmem>>, vector<1x128xf32>
    %6 = vector.broadcast %5 : vector<1x128xf32> to vector<256x128xf32>
    %7 = arith.addf %4, %6 : vector<256x128xf32>
    %cst_7 = arith.constant 0.000000e+00 : f32
    %8 = vector.broadcast %cst_7 : f32 to vector<256x128xf32>
    %9 = arith.maximumf %7, %8 : vector<256x128xf32>
    %10 = arith.truncf %9 : vector<256x128xf32> to vector<256x128xbf16>
    %c0_8 = arith.constant 0 : index
    %c0_9 = arith.constant 0 : index
    %c0_10 = arith.constant 0 : index
    %11 = vector.load %arg6[%c0_8, %c0_9, %c0_10] : memref<1x256x128xbf16, #tpu.memory_space<vmem>>, vector<1x256x128xbf16>
    %12 = vector.shape_cast %11 : vector<1x256x128xbf16> to vector<256x128xbf16>
    %13 = vector.shape_cast %10 : vector<256x128xbf16> to vector<1x256x128xbf16>
    tpu.vector_store %arg6[%c0_8, %c0_9, %c0_10], %13 {strides = array<i32>} : memref<1x256x128xbf16, #tpu.memory_space<vmem>>, vector<1x256x128xbf16>,
    return
  }
  func.func @transform_0(%arg0: i32, %arg1: i32, %arg2: i32) -> (i32, i32, i32) {
    %c0_i32 = arith.constant 0 : i32
    %c0_i32_0 = arith.constant 0 : i32
    return %arg0, %arg2, %c0_i32 : i32, i32, i32
  }
  func.func @transform_1(%arg0: i32, %arg1: i32, %arg2: i32) -> (i32, i32, i32) {
    %c0_i32 = arith.constant 0 : i32
    %c0_i32_0 = arith.constant 0 : i32
    return %arg0, %c0_i32, %arg1 : i32, i32, i32
  }
  func.func @transform_2(%arg0: i32, %arg1: i32, %arg2: i32) -> (i32, i32) {
    %c0_i32 = arith.constant 0 : i32
    %c0_i32_0 = arith.constant 0 : i32
    return %c0_i32, %arg1 : i32, i32
  }
  func.func @transform_3(%arg0: i32, %arg1: i32, %arg2: i32) -> (i32, i32, i32) {
    %c0_i32 = arith.constant 0 : i32
    return %arg0, %arg2, %arg1 : i32, i32, i32
  }
}

module attributes {stable_mosaic.version = 11 : i64} {
  func.func @_matmul_kernel(%arg0: i32, %arg1: i32, %arg2: i32, %arg3: memref<1x256x576xbf16, #tpu.memory_space<vmem>>, %arg4: memref<1x576x128xbf16, #tpu.memory_space<vmem>>, %arg5: memref<1x128xf32, #tpu.memory_space<vmem>>, %arg6: memref<1x256x128xbf16, #tpu.memory_space<vmem>>) attributes {dimension_semantics = [#tpu.dimension_semantics<parallel>, #tpu.dimension_semantics<parallel>, #tpu.dimension_semantics<parallel>], iteration_bounds = array<i64: 1, 1, 1>, scalar_prefetch = 0 : i64, scratch_operands = 0 : i64, tpu.core_type = #tpu.core_type<tc>, window_params = [{transform_indices = @transform_0, window_bounds = array<i64: 1, 256, 576>}, {transform_indices = @transform_1, window_bounds = array<i64: 1, 576, 128>}, {transform_indices = @transform_2, window_bounds = array<i64: 1, 128>}, {transform_indices = @transform_3, window_bounds = array<i64: 1, 256, 128>}]} {
    %c0 = arith.constant 0 : index
    %c0_0 = arith.constant 0 : index
    %c0_1 = arith.constant 0 : index
    %0 = vector.load %arg3[%c0, %c0_0, %c0_1] : memref<1x256x576xbf16, #tpu.memory_space<vmem>>, vector<1x256x576xbf16>
    %1 = vector.shape_cast %0 : vector<1x256x576xbf16> to vector<256x576xbf16>
    %c0_2 = arith.constant 0 : index
    %c0_3 = arith.constant 0 : index
    %c0_4 = arith.constant 0 : index
    %2 = vector.load %arg4[%c0_2, %c0_3, %c0_4] : memref<1x576x128xbf16, #tpu.memory_space<vmem>>, vector<1x576x128xbf16>
    %3 = vector.shape_cast %2 : vector<1x576x128xbf16> to vector<576x128xbf16>
    %cst = arith.constant dense<0.000000e+00> : vector<256x128xf32>
    %4 = tpu.matmul %1, %3, %cst {dimension_numbers = #tpu.dot_dimension_numbers<[1], [0], [0], [1], [0, 0, 1, 1], [], []>} : vector<256x576xbf16>, vector<576x128xbf16>, vector<256x128xf32> -> vector<256x128xf32>
    %c0_5 = arith.constant 0 : index
    %c0_6 = arith.constant 0 : index
    %5 = vector.load %arg5[%c0_5, %c0_6] : memref<1x128xf32, #tpu.memory_space<vmem>>, vector<1x128xf32>
    %6 = vector.broadcast %5 : vector<1x128xf32> to vector<256x128xf32>
    %7 = arith.addf %4, %6 : vector<256x128xf32>
    %cst_7 = arith.constant 0.000000e+00 : f32
    %8 = vector.broadcast %cst_7 : f32 to vector<256x128xf32>
    %9 = arith.maximumf %7, %8 : vector<256x128xf32>
    %10 = arith.truncf %9 : vector<256x128xf32> to vector<256x128xbf16>
    %c0_8 = arith.constant 0 : index
    %c0_9 = arith.constant 0 : index
    %c0_10 = arith.constant 0 : index
    %11 = vector.load %arg6[%c0_8, %c0_9, %c0_10] : memref<1x256x128xbf16, #tpu.memory_space<vmem>>, vector<1x256x128xbf16>
    %12 = vector.shape_cast %11 : vector<1x256x128xbf16> to vector<256x128xbf16>
    %13 = vector.shape_cast %10 : vector<256x128xbf16> to vector<1x256x128xbf16>
    tpu.vector_store %arg6[%c0_8, %c0_9, %c0_10], %13 {strides = array<i32>} : memref<1x256x128xbf16, #tpu.memory_space<vmem>>, vector<1x256x128xbf16>,
    return
  }
  func.func @transform_0(%arg0: i32, %arg1: i32, %arg2: i32) -> (i32, i32, i32) {
    %c0_i32 = arith.constant 0 : i32
    %c0_i32_0 = arith.constant 0 : i32
    return %arg0, %arg2, %c0_i32 : i32, i32, i32
  }
  func.func @transform_1(%arg0: i32, %arg1: i32, %arg2: i32) -> (i32, i32, i32) {
    %c0_i32 = arith.constant 0 : i32
    %c0_i32_0 = arith.constant 0 : i32
    return %arg0, %c0_i32, %arg1 : i32, i32, i32
  }
  func.func @transform_2(%arg0: i32, %arg1: i32, %arg2: i32) -> (i32, i32) {
    %c0_i32 = arith.constant 0 : i32
    %c0_i32_0 = arith.constant 0 : i32
    return %c0_i32, %arg1 : i32, i32
  }
  func.func @transform_3(%arg0: i32, %arg1: i32, %arg2: i32) -> (i32, i32, i32) {
    %c0_i32 = arith.constant 0 : i32
    return %arg0, %arg2, %arg1 : i32, i32, i32
  }
}

module attributes {stable_mosaic.version = 11 : i64} {
  func.func @_bn_stats_kernel(%arg0: i32, %arg1: i32, %arg2: memref<256x64xbf16, #tpu.memory_space<vmem>>, %arg3: memref<2x64xf32, #tpu.memory_space<vmem>>) attributes {dimension_semantics = [#tpu.dimension_semantics<parallel>, #tpu.dimension_semantics<arbitrary>], iteration_bounds = array<i64: 1, 1>, scalar_prefetch = 0 : i64, scratch_operands = 0 : i64, tpu.core_type = #tpu.core_type<tc>, window_params = [{transform_indices = @transform_0, window_bounds = array<i64: 256, 64>}, {transform_indices = @transform_1, window_bounds = array<i64: 2, 64>}]} {
    %c0_i32 = arith.constant 0 : i32
    %0 = arith.cmpi eq, %arg1, %c0_i32 : i32
    %1 = arith.extui %0 : i1 to i32
    %c0_i32_0 = arith.constant 0 : i32
    %2 = arith.cmpi ne, %1, %c0_i32_0 : i32
    scf.if %2 {
      %cst_7 = arith.constant 0.000000e+00 : f32
      %14 = vector.broadcast %cst_7 : f32 to vector<2x64xf32>
      %c0_8 = arith.constant 0 : index
      %c0_9 = arith.constant 0 : index
      %15 = vector.load %arg3[%c0_8, %c0_9] : memref<2x64xf32, #tpu.memory_space<vmem>>, vector<2x64xf32>
      tpu.vector_store %arg3[%c0_8, %c0_9], %14 {strides = array<i32>} : memref<2x64xf32, #tpu.memory_space<vmem>>, vector<2x64xf32>,
    } else {
    }
    %c0 = arith.constant 0 : index
    %c0_1 = arith.constant 0 : index
    %3 = vector.load %arg2[%c0, %c0_1] : memref<256x64xbf16, #tpu.memory_space<vmem>>, vector<256x64xbf16>
    %4 = arith.extf %3 : vector<256x64xbf16> to vector<256x64xf32>
    %cst = arith.constant dense<0.000000e+00> : vector<64xf32>
    %5 = vector.multi_reduction <add>, %4, %cst [0] : vector<256x64xf32> to vector<64xf32>
    %6 = vector.shape_cast %5 : vector<64xf32> to vector<1x64xf32>
    %7 = arith.mulf %4, %4 : vector<256x64xf32>
    %cst_2 = arith.constant dense<0.000000e+00> : vector<64xf32>
    %8 = vector.multi_reduction <add>, %7, %cst_2 [0] : vector<256x64xf32> to vector<64xf32>
    %9 = vector.shape_cast %8 : vector<64xf32> to vector<1x64xf32>
    %c0_3 = arith.constant 0 : index
    %c0_4 = arith.constant 0 : index
    %10 = vector.load %arg3[%c0_3, %c0_4] : memref<2x64xf32, #tpu.memory_space<vmem>>, vector<2x64xf32>
    %11 = tpu.concatenate %6, %9 in 0 : vector<1x64xf32>, vector<1x64xf32> -> vector<2x64xf32>
    %12 = arith.addf %10, %11 : vector<2x64xf32>
    %c0_5 = arith.constant 0 : index
    %c0_6 = arith.constant 0 : index
    %13 = vector.load %arg3[%c0_5, %c0_6] : memref<2x64xf32, #tpu.memory_space<vmem>>, vector<2x64xf32>
    tpu.vector_store %arg3[%c0_5, %c0_6], %12 {strides = array<i32>} : memref<2x64xf32, #tpu.memory_space<vmem>>, vector<2x64xf32>,
    return
  }
  func.func @transform_0(%arg0: i32, %arg1: i32) -> (i32, i32) {
    %c0_i32 = arith.constant 0 : i32
    return %arg1, %arg0 : i32, i32
  }
  func.func @transform_1(%arg0: i32, %arg1: i32) -> (i32, i32) {
    %c0_i32 = arith.constant 0 : i32
    %c0_i32_0 = arith.constant 0 : i32
    return %c0_i32, %arg0 : i32, i32
  }
}

module attributes {stable_mosaic.version = 11 : i64} {
  func.func @_bn_norm_kernel(%arg0: i32, %arg1: i32, %arg2: memref<256x64xbf16, #tpu.memory_space<vmem>>, %arg3: memref<2x64xf32, #tpu.memory_space<vmem>>, %arg4: memref<256x64xbf16, #tpu.memory_space<vmem>>) attributes {dimension_semantics = [#tpu.dimension_semantics<parallel>, #tpu.dimension_semantics<parallel>], iteration_bounds = array<i64: 1, 1>, scalar_prefetch = 0 : i64, scratch_operands = 0 : i64, tpu.core_type = #tpu.core_type<tc>, window_params = [{transform_indices = @transform_0, window_bounds = array<i64: 256, 64>}, {transform_indices = @transform_1, window_bounds = array<i64: 2, 64>}, {transform_indices = @transform_2, window_bounds = array<i64: 256, 64>}]} {
    %c0 = arith.constant 0 : index
    %c0_0 = arith.constant 0 : index
    %0 = vector.load %arg2[%c0, %c0_0] : memref<256x64xbf16, #tpu.memory_space<vmem>>, vector<256x64xbf16>
    %1 = arith.extf %0 : vector<256x64xbf16> to vector<256x64xf32>
    %c0_1 = arith.constant 0 : index
    %c0_2 = arith.constant 0 : index
    %2 = vector.load %arg3[%c0_1, %c0_2] : memref<2x64xf32, #tpu.memory_space<vmem>>, vector<2x64xf32>
    %3 = vector.extract_strided_slice %2 {offsets = [0, 0], sizes = [1, 64], strides = [1, 1]} : vector<2x64xf32> to vector<1x64xf32>
    %cst = arith.constant 3.906250e-03 : f32
    %4 = vector.broadcast %cst : f32 to vector<1x64xf32>
    %5 = arith.mulf %3, %4 : vector<1x64xf32>
    %6 = vector.extract_strided_slice %2 {offsets = [1, 0], sizes = [1, 64], strides = [1, 1]} : vector<2x64xf32> to vector<1x64xf32>
    %cst_3 = arith.constant 3.906250e-03 : f32
    %7 = vector.broadcast %cst_3 : f32 to vector<1x64xf32>
    %8 = arith.mulf %6, %7 : vector<1x64xf32>
    %9 = arith.mulf %5, %5 : vector<1x64xf32>
    %10 = arith.subf %8, %9 : vector<1x64xf32>
    %11 = vector.broadcast %5 : vector<1x64xf32> to vector<256x64xf32>
    %12 = arith.subf %1, %11 : vector<256x64xf32>
    %cst_4 = arith.constant 9.99999974E-6 : f32
    %13 = vector.broadcast %cst_4 : f32 to vector<1x64xf32>
    %14 = arith.addf %10, %13 : vector<1x64xf32>
    %15 = math.rsqrt %14 : vector<1x64xf32>
    %16 = vector.broadcast %15 : vector<1x64xf32> to vector<256x64xf32>
    %17 = arith.mulf %12, %16 : vector<256x64xf32>
    %18 = arith.truncf %17 : vector<256x64xf32> to vector<256x64xbf16>
    %c0_5 = arith.constant 0 : index
    %c0_6 = arith.constant 0 : index
    %19 = vector.load %arg4[%c0_5, %c0_6] : memref<256x64xbf16, #tpu.memory_space<vmem>>, vector<256x64xbf16>
    tpu.vector_store %arg4[%c0_5, %c0_6], %18 {strides = array<i32>} : memref<256x64xbf16, #tpu.memory_space<vmem>>, vector<256x64xbf16>,
    return
  }
  func.func @transform_0(%arg0: i32, %arg1: i32) -> (i32, i32) {
    %c0_i32 = arith.constant 0 : i32
    return %arg0, %arg1 : i32, i32
  }
  func.func @transform_1(%arg0: i32, %arg1: i32) -> (i32, i32) {
    %c0_i32 = arith.constant 0 : i32
    %c0_i32_0 = arith.constant 0 : i32
    return %c0_i32, %arg1 : i32, i32
  }
  func.func @transform_2(%arg0: i32, %arg1: i32) -> (i32, i32) {
    %c0_i32 = arith.constant 0 : i32
    return %arg0, %arg1 : i32, i32
  }
}

module attributes {stable_mosaic.version = 11 : i64} {
  func.func @_matmul_kernel(%arg0: i32, %arg1: i32, %arg2: i32, %arg3: memref<1x256x144xbf16, #tpu.memory_space<vmem>>, %arg4: memref<1x144x128xbf16, #tpu.memory_space<vmem>>, %arg5: memref<1x128xf32, #tpu.memory_space<vmem>>, %arg6: memref<1x256x128xbf16, #tpu.memory_space<vmem>>) attributes {dimension_semantics = [#tpu.dimension_semantics<parallel>, #tpu.dimension_semantics<parallel>, #tpu.dimension_semantics<parallel>], iteration_bounds = array<i64: 1, 1, 1>, scalar_prefetch = 0 : i64, scratch_operands = 0 : i64, tpu.core_type = #tpu.core_type<tc>, window_params = [{transform_indices = @transform_0, window_bounds = array<i64: 1, 256, 144>}, {transform_indices = @transform_1, window_bounds = array<i64: 1, 144, 128>}, {transform_indices = @transform_2, window_bounds = array<i64: 1, 128>}, {transform_indices = @transform_3, window_bounds = array<i64: 1, 256, 128>}]} {
    %c0 = arith.constant 0 : index
    %c0_0 = arith.constant 0 : index
    %c0_1 = arith.constant 0 : index
    %0 = vector.load %arg3[%c0, %c0_0, %c0_1] : memref<1x256x144xbf16, #tpu.memory_space<vmem>>, vector<1x256x144xbf16>
    %1 = vector.shape_cast %0 : vector<1x256x144xbf16> to vector<256x144xbf16>
    %c0_2 = arith.constant 0 : index
    %c0_3 = arith.constant 0 : index
    %c0_4 = arith.constant 0 : index
    %2 = vector.load %arg4[%c0_2, %c0_3, %c0_4] : memref<1x144x128xbf16, #tpu.memory_space<vmem>>, vector<1x144x128xbf16>
    %3 = vector.shape_cast %2 : vector<1x144x128xbf16> to vector<144x128xbf16>
    %cst = arith.constant dense<0.000000e+00> : vector<256x128xf32>
    %4 = tpu.matmul %1, %3, %cst {dimension_numbers = #tpu.dot_dimension_numbers<[1], [0], [0], [1], [0, 0, 1, 1], [], []>} : vector<256x144xbf16>, vector<144x128xbf16>, vector<256x128xf32> -> vector<256x128xf32>
    %c0_5 = arith.constant 0 : index
    %c0_6 = arith.constant 0 : index
    %5 = vector.load %arg5[%c0_5, %c0_6] : memref<1x128xf32, #tpu.memory_space<vmem>>, vector<1x128xf32>
    %6 = vector.broadcast %5 : vector<1x128xf32> to vector<256x128xf32>
    %7 = arith.addf %4, %6 : vector<256x128xf32>
    %cst_7 = arith.constant 0.000000e+00 : f32
    %8 = vector.broadcast %cst_7 : f32 to vector<256x128xf32>
    %9 = arith.maximumf %7, %8 : vector<256x128xf32>
    %10 = arith.truncf %9 : vector<256x128xf32> to vector<256x128xbf16>
    %c0_8 = arith.constant 0 : index
    %c0_9 = arith.constant 0 : index
    %c0_10 = arith.constant 0 : index
    %11 = vector.load %arg6[%c0_8, %c0_9, %c0_10] : memref<1x256x128xbf16, #tpu.memory_space<vmem>>, vector<1x256x128xbf16>
    %12 = vector.shape_cast %11 : vector<1x256x128xbf16> to vector<256x128xbf16>
    %13 = vector.shape_cast %10 : vector<256x128xbf16> to vector<1x256x128xbf16>
    tpu.vector_store %arg6[%c0_8, %c0_9, %c0_10], %13 {strides = array<i32>} : memref<1x256x128xbf16, #tpu.memory_space<vmem>>, vector<1x256x128xbf16>,
    return
  }
  func.func @transform_0(%arg0: i32, %arg1: i32, %arg2: i32) -> (i32, i32, i32) {
    %c0_i32 = arith.constant 0 : i32
    %c0_i32_0 = arith.constant 0 : i32
    return %arg0, %arg2, %c0_i32 : i32, i32, i32
  }
  func.func @transform_1(%arg0: i32, %arg1: i32, %arg2: i32) -> (i32, i32, i32) {
    %c0_i32 = arith.constant 0 : i32
    %c0_i32_0 = arith.constant 0 : i32
    return %arg0, %c0_i32, %arg1 : i32, i32, i32
  }
  func.func @transform_2(%arg0: i32, %arg1: i32, %arg2: i32) -> (i32, i32) {
    %c0_i32 = arith.constant 0 : i32
    %c0_i32_0 = arith.constant 0 : i32
    return %c0_i32, %arg1 : i32, i32
  }
  func.func @transform_3(%arg0: i32, %arg1: i32, %arg2: i32) -> (i32, i32, i32) {
    %c0_i32 = arith.constant 0 : i32
    return %arg0, %arg2, %arg1 : i32, i32, i32
  }
}

module attributes {stable_mosaic.version = 11 : i64} {
  func.func @_matmul_kernel(%arg0: i32, %arg1: i32, %arg2: i32, %arg3: memref<1x256x144xbf16, #tpu.memory_space<vmem>>, %arg4: memref<1x144x128xbf16, #tpu.memory_space<vmem>>, %arg5: memref<1x128xf32, #tpu.memory_space<vmem>>, %arg6: memref<1x256x128xbf16, #tpu.memory_space<vmem>>) attributes {dimension_semantics = [#tpu.dimension_semantics<parallel>, #tpu.dimension_semantics<parallel>, #tpu.dimension_semantics<parallel>], iteration_bounds = array<i64: 1, 1, 1>, scalar_prefetch = 0 : i64, scratch_operands = 0 : i64, tpu.core_type = #tpu.core_type<tc>, window_params = [{transform_indices = @transform_0, window_bounds = array<i64: 1, 256, 144>}, {transform_indices = @transform_1, window_bounds = array<i64: 1, 144, 128>}, {transform_indices = @transform_2, window_bounds = array<i64: 1, 128>}, {transform_indices = @transform_3, window_bounds = array<i64: 1, 256, 128>}]} {
    %c0 = arith.constant 0 : index
    %c0_0 = arith.constant 0 : index
    %c0_1 = arith.constant 0 : index
    %0 = vector.load %arg3[%c0, %c0_0, %c0_1] : memref<1x256x144xbf16, #tpu.memory_space<vmem>>, vector<1x256x144xbf16>
    %1 = vector.shape_cast %0 : vector<1x256x144xbf16> to vector<256x144xbf16>
    %c0_2 = arith.constant 0 : index
    %c0_3 = arith.constant 0 : index
    %c0_4 = arith.constant 0 : index
    %2 = vector.load %arg4[%c0_2, %c0_3, %c0_4] : memref<1x144x128xbf16, #tpu.memory_space<vmem>>, vector<1x144x128xbf16>
    %3 = vector.shape_cast %2 : vector<1x144x128xbf16> to vector<144x128xbf16>
    %cst = arith.constant dense<0.000000e+00> : vector<256x128xf32>
    %4 = tpu.matmul %1, %3, %cst {dimension_numbers = #tpu.dot_dimension_numbers<[1], [0], [0], [1], [0, 0, 1, 1], [], []>} : vector<256x144xbf16>, vector<144x128xbf16>, vector<256x128xf32> -> vector<256x128xf32>
    %c0_5 = arith.constant 0 : index
    %c0_6 = arith.constant 0 : index
    %5 = vector.load %arg5[%c0_5, %c0_6] : memref<1x128xf32, #tpu.memory_space<vmem>>, vector<1x128xf32>
    %6 = vector.broadcast %5 : vector<1x128xf32> to vector<256x128xf32>
    %7 = arith.addf %4, %6 : vector<256x128xf32>
    %cst_7 = arith.constant 0.000000e+00 : f32
    %8 = vector.broadcast %cst_7 : f32 to vector<256x128xf32>
    %9 = arith.maximumf %7, %8 : vector<256x128xf32>
    %10 = arith.truncf %9 : vector<256x128xf32> to vector<256x128xbf16>
    %c0_8 = arith.constant 0 : index
    %c0_9 = arith.constant 0 : index
    %c0_10 = arith.constant 0 : index
    %11 = vector.load %arg6[%c0_8, %c0_9, %c0_10] : memref<1x256x128xbf16, #tpu.memory_space<vmem>>, vector<1x256x128xbf16>
    %12 = vector.shape_cast %11 : vector<1x256x128xbf16> to vector<256x128xbf16>
    %13 = vector.shape_cast %10 : vector<256x128xbf16> to vector<1x256x128xbf16>
    tpu.vector_store %arg6[%c0_8, %c0_9, %c0_10], %13 {strides = array<i32>} : memref<1x256x128xbf16, #tpu.memory_space<vmem>>, vector<1x256x128xbf16>,
    return
  }
  func.func @transform_0(%arg0: i32, %arg1: i32, %arg2: i32) -> (i32, i32, i32) {
    %c0_i32 = arith.constant 0 : i32
    %c0_i32_0 = arith.constant 0 : i32
    return %arg0, %arg2, %c0_i32 : i32, i32, i32
  }
  func.func @transform_1(%arg0: i32, %arg1: i32, %arg2: i32) -> (i32, i32, i32) {
    %c0_i32 = arith.constant 0 : i32
    %c0_i32_0 = arith.constant 0 : i32
    return %arg0, %c0_i32, %arg1 : i32, i32, i32
  }
  func.func @transform_2(%arg0: i32, %arg1: i32, %arg2: i32) -> (i32, i32) {
    %c0_i32 = arith.constant 0 : i32
    %c0_i32_0 = arith.constant 0 : i32
    return %c0_i32, %arg1 : i32, i32
  }
  func.func @transform_3(%arg0: i32, %arg1: i32, %arg2: i32) -> (i32, i32, i32) {
    %c0_i32 = arith.constant 0 : i32
    return %arg0, %arg2, %arg1 : i32, i32, i32
  }
}

module attributes {stable_mosaic.version = 11 : i64} {
  func.func @_matmul_kernel(%arg0: i32, %arg1: i32, %arg2: i32, %arg3: memref<1x64x576xbf16, #tpu.memory_space<vmem>>, %arg4: memref<1x576x128xbf16, #tpu.memory_space<vmem>>, %arg5: memref<1x128xf32, #tpu.memory_space<vmem>>, %arg6: memref<1x64x128xbf16, #tpu.memory_space<vmem>>) attributes {dimension_semantics = [#tpu.dimension_semantics<parallel>, #tpu.dimension_semantics<parallel>, #tpu.dimension_semantics<parallel>], iteration_bounds = array<i64: 1, 1, 1>, scalar_prefetch = 0 : i64, scratch_operands = 0 : i64, tpu.core_type = #tpu.core_type<tc>, window_params = [{transform_indices = @transform_0, window_bounds = array<i64: 1, 64, 576>}, {transform_indices = @transform_1, window_bounds = array<i64: 1, 576, 128>}, {transform_indices = @transform_2, window_bounds = array<i64: 1, 128>}, {transform_indices = @transform_3, window_bounds = array<i64: 1, 64, 128>}]} {
    %c0 = arith.constant 0 : index
    %c0_0 = arith.constant 0 : index
    %c0_1 = arith.constant 0 : index
    %0 = vector.load %arg3[%c0, %c0_0, %c0_1] : memref<1x64x576xbf16, #tpu.memory_space<vmem>>, vector<1x64x576xbf16>
    %1 = vector.shape_cast %0 : vector<1x64x576xbf16> to vector<64x576xbf16>
    %c0_2 = arith.constant 0 : index
    %c0_3 = arith.constant 0 : index
    %c0_4 = arith.constant 0 : index
    %2 = vector.load %arg4[%c0_2, %c0_3, %c0_4] : memref<1x576x128xbf16, #tpu.memory_space<vmem>>, vector<1x576x128xbf16>
    %3 = vector.shape_cast %2 : vector<1x576x128xbf16> to vector<576x128xbf16>
    %cst = arith.constant dense<0.000000e+00> : vector<64x128xf32>
    %4 = tpu.matmul %1, %3, %cst {dimension_numbers = #tpu.dot_dimension_numbers<[1], [0], [0], [1], [0, 0, 1, 1], [], []>} : vector<64x576xbf16>, vector<576x128xbf16>, vector<64x128xf32> -> vector<64x128xf32>
    %c0_5 = arith.constant 0 : index
    %c0_6 = arith.constant 0 : index
    %5 = vector.load %arg5[%c0_5, %c0_6] : memref<1x128xf32, #tpu.memory_space<vmem>>, vector<1x128xf32>
    %6 = vector.broadcast %5 : vector<1x128xf32> to vector<64x128xf32>
    %7 = arith.addf %4, %6 : vector<64x128xf32>
    %cst_7 = arith.constant 0.000000e+00 : f32
    %8 = vector.broadcast %cst_7 : f32 to vector<64x128xf32>
    %9 = arith.maximumf %7, %8 : vector<64x128xf32>
    %10 = arith.truncf %9 : vector<64x128xf32> to vector<64x128xbf16>
    %c0_8 = arith.constant 0 : index
    %c0_9 = arith.constant 0 : index
    %c0_10 = arith.constant 0 : index
    %11 = vector.load %arg6[%c0_8, %c0_9, %c0_10] : memref<1x64x128xbf16, #tpu.memory_space<vmem>>, vector<1x64x128xbf16>
    %12 = vector.shape_cast %11 : vector<1x64x128xbf16> to vector<64x128xbf16>
    %13 = vector.shape_cast %10 : vector<64x128xbf16> to vector<1x64x128xbf16>
    tpu.vector_store %arg6[%c0_8, %c0_9, %c0_10], %13 {strides = array<i32>} : memref<1x64x128xbf16, #tpu.memory_space<vmem>>, vector<1x64x128xbf16>,
    return
  }
  func.func @transform_0(%arg0: i32, %arg1: i32, %arg2: i32) -> (i32, i32, i32) {
    %c0_i32 = arith.constant 0 : i32
    %c0_i32_0 = arith.constant 0 : i32
    return %arg0, %arg2, %c0_i32 : i32, i32, i32
  }
  func.func @transform_1(%arg0: i32, %arg1: i32, %arg2: i32) -> (i32, i32, i32) {
    %c0_i32 = arith.constant 0 : i32
    %c0_i32_0 = arith.constant 0 : i32
    return %arg0, %c0_i32, %arg1 : i32, i32, i32
  }
  func.func @transform_2(%arg0: i32, %arg1: i32, %arg2: i32) -> (i32, i32) {
    %c0_i32 = arith.constant 0 : i32
    %c0_i32_0 = arith.constant 0 : i32
    return %c0_i32, %arg1 : i32, i32
  }
  func.func @transform_3(%arg0: i32, %arg1: i32, %arg2: i32) -> (i32, i32, i32) {
    %c0_i32 = arith.constant 0 : i32
    return %arg0, %arg2, %arg1 : i32, i32, i32
  }
}

module attributes {stable_mosaic.version = 11 : i64} {
  func.func @_matmul_kernel(%arg0: i32, %arg1: i32, %arg2: i32, %arg3: memref<1x64x144xbf16, #tpu.memory_space<vmem>>, %arg4: memref<1x144x128xbf16, #tpu.memory_space<vmem>>, %arg5: memref<1x128xf32, #tpu.memory_space<vmem>>, %arg6: memref<1x64x128xbf16, #tpu.memory_space<vmem>>) attributes {dimension_semantics = [#tpu.dimension_semantics<parallel>, #tpu.dimension_semantics<parallel>, #tpu.dimension_semantics<parallel>], iteration_bounds = array<i64: 1, 1, 1>, scalar_prefetch = 0 : i64, scratch_operands = 0 : i64, tpu.core_type = #tpu.core_type<tc>, window_params = [{transform_indices = @transform_0, window_bounds = array<i64: 1, 64, 144>}, {transform_indices = @transform_1, window_bounds = array<i64: 1, 144, 128>}, {transform_indices = @transform_2, window_bounds = array<i64: 1, 128>}, {transform_indices = @transform_3, window_bounds = array<i64: 1, 64, 128>}]} {
    %c0 = arith.constant 0 : index
    %c0_0 = arith.constant 0 : index
    %c0_1 = arith.constant 0 : index
    %0 = vector.load %arg3[%c0, %c0_0, %c0_1] : memref<1x64x144xbf16, #tpu.memory_space<vmem>>, vector<1x64x144xbf16>
    %1 = vector.shape_cast %0 : vector<1x64x144xbf16> to vector<64x144xbf16>
    %c0_2 = arith.constant 0 : index
    %c0_3 = arith.constant 0 : index
    %c0_4 = arith.constant 0 : index
    %2 = vector.load %arg4[%c0_2, %c0_3, %c0_4] : memref<1x144x128xbf16, #tpu.memory_space<vmem>>, vector<1x144x128xbf16>
    %3 = vector.shape_cast %2 : vector<1x144x128xbf16> to vector<144x128xbf16>
    %cst = arith.constant dense<0.000000e+00> : vector<64x128xf32>
    %4 = tpu.matmul %1, %3, %cst {dimension_numbers = #tpu.dot_dimension_numbers<[1], [0], [0], [1], [0, 0, 1, 1], [], []>} : vector<64x144xbf16>, vector<144x128xbf16>, vector<64x128xf32> -> vector<64x128xf32>
    %c0_5 = arith.constant 0 : index
    %c0_6 = arith.constant 0 : index
    %5 = vector.load %arg5[%c0_5, %c0_6] : memref<1x128xf32, #tpu.memory_space<vmem>>, vector<1x128xf32>
    %6 = vector.broadcast %5 : vector<1x128xf32> to vector<64x128xf32>
    %7 = arith.addf %4, %6 : vector<64x128xf32>
    %cst_7 = arith.constant 0.000000e+00 : f32
    %8 = vector.broadcast %cst_7 : f32 to vector<64x128xf32>
    %9 = arith.maximumf %7, %8 : vector<64x128xf32>
    %10 = arith.truncf %9 : vector<64x128xf32> to vector<64x128xbf16>
    %c0_8 = arith.constant 0 : index
    %c0_9 = arith.constant 0 : index
    %c0_10 = arith.constant 0 : index
    %11 = vector.load %arg6[%c0_8, %c0_9, %c0_10] : memref<1x64x128xbf16, #tpu.memory_space<vmem>>, vector<1x64x128xbf16>
    %12 = vector.shape_cast %11 : vector<1x64x128xbf16> to vector<64x128xbf16>
    %13 = vector.shape_cast %10 : vector<64x128xbf16> to vector<1x64x128xbf16>
    tpu.vector_store %arg6[%c0_8, %c0_9, %c0_10], %13 {strides = array<i32>} : memref<1x64x128xbf16, #tpu.memory_space<vmem>>, vector<1x64x128xbf16>,
    return
  }
  func.func @transform_0(%arg0: i32, %arg1: i32, %arg2: i32) -> (i32, i32, i32) {
    %c0_i32 = arith.constant 0 : i32
    %c0_i32_0 = arith.constant 0 : i32
    return %arg0, %arg2, %c0_i32 : i32, i32, i32
  }
  func.func @transform_1(%arg0: i32, %arg1: i32, %arg2: i32) -> (i32, i32, i32) {
    %c0_i32 = arith.constant 0 : i32
    %c0_i32_0 = arith.constant 0 : i32
    return %arg0, %c0_i32, %arg1 : i32, i32, i32
  }
  func.func @transform_2(%arg0: i32, %arg1: i32, %arg2: i32) -> (i32, i32) {
    %c0_i32 = arith.constant 0 : i32
    %c0_i32_0 = arith.constant 0 : i32
    return %c0_i32, %arg1 : i32, i32
  }
  func.func @transform_3(%arg0: i32, %arg1: i32, %arg2: i32) -> (i32, i32, i32) {
    %c0_i32 = arith.constant 0 : i32
    return %arg0, %arg2, %arg1 : i32, i32, i32
  }
}

module attributes {stable_mosaic.version = 11 : i64} {
  func.func @_fuse_kernel(%arg0: i32, %arg1: i32, %arg2: memref<256x2xf32, #tpu.memory_space<vmem>>, %arg3: memref<2x256x64xbf16, #tpu.memory_space<vmem>>, %arg4: memref<256x64xbf16, #tpu.memory_space<vmem>>) attributes {dimension_semantics = [#tpu.dimension_semantics<parallel>, #tpu.dimension_semantics<parallel>], iteration_bounds = array<i64: 1, 1>, scalar_prefetch = 0 : i64, scratch_operands = 0 : i64, tpu.core_type = #tpu.core_type<tc>, window_params = [{transform_indices = @transform_0, window_bounds = array<i64: 256, 2>}, {transform_indices = @transform_1, window_bounds = array<i64: 2, 256, 64>}, {transform_indices = @transform_2, window_bounds = array<i64: 256, 64>}]} {
    %c0 = arith.constant 0 : index
    %c0_0 = arith.constant 0 : index
    %0 = vector.load %arg2[%c0, %c0_0] : memref<256x2xf32, #tpu.memory_space<vmem>>, vector<256x2xf32>
    %cst = arith.constant dense<0xFF800000> : vector<256xf32>
    %1 = vector.multi_reduction <maximumf>, %0, %cst [1] : vector<256x2xf32> to vector<256xf32>
    %2 = vector.shape_cast %1 : vector<256xf32> to vector<256x1xf32>
    %3 = vector.broadcast %2 : vector<256x1xf32> to vector<256x2xf32>
    %4 = arith.subf %0, %3 : vector<256x2xf32>
    %5 = math.exp %4 : vector<256x2xf32>
    %cst_1 = arith.constant dense<0.000000e+00> : vector<256xf32>
    %6 = vector.multi_reduction <add>, %5, %cst_1 [1] : vector<256x2xf32> to vector<256xf32>
    %7 = vector.shape_cast %6 : vector<256xf32> to vector<256x1xf32>
    %8 = tpu.reciprocal %7 {approx = true} : vector<256x1xf32> -> vector<256x1xf32>
    %9 = vector.broadcast %8 : vector<256x1xf32> to vector<256x2xf32>
    %10 = arith.mulf %5, %9 : vector<256x2xf32>
    %cst_2 = arith.constant 0.000000e+00 : f32
    %11 = vector.broadcast %cst_2 : f32 to vector<256x64xf32>
    %12 = vector.extract_strided_slice %10 {offsets = [0, 0], sizes = [256, 1], strides = [1, 1]} : vector<256x2xf32> to vector<256x1xf32>
    %c0_3 = arith.constant 0 : index
    %c0_4 = arith.constant 0 : index
    %c0_5 = arith.constant 0 : index
    %13 = vector.load %arg3[%c0_3, %c0_4, %c0_5] : memref<2x256x64xbf16, #tpu.memory_space<vmem>>, vector<1x256x64xbf16>
    %14 = vector.shape_cast %13 : vector<1x256x64xbf16> to vector<256x64xbf16>
    %15 = arith.extf %14 : vector<256x64xbf16> to vector<256x64xf32>
    %16 = vector.broadcast %12 : vector<256x1xf32> to vector<256x64xf32>
    %17 = arith.mulf %16, %15 : vector<256x64xf32>
    %18 = arith.addf %11, %17 : vector<256x64xf32>
    %19 = vector.extract_strided_slice %10 {offsets = [0, 1], sizes = [256, 1], strides = [1, 1]} : vector<256x2xf32> to vector<256x1xf32>
    %c1 = arith.constant 1 : index
    %c0_6 = arith.constant 0 : index
    %c0_7 = arith.constant 0 : index
    %20 = vector.load %arg3[%c1, %c0_6, %c0_7] : memref<2x256x64xbf16, #tpu.memory_space<vmem>>, vector<1x256x64xbf16>
    %21 = vector.shape_cast %20 : vector<1x256x64xbf16> to vector<256x64xbf16>
    %22 = arith.extf %21 : vector<256x64xbf16> to vector<256x64xf32>
    %23 = vector.broadcast %19 : vector<256x1xf32> to vector<256x64xf32>
    %24 = arith.mulf %23, %22 : vector<256x64xf32>
    %25 = arith.addf %18, %24 : vector<256x64xf32>
    %26 = arith.truncf %25 : vector<256x64xf32> to vector<256x64xbf16>
    %c0_8 = arith.constant 0 : index
    %c0_9 = arith.constant 0 : index
    %27 = vector.load %arg4[%c0_8, %c0_9] : memref<256x64xbf16, #tpu.memory_space<vmem>>, vector<256x64xbf16>
    tpu.vector_store %arg4[%c0_8, %c0_9], %26 {strides = array<i32>} : memref<256x64xbf16, #tpu.memory_space<vmem>>, vector<256x64xbf16>,
    return
  }
  func.func @transform_0(%arg0: i32, %arg1: i32) -> (i32, i32) {
    %c0_i32 = arith.constant 0 : i32
    %c0_i32_0 = arith.constant 0 : i32
    return %arg0, %c0_i32 : i32, i32
  }
  func.func @transform_1(%arg0: i32, %arg1: i32) -> (i32, i32, i32) {
    %c0_i32 = arith.constant 0 : i32
    %c0_i32_0 = arith.constant 0 : i32
    return %c0_i32, %arg0, %arg1 : i32, i32, i32
  }
  func.func @transform_2(%arg0: i32, %arg1: i32) -> (i32, i32) {
    %c0_i32 = arith.constant 0 : i32
    return %arg0, %arg1 : i32, i32
  }
}

module attributes {stable_mosaic.version = 11 : i64} {
  func.func @_bn_stats_kernel(%arg0: i32, %arg1: i32, %arg2: memref<64x128xbf16, #tpu.memory_space<vmem>>, %arg3: memref<2x128xf32, #tpu.memory_space<vmem>>) attributes {dimension_semantics = [#tpu.dimension_semantics<parallel>, #tpu.dimension_semantics<arbitrary>], iteration_bounds = array<i64: 1, 1>, scalar_prefetch = 0 : i64, scratch_operands = 0 : i64, tpu.core_type = #tpu.core_type<tc>, window_params = [{transform_indices = @transform_0, window_bounds = array<i64: 64, 128>}, {transform_indices = @transform_1, window_bounds = array<i64: 2, 128>}]} {
    %c0_i32 = arith.constant 0 : i32
    %0 = arith.cmpi eq, %arg1, %c0_i32 : i32
    %1 = arith.extui %0 : i1 to i32
    %c0_i32_0 = arith.constant 0 : i32
    %2 = arith.cmpi ne, %1, %c0_i32_0 : i32
    scf.if %2 {
      %cst_7 = arith.constant 0.000000e+00 : f32
      %14 = vector.broadcast %cst_7 : f32 to vector<2x128xf32>
      %c0_8 = arith.constant 0 : index
      %c0_9 = arith.constant 0 : index
      %15 = vector.load %arg3[%c0_8, %c0_9] : memref<2x128xf32, #tpu.memory_space<vmem>>, vector<2x128xf32>
      tpu.vector_store %arg3[%c0_8, %c0_9], %14 {strides = array<i32>} : memref<2x128xf32, #tpu.memory_space<vmem>>, vector<2x128xf32>,
    } else {
    }
    %c0 = arith.constant 0 : index
    %c0_1 = arith.constant 0 : index
    %3 = vector.load %arg2[%c0, %c0_1] : memref<64x128xbf16, #tpu.memory_space<vmem>>, vector<64x128xbf16>
    %4 = arith.extf %3 : vector<64x128xbf16> to vector<64x128xf32>
    %cst = arith.constant dense<0.000000e+00> : vector<128xf32>
    %5 = vector.multi_reduction <add>, %4, %cst [0] : vector<64x128xf32> to vector<128xf32>
    %6 = vector.shape_cast %5 : vector<128xf32> to vector<1x128xf32>
    %7 = arith.mulf %4, %4 : vector<64x128xf32>
    %cst_2 = arith.constant dense<0.000000e+00> : vector<128xf32>
    %8 = vector.multi_reduction <add>, %7, %cst_2 [0] : vector<64x128xf32> to vector<128xf32>
    %9 = vector.shape_cast %8 : vector<128xf32> to vector<1x128xf32>
    %c0_3 = arith.constant 0 : index
    %c0_4 = arith.constant 0 : index
    %10 = vector.load %arg3[%c0_3, %c0_4] : memref<2x128xf32, #tpu.memory_space<vmem>>, vector<2x128xf32>
    %11 = tpu.concatenate %6, %9 in 0 : vector<1x128xf32>, vector<1x128xf32> -> vector<2x128xf32>
    %12 = arith.addf %10, %11 : vector<2x128xf32>
    %c0_5 = arith.constant 0 : index
    %c0_6 = arith.constant 0 : index
    %13 = vector.load %arg3[%c0_5, %c0_6] : memref<2x128xf32, #tpu.memory_space<vmem>>, vector<2x128xf32>
    tpu.vector_store %arg3[%c0_5, %c0_6], %12 {strides = array<i32>} : memref<2x128xf32, #tpu.memory_space<vmem>>, vector<2x128xf32>,
    return
  }
  func.func @transform_0(%arg0: i32, %arg1: i32) -> (i32, i32) {
    %c0_i32 = arith.constant 0 : i32
    return %arg1, %arg0 : i32, i32
  }
  func.func @transform_1(%arg0: i32, %arg1: i32) -> (i32, i32) {
    %c0_i32 = arith.constant 0 : i32
    %c0_i32_0 = arith.constant 0 : i32
    return %c0_i32, %arg0 : i32, i32
  }
}

module attributes {stable_mosaic.version = 11 : i64} {
  func.func @_matmul_kernel(%arg0: i32, %arg1: i32, %arg2: i32, %arg3: memref<1x64x1152xbf16, #tpu.memory_space<vmem>>, %arg4: memref<1x1152x128xbf16, #tpu.memory_space<vmem>>, %arg5: memref<1x128xf32, #tpu.memory_space<vmem>>, %arg6: memref<1x64x128xbf16, #tpu.memory_space<vmem>>) attributes {dimension_semantics = [#tpu.dimension_semantics<parallel>, #tpu.dimension_semantics<parallel>, #tpu.dimension_semantics<parallel>], iteration_bounds = array<i64: 1, 1, 1>, scalar_prefetch = 0 : i64, scratch_operands = 0 : i64, tpu.core_type = #tpu.core_type<tc>, window_params = [{transform_indices = @transform_0, window_bounds = array<i64: 1, 64, 1152>}, {transform_indices = @transform_1, window_bounds = array<i64: 1, 1152, 128>}, {transform_indices = @transform_2, window_bounds = array<i64: 1, 128>}, {transform_indices = @transform_3, window_bounds = array<i64: 1, 64, 128>}]} {
    %c0 = arith.constant 0 : index
    %c0_0 = arith.constant 0 : index
    %c0_1 = arith.constant 0 : index
    %0 = vector.load %arg3[%c0, %c0_0, %c0_1] : memref<1x64x1152xbf16, #tpu.memory_space<vmem>>, vector<1x64x1152xbf16>
    %1 = vector.shape_cast %0 : vector<1x64x1152xbf16> to vector<64x1152xbf16>
    %c0_2 = arith.constant 0 : index
    %c0_3 = arith.constant 0 : index
    %c0_4 = arith.constant 0 : index
    %2 = vector.load %arg4[%c0_2, %c0_3, %c0_4] : memref<1x1152x128xbf16, #tpu.memory_space<vmem>>, vector<1x1152x128xbf16>
    %3 = vector.shape_cast %2 : vector<1x1152x128xbf16> to vector<1152x128xbf16>
    %cst = arith.constant dense<0.000000e+00> : vector<64x128xf32>
    %4 = tpu.matmul %1, %3, %cst {dimension_numbers = #tpu.dot_dimension_numbers<[1], [0], [0], [1], [0, 0, 1, 1], [], []>} : vector<64x1152xbf16>, vector<1152x128xbf16>, vector<64x128xf32> -> vector<64x128xf32>
    %c0_5 = arith.constant 0 : index
    %c0_6 = arith.constant 0 : index
    %5 = vector.load %arg5[%c0_5, %c0_6] : memref<1x128xf32, #tpu.memory_space<vmem>>, vector<1x128xf32>
    %6 = vector.broadcast %5 : vector<1x128xf32> to vector<64x128xf32>
    %7 = arith.addf %4, %6 : vector<64x128xf32>
    %cst_7 = arith.constant 0.000000e+00 : f32
    %8 = vector.broadcast %cst_7 : f32 to vector<64x128xf32>
    %9 = arith.maximumf %7, %8 : vector<64x128xf32>
    %10 = arith.truncf %9 : vector<64x128xf32> to vector<64x128xbf16>
    %c0_8 = arith.constant 0 : index
    %c0_9 = arith.constant 0 : index
    %c0_10 = arith.constant 0 : index
    %11 = vector.load %arg6[%c0_8, %c0_9, %c0_10] : memref<1x64x128xbf16, #tpu.memory_space<vmem>>, vector<1x64x128xbf16>
    %12 = vector.shape_cast %11 : vector<1x64x128xbf16> to vector<64x128xbf16>
    %13 = vector.shape_cast %10 : vector<64x128xbf16> to vector<1x64x128xbf16>
    tpu.vector_store %arg6[%c0_8, %c0_9, %c0_10], %13 {strides = array<i32>} : memref<1x64x128xbf16, #tpu.memory_space<vmem>>, vector<1x64x128xbf16>,
    return
  }
  func.func @transform_0(%arg0: i32, %arg1: i32, %arg2: i32) -> (i32, i32, i32) {
    %c0_i32 = arith.constant 0 : i32
    %c0_i32_0 = arith.constant 0 : i32
    return %arg0, %arg2, %c0_i32 : i32, i32, i32
  }
  func.func @transform_1(%arg0: i32, %arg1: i32, %arg2: i32) -> (i32, i32, i32) {
    %c0_i32 = arith.constant 0 : i32
    %c0_i32_0 = arith.constant 0 : i32
    return %arg0, %c0_i32, %arg1 : i32, i32, i32
  }
  func.func @transform_2(%arg0: i32, %arg1: i32, %arg2: i32) -> (i32, i32) {
    %c0_i32 = arith.constant 0 : i32
    %c0_i32_0 = arith.constant 0 : i32
    return %c0_i32, %arg1 : i32, i32
  }
  func.func @transform_3(%arg0: i32, %arg1: i32, %arg2: i32) -> (i32, i32, i32) {
    %c0_i32 = arith.constant 0 : i32
    return %arg0, %arg2, %arg1 : i32, i32, i32
  }
}

module attributes {stable_mosaic.version = 11 : i64} {
  func.func @_bn_norm_kernel(%arg0: i32, %arg1: i32, %arg2: memref<64x128xbf16, #tpu.memory_space<vmem>>, %arg3: memref<2x128xf32, #tpu.memory_space<vmem>>, %arg4: memref<64x128xbf16, #tpu.memory_space<vmem>>) attributes {dimension_semantics = [#tpu.dimension_semantics<parallel>, #tpu.dimension_semantics<parallel>], iteration_bounds = array<i64: 1, 1>, scalar_prefetch = 0 : i64, scratch_operands = 0 : i64, tpu.core_type = #tpu.core_type<tc>, window_params = [{transform_indices = @transform_0, window_bounds = array<i64: 64, 128>}, {transform_indices = @transform_1, window_bounds = array<i64: 2, 128>}, {transform_indices = @transform_2, window_bounds = array<i64: 64, 128>}]} {
    %c0 = arith.constant 0 : index
    %c0_0 = arith.constant 0 : index
    %0 = vector.load %arg2[%c0, %c0_0] : memref<64x128xbf16, #tpu.memory_space<vmem>>, vector<64x128xbf16>
    %1 = arith.extf %0 : vector<64x128xbf16> to vector<64x128xf32>
    %c0_1 = arith.constant 0 : index
    %c0_2 = arith.constant 0 : index
    %2 = vector.load %arg3[%c0_1, %c0_2] : memref<2x128xf32, #tpu.memory_space<vmem>>, vector<2x128xf32>
    %3 = vector.extract_strided_slice %2 {offsets = [0, 0], sizes = [1, 128], strides = [1, 1]} : vector<2x128xf32> to vector<1x128xf32>
    %cst = arith.constant 1.562500e-02 : f32
    %4 = vector.broadcast %cst : f32 to vector<1x128xf32>
    %5 = arith.mulf %3, %4 : vector<1x128xf32>
    %6 = vector.extract_strided_slice %2 {offsets = [1, 0], sizes = [1, 128], strides = [1, 1]} : vector<2x128xf32> to vector<1x128xf32>
    %cst_3 = arith.constant 1.562500e-02 : f32
    %7 = vector.broadcast %cst_3 : f32 to vector<1x128xf32>
    %8 = arith.mulf %6, %7 : vector<1x128xf32>
    %9 = arith.mulf %5, %5 : vector<1x128xf32>
    %10 = arith.subf %8, %9 : vector<1x128xf32>
    %11 = vector.broadcast %5 : vector<1x128xf32> to vector<64x128xf32>
    %12 = arith.subf %1, %11 : vector<64x128xf32>
    %cst_4 = arith.constant 9.99999974E-6 : f32
    %13 = vector.broadcast %cst_4 : f32 to vector<1x128xf32>
    %14 = arith.addf %10, %13 : vector<1x128xf32>
    %15 = math.rsqrt %14 : vector<1x128xf32>
    %16 = vector.broadcast %15 : vector<1x128xf32> to vector<64x128xf32>
    %17 = arith.mulf %12, %16 : vector<64x128xf32>
    %18 = arith.truncf %17 : vector<64x128xf32> to vector<64x128xbf16>
    %c0_5 = arith.constant 0 : index
    %c0_6 = arith.constant 0 : index
    %19 = vector.load %arg4[%c0_5, %c0_6] : memref<64x128xbf16, #tpu.memory_space<vmem>>, vector<64x128xbf16>
    tpu.vector_store %arg4[%c0_5, %c0_6], %18 {strides = array<i32>} : memref<64x128xbf16, #tpu.memory_space<vmem>>, vector<64x128xbf16>,
    return
  }
  func.func @transform_0(%arg0: i32, %arg1: i32) -> (i32, i32) {
    %c0_i32 = arith.constant 0 : i32
    return %arg0, %arg1 : i32, i32
  }
  func.func @transform_1(%arg0: i32, %arg1: i32) -> (i32, i32) {
    %c0_i32 = arith.constant 0 : i32
    %c0_i32_0 = arith.constant 0 : i32
    return %c0_i32, %arg1 : i32, i32
  }
  func.func @transform_2(%arg0: i32, %arg1: i32) -> (i32, i32) {
    %c0_i32 = arith.constant 0 : i32
    return %arg0, %arg1 : i32, i32
  }
}

module attributes {stable_mosaic.version = 11 : i64} {
  func.func @_matmul_kernel(%arg0: i32, %arg1: i32, %arg2: i32, %arg3: memref<1x64x1152xbf16, #tpu.memory_space<vmem>>, %arg4: memref<1x1152x128xbf16, #tpu.memory_space<vmem>>, %arg5: memref<1x128xf32, #tpu.memory_space<vmem>>, %arg6: memref<1x64x128xbf16, #tpu.memory_space<vmem>>) attributes {dimension_semantics = [#tpu.dimension_semantics<parallel>, #tpu.dimension_semantics<parallel>, #tpu.dimension_semantics<parallel>], iteration_bounds = array<i64: 1, 1, 1>, scalar_prefetch = 0 : i64, scratch_operands = 0 : i64, tpu.core_type = #tpu.core_type<tc>, window_params = [{transform_indices = @transform_0, window_bounds = array<i64: 1, 64, 1152>}, {transform_indices = @transform_1, window_bounds = array<i64: 1, 1152, 128>}, {transform_indices = @transform_2, window_bounds = array<i64: 1, 128>}, {transform_indices = @transform_3, window_bounds = array<i64: 1, 64, 128>}]} {
    %c0 = arith.constant 0 : index
    %c0_0 = arith.constant 0 : index
    %c0_1 = arith.constant 0 : index
    %0 = vector.load %arg3[%c0, %c0_0, %c0_1] : memref<1x64x1152xbf16, #tpu.memory_space<vmem>>, vector<1x64x1152xbf16>
    %1 = vector.shape_cast %0 : vector<1x64x1152xbf16> to vector<64x1152xbf16>
    %c0_2 = arith.constant 0 : index
    %c0_3 = arith.constant 0 : index
    %c0_4 = arith.constant 0 : index
    %2 = vector.load %arg4[%c0_2, %c0_3, %c0_4] : memref<1x1152x128xbf16, #tpu.memory_space<vmem>>, vector<1x1152x128xbf16>
    %3 = vector.shape_cast %2 : vector<1x1152x128xbf16> to vector<1152x128xbf16>
    %cst = arith.constant dense<0.000000e+00> : vector<64x128xf32>
    %4 = tpu.matmul %1, %3, %cst {dimension_numbers = #tpu.dot_dimension_numbers<[1], [0], [0], [1], [0, 0, 1, 1], [], []>} : vector<64x1152xbf16>, vector<1152x128xbf16>, vector<64x128xf32> -> vector<64x128xf32>
    %c0_5 = arith.constant 0 : index
    %c0_6 = arith.constant 0 : index
    %5 = vector.load %arg5[%c0_5, %c0_6] : memref<1x128xf32, #tpu.memory_space<vmem>>, vector<1x128xf32>
    %6 = vector.broadcast %5 : vector<1x128xf32> to vector<64x128xf32>
    %7 = arith.addf %4, %6 : vector<64x128xf32>
    %cst_7 = arith.constant 0.000000e+00 : f32
    %8 = vector.broadcast %cst_7 : f32 to vector<64x128xf32>
    %9 = arith.maximumf %7, %8 : vector<64x128xf32>
    %10 = arith.truncf %9 : vector<64x128xf32> to vector<64x128xbf16>
    %c0_8 = arith.constant 0 : index
    %c0_9 = arith.constant 0 : index
    %c0_10 = arith.constant 0 : index
    %11 = vector.load %arg6[%c0_8, %c0_9, %c0_10] : memref<1x64x128xbf16, #tpu.memory_space<vmem>>, vector<1x64x128xbf16>
    %12 = vector.shape_cast %11 : vector<1x64x128xbf16> to vector<64x128xbf16>
    %13 = vector.shape_cast %10 : vector<64x128xbf16> to vector<1x64x128xbf16>
    tpu.vector_store %arg6[%c0_8, %c0_9, %c0_10], %13 {strides = array<i32>} : memref<1x64x128xbf16, #tpu.memory_space<vmem>>, vector<1x64x128xbf16>,
    return
  }
  func.func @transform_0(%arg0: i32, %arg1: i32, %arg2: i32) -> (i32, i32, i32) {
    %c0_i32 = arith.constant 0 : i32
    %c0_i32_0 = arith.constant 0 : i32
    return %arg0, %arg2, %c0_i32 : i32, i32, i32
  }
  func.func @transform_1(%arg0: i32, %arg1: i32, %arg2: i32) -> (i32, i32, i32) {
    %c0_i32 = arith.constant 0 : i32
    %c0_i32_0 = arith.constant 0 : i32
    return %arg0, %c0_i32, %arg1 : i32, i32, i32
  }
  func.func @transform_2(%arg0: i32, %arg1: i32, %arg2: i32) -> (i32, i32) {
    %c0_i32 = arith.constant 0 : i32
    %c0_i32_0 = arith.constant 0 : i32
    return %c0_i32, %arg1 : i32, i32
  }
  func.func @transform_3(%arg0: i32, %arg1: i32, %arg2: i32) -> (i32, i32, i32) {
    %c0_i32 = arith.constant 0 : i32
    return %arg0, %arg2, %arg1 : i32, i32, i32
  }
}

module attributes {stable_mosaic.version = 11 : i64} {
  func.func @_matmul_kernel(%arg0: i32, %arg1: i32, %arg2: i32, %arg3: memref<1x16x1152xbf16, #tpu.memory_space<vmem>>, %arg4: memref<1x1152x128xbf16, #tpu.memory_space<vmem>>, %arg5: memref<1x128xf32, #tpu.memory_space<vmem>>, %arg6: memref<1x16x128xbf16, #tpu.memory_space<vmem>>) attributes {dimension_semantics = [#tpu.dimension_semantics<parallel>, #tpu.dimension_semantics<parallel>, #tpu.dimension_semantics<parallel>], iteration_bounds = array<i64: 1, 1, 1>, scalar_prefetch = 0 : i64, scratch_operands = 0 : i64, tpu.core_type = #tpu.core_type<tc>, window_params = [{transform_indices = @transform_0, window_bounds = array<i64: 1, 16, 1152>}, {transform_indices = @transform_1, window_bounds = array<i64: 1, 1152, 128>}, {transform_indices = @transform_2, window_bounds = array<i64: 1, 128>}, {transform_indices = @transform_3, window_bounds = array<i64: 1, 16, 128>}]} {
    %c0 = arith.constant 0 : index
    %c0_0 = arith.constant 0 : index
    %c0_1 = arith.constant 0 : index
    %0 = vector.load %arg3[%c0, %c0_0, %c0_1] : memref<1x16x1152xbf16, #tpu.memory_space<vmem>>, vector<1x16x1152xbf16>
    %1 = vector.shape_cast %0 : vector<1x16x1152xbf16> to vector<16x1152xbf16>
    %c0_2 = arith.constant 0 : index
    %c0_3 = arith.constant 0 : index
    %c0_4 = arith.constant 0 : index
    %2 = vector.load %arg4[%c0_2, %c0_3, %c0_4] : memref<1x1152x128xbf16, #tpu.memory_space<vmem>>, vector<1x1152x128xbf16>
    %3 = vector.shape_cast %2 : vector<1x1152x128xbf16> to vector<1152x128xbf16>
    %cst = arith.constant dense<0.000000e+00> : vector<16x128xf32>
    %4 = tpu.matmul %1, %3, %cst {dimension_numbers = #tpu.dot_dimension_numbers<[1], [0], [0], [1], [0, 0, 1, 1], [], []>} : vector<16x1152xbf16>, vector<1152x128xbf16>, vector<16x128xf32> -> vector<16x128xf32>
    %c0_5 = arith.constant 0 : index
    %c0_6 = arith.constant 0 : index
    %5 = vector.load %arg5[%c0_5, %c0_6] : memref<1x128xf32, #tpu.memory_space<vmem>>, vector<1x128xf32>
    %6 = vector.broadcast %5 : vector<1x128xf32> to vector<16x128xf32>
    %7 = arith.addf %4, %6 : vector<16x128xf32>
    %cst_7 = arith.constant 0.000000e+00 : f32
    %8 = vector.broadcast %cst_7 : f32 to vector<16x128xf32>
    %9 = arith.maximumf %7, %8 : vector<16x128xf32>
    %10 = arith.truncf %9 : vector<16x128xf32> to vector<16x128xbf16>
    %c0_8 = arith.constant 0 : index
    %c0_9 = arith.constant 0 : index
    %c0_10 = arith.constant 0 : index
    %11 = vector.load %arg6[%c0_8, %c0_9, %c0_10] : memref<1x16x128xbf16, #tpu.memory_space<vmem>>, vector<1x16x128xbf16>
    %12 = vector.shape_cast %11 : vector<1x16x128xbf16> to vector<16x128xbf16>
    %13 = vector.shape_cast %10 : vector<16x128xbf16> to vector<1x16x128xbf16>
    tpu.vector_store %arg6[%c0_8, %c0_9, %c0_10], %13 {strides = array<i32>} : memref<1x16x128xbf16, #tpu.memory_space<vmem>>, vector<1x16x128xbf16>,
    return
  }
  func.func @transform_0(%arg0: i32, %arg1: i32, %arg2: i32) -> (i32, i32, i32) {
    %c0_i32 = arith.constant 0 : i32
    %c0_i32_0 = arith.constant 0 : i32
    return %arg0, %arg2, %c0_i32 : i32, i32, i32
  }
  func.func @transform_1(%arg0: i32, %arg1: i32, %arg2: i32) -> (i32, i32, i32) {
    %c0_i32 = arith.constant 0 : i32
    %c0_i32_0 = arith.constant 0 : i32
    return %arg0, %c0_i32, %arg1 : i32, i32, i32
  }
  func.func @transform_2(%arg0: i32, %arg1: i32, %arg2: i32) -> (i32, i32) {
    %c0_i32 = arith.constant 0 : i32
    %c0_i32_0 = arith.constant 0 : i32
    return %c0_i32, %arg1 : i32, i32
  }
  func.func @transform_3(%arg0: i32, %arg1: i32, %arg2: i32) -> (i32, i32, i32) {
    %c0_i32 = arith.constant 0 : i32
    return %arg0, %arg2, %arg1 : i32, i32, i32
  }
}

module attributes {stable_mosaic.version = 11 : i64} {
  func.func @_matmul_kernel(%arg0: i32, %arg1: i32, %arg2: i32, %arg3: memref<1x16x144xbf16, #tpu.memory_space<vmem>>, %arg4: memref<1x144x128xbf16, #tpu.memory_space<vmem>>, %arg5: memref<1x128xf32, #tpu.memory_space<vmem>>, %arg6: memref<1x16x128xbf16, #tpu.memory_space<vmem>>) attributes {dimension_semantics = [#tpu.dimension_semantics<parallel>, #tpu.dimension_semantics<parallel>, #tpu.dimension_semantics<parallel>], iteration_bounds = array<i64: 1, 1, 1>, scalar_prefetch = 0 : i64, scratch_operands = 0 : i64, tpu.core_type = #tpu.core_type<tc>, window_params = [{transform_indices = @transform_0, window_bounds = array<i64: 1, 16, 144>}, {transform_indices = @transform_1, window_bounds = array<i64: 1, 144, 128>}, {transform_indices = @transform_2, window_bounds = array<i64: 1, 128>}, {transform_indices = @transform_3, window_bounds = array<i64: 1, 16, 128>}]} {
    %c0 = arith.constant 0 : index
    %c0_0 = arith.constant 0 : index
    %c0_1 = arith.constant 0 : index
    %0 = vector.load %arg3[%c0, %c0_0, %c0_1] : memref<1x16x144xbf16, #tpu.memory_space<vmem>>, vector<1x16x144xbf16>
    %1 = vector.shape_cast %0 : vector<1x16x144xbf16> to vector<16x144xbf16>
    %c0_2 = arith.constant 0 : index
    %c0_3 = arith.constant 0 : index
    %c0_4 = arith.constant 0 : index
    %2 = vector.load %arg4[%c0_2, %c0_3, %c0_4] : memref<1x144x128xbf16, #tpu.memory_space<vmem>>, vector<1x144x128xbf16>
    %3 = vector.shape_cast %2 : vector<1x144x128xbf16> to vector<144x128xbf16>
    %cst = arith.constant dense<0.000000e+00> : vector<16x128xf32>
    %4 = tpu.matmul %1, %3, %cst {dimension_numbers = #tpu.dot_dimension_numbers<[1], [0], [0], [1], [0, 0, 1, 1], [], []>} : vector<16x144xbf16>, vector<144x128xbf16>, vector<16x128xf32> -> vector<16x128xf32>
    %c0_5 = arith.constant 0 : index
    %c0_6 = arith.constant 0 : index
    %5 = vector.load %arg5[%c0_5, %c0_6] : memref<1x128xf32, #tpu.memory_space<vmem>>, vector<1x128xf32>
    %6 = vector.broadcast %5 : vector<1x128xf32> to vector<16x128xf32>
    %7 = arith.addf %4, %6 : vector<16x128xf32>
    %cst_7 = arith.constant 0.000000e+00 : f32
    %8 = vector.broadcast %cst_7 : f32 to vector<16x128xf32>
    %9 = arith.maximumf %7, %8 : vector<16x128xf32>
    %10 = arith.truncf %9 : vector<16x128xf32> to vector<16x128xbf16>
    %c0_8 = arith.constant 0 : index
    %c0_9 = arith.constant 0 : index
    %c0_10 = arith.constant 0 : index
    %11 = vector.load %arg6[%c0_8, %c0_9, %c0_10] : memref<1x16x128xbf16, #tpu.memory_space<vmem>>, vector<1x16x128xbf16>
    %12 = vector.shape_cast %11 : vector<1x16x128xbf16> to vector<16x128xbf16>
    %13 = vector.shape_cast %10 : vector<16x128xbf16> to vector<1x16x128xbf16>
    tpu.vector_store %arg6[%c0_8, %c0_9, %c0_10], %13 {strides = array<i32>} : memref<1x16x128xbf16, #tpu.memory_space<vmem>>, vector<1x16x128xbf16>,
    return
  }
  func.func @transform_0(%arg0: i32, %arg1: i32, %arg2: i32) -> (i32, i32, i32) {
    %c0_i32 = arith.constant 0 : i32
    %c0_i32_0 = arith.constant 0 : i32
    return %arg0, %arg2, %c0_i32 : i32, i32, i32
  }
  func.func @transform_1(%arg0: i32, %arg1: i32, %arg2: i32) -> (i32, i32, i32) {
    %c0_i32 = arith.constant 0 : i32
    %c0_i32_0 = arith.constant 0 : i32
    return %arg0, %c0_i32, %arg1 : i32, i32, i32
  }
  func.func @transform_2(%arg0: i32, %arg1: i32, %arg2: i32) -> (i32, i32) {
    %c0_i32 = arith.constant 0 : i32
    %c0_i32_0 = arith.constant 0 : i32
    return %c0_i32, %arg1 : i32, i32
  }
  func.func @transform_3(%arg0: i32, %arg1: i32, %arg2: i32) -> (i32, i32, i32) {
    %c0_i32 = arith.constant 0 : i32
    return %arg0, %arg2, %arg1 : i32, i32, i32
  }
}

module attributes {stable_mosaic.version = 11 : i64} {
  func.func @_fuse_kernel(%arg0: i32, %arg1: i32, %arg2: memref<64x2xf32, #tpu.memory_space<vmem>>, %arg3: memref<2x64x128xbf16, #tpu.memory_space<vmem>>, %arg4: memref<64x128xbf16, #tpu.memory_space<vmem>>) attributes {dimension_semantics = [#tpu.dimension_semantics<parallel>, #tpu.dimension_semantics<parallel>], iteration_bounds = array<i64: 1, 1>, scalar_prefetch = 0 : i64, scratch_operands = 0 : i64, tpu.core_type = #tpu.core_type<tc>, window_params = [{transform_indices = @transform_0, window_bounds = array<i64: 64, 2>}, {transform_indices = @transform_1, window_bounds = array<i64: 2, 64, 128>}, {transform_indices = @transform_2, window_bounds = array<i64: 64, 128>}]} {
    %c0 = arith.constant 0 : index
    %c0_0 = arith.constant 0 : index
    %0 = vector.load %arg2[%c0, %c0_0] : memref<64x2xf32, #tpu.memory_space<vmem>>, vector<64x2xf32>
    %cst = arith.constant dense<0xFF800000> : vector<64xf32>
    %1 = vector.multi_reduction <maximumf>, %0, %cst [1] : vector<64x2xf32> to vector<64xf32>
    %2 = vector.shape_cast %1 : vector<64xf32> to vector<64x1xf32>
    %3 = vector.broadcast %2 : vector<64x1xf32> to vector<64x2xf32>
    %4 = arith.subf %0, %3 : vector<64x2xf32>
    %5 = math.exp %4 : vector<64x2xf32>
    %cst_1 = arith.constant dense<0.000000e+00> : vector<64xf32>
    %6 = vector.multi_reduction <add>, %5, %cst_1 [1] : vector<64x2xf32> to vector<64xf32>
    %7 = vector.shape_cast %6 : vector<64xf32> to vector<64x1xf32>
    %8 = tpu.reciprocal %7 {approx = true} : vector<64x1xf32> -> vector<64x1xf32>
    %9 = vector.broadcast %8 : vector<64x1xf32> to vector<64x2xf32>
    %10 = arith.mulf %5, %9 : vector<64x2xf32>
    %cst_2 = arith.constant 0.000000e+00 : f32
    %11 = vector.broadcast %cst_2 : f32 to vector<64x128xf32>
    %12 = vector.extract_strided_slice %10 {offsets = [0, 0], sizes = [64, 1], strides = [1, 1]} : vector<64x2xf32> to vector<64x1xf32>
    %c0_3 = arith.constant 0 : index
    %c0_4 = arith.constant 0 : index
    %c0_5 = arith.constant 0 : index
    %13 = vector.load %arg3[%c0_3, %c0_4, %c0_5] : memref<2x64x128xbf16, #tpu.memory_space<vmem>>, vector<1x64x128xbf16>
    %14 = vector.shape_cast %13 : vector<1x64x128xbf16> to vector<64x128xbf16>
    %15 = arith.extf %14 : vector<64x128xbf16> to vector<64x128xf32>
    %16 = vector.broadcast %12 : vector<64x1xf32> to vector<64x128xf32>
    %17 = arith.mulf %16, %15 : vector<64x128xf32>
    %18 = arith.addf %11, %17 : vector<64x128xf32>
    %19 = vector.extract_strided_slice %10 {offsets = [0, 1], sizes = [64, 1], strides = [1, 1]} : vector<64x2xf32> to vector<64x1xf32>
    %c1 = arith.constant 1 : index
    %c0_6 = arith.constant 0 : index
    %c0_7 = arith.constant 0 : index
    %20 = vector.load %arg3[%c1, %c0_6, %c0_7] : memref<2x64x128xbf16, #tpu.memory_space<vmem>>, vector<1x64x128xbf16>
    %21 = vector.shape_cast %20 : vector<1x64x128xbf16> to vector<64x128xbf16>
    %22 = arith.extf %21 : vector<64x128xbf16> to vector<64x128xf32>
    %23 = vector.broadcast %19 : vector<64x1xf32> to vector<64x128xf32>
    %24 = arith.mulf %23, %22 : vector<64x128xf32>
    %25 = arith.addf %18, %24 : vector<64x128xf32>
    %26 = arith.truncf %25 : vector<64x128xf32> to vector<64x128xbf16>
    %c0_8 = arith.constant 0 : index
    %c0_9 = arith.constant 0 : index
    %27 = vector.load %arg4[%c0_8, %c0_9] : memref<64x128xbf16, #tpu.memory_space<vmem>>, vector<64x128xbf16>
    tpu.vector_store %arg4[%c0_8, %c0_9], %26 {strides = array<i32>} : memref<64x128xbf16, #tpu.memory_space<vmem>>, vector<64x128xbf16>,
    return
  }
  func.func @transform_0(%arg0: i32, %arg1: i32) -> (i32, i32) {
    %c0_i32 = arith.constant 0 : i32
    %c0_i32_0 = arith.constant 0 : i32
    return %arg0, %c0_i32 : i32, i32
  }
  func.func @transform_1(%arg0: i32, %arg1: i32) -> (i32, i32, i32) {
    %c0_i32 = arith.constant 0 : i32
    %c0_i32_0 = arith.constant 0 : i32
    return %c0_i32, %arg0, %arg1 : i32, i32, i32
  }
  func.func @transform_2(%arg0: i32, %arg1: i32) -> (i32, i32) {
    %c0_i32 = arith.constant 0 : i32
    return %arg0, %arg1 : i32, i32
  }
}

module attributes {stable_mosaic.version = 11 : i64} {
  func.func @_matmul_kernel(%arg0: i32, %arg1: i32, %arg2: i32, %arg3: memref<1x16x1152xbf16, #tpu.memory_space<vmem>>, %arg4: memref<1x1152x256xbf16, #tpu.memory_space<vmem>>, %arg5: memref<1x256xf32, #tpu.memory_space<vmem>>, %arg6: memref<1x16x256xbf16, #tpu.memory_space<vmem>>) attributes {dimension_semantics = [#tpu.dimension_semantics<parallel>, #tpu.dimension_semantics<parallel>, #tpu.dimension_semantics<parallel>], iteration_bounds = array<i64: 1, 1, 1>, scalar_prefetch = 0 : i64, scratch_operands = 0 : i64, tpu.core_type = #tpu.core_type<tc>, window_params = [{transform_indices = @transform_0, window_bounds = array<i64: 1, 16, 1152>}, {transform_indices = @transform_1, window_bounds = array<i64: 1, 1152, 256>}, {transform_indices = @transform_2, window_bounds = array<i64: 1, 256>}, {transform_indices = @transform_3, window_bounds = array<i64: 1, 16, 256>}]} {
    %c0 = arith.constant 0 : index
    %c0_0 = arith.constant 0 : index
    %c0_1 = arith.constant 0 : index
    %0 = vector.load %arg3[%c0, %c0_0, %c0_1] : memref<1x16x1152xbf16, #tpu.memory_space<vmem>>, vector<1x16x1152xbf16>
    %1 = vector.shape_cast %0 : vector<1x16x1152xbf16> to vector<16x1152xbf16>
    %c0_2 = arith.constant 0 : index
    %c0_3 = arith.constant 0 : index
    %c0_4 = arith.constant 0 : index
    %2 = vector.load %arg4[%c0_2, %c0_3, %c0_4] : memref<1x1152x256xbf16, #tpu.memory_space<vmem>>, vector<1x1152x256xbf16>
    %3 = vector.shape_cast %2 : vector<1x1152x256xbf16> to vector<1152x256xbf16>
    %cst = arith.constant dense<0.000000e+00> : vector<16x256xf32>
    %4 = tpu.matmul %1, %3, %cst {dimension_numbers = #tpu.dot_dimension_numbers<[1], [0], [0], [1], [0, 0, 1, 1], [], []>} : vector<16x1152xbf16>, vector<1152x256xbf16>, vector<16x256xf32> -> vector<16x256xf32>
    %c0_5 = arith.constant 0 : index
    %c0_6 = arith.constant 0 : index
    %5 = vector.load %arg5[%c0_5, %c0_6] : memref<1x256xf32, #tpu.memory_space<vmem>>, vector<1x256xf32>
    %6 = vector.broadcast %5 : vector<1x256xf32> to vector<16x256xf32>
    %7 = arith.addf %4, %6 : vector<16x256xf32>
    %cst_7 = arith.constant 0.000000e+00 : f32
    %8 = vector.broadcast %cst_7 : f32 to vector<16x256xf32>
    %9 = arith.maximumf %7, %8 : vector<16x256xf32>
    %10 = arith.truncf %9 : vector<16x256xf32> to vector<16x256xbf16>
    %c0_8 = arith.constant 0 : index
    %c0_9 = arith.constant 0 : index
    %c0_10 = arith.constant 0 : index
    %11 = vector.load %arg6[%c0_8, %c0_9, %c0_10] : memref<1x16x256xbf16, #tpu.memory_space<vmem>>, vector<1x16x256xbf16>
    %12 = vector.shape_cast %11 : vector<1x16x256xbf16> to vector<16x256xbf16>
    %13 = vector.shape_cast %10 : vector<16x256xbf16> to vector<1x16x256xbf16>
    tpu.vector_store %arg6[%c0_8, %c0_9, %c0_10], %13 {strides = array<i32>} : memref<1x16x256xbf16, #tpu.memory_space<vmem>>, vector<1x16x256xbf16>,
    return
  }
  func.func @transform_0(%arg0: i32, %arg1: i32, %arg2: i32) -> (i32, i32, i32) {
    %c0_i32 = arith.constant 0 : i32
    %c0_i32_0 = arith.constant 0 : i32
    return %arg0, %arg2, %c0_i32 : i32, i32, i32
  }
  func.func @transform_1(%arg0: i32, %arg1: i32, %arg2: i32) -> (i32, i32, i32) {
    %c0_i32 = arith.constant 0 : i32
    %c0_i32_0 = arith.constant 0 : i32
    return %arg0, %c0_i32, %arg1 : i32, i32, i32
  }
  func.func @transform_2(%arg0: i32, %arg1: i32, %arg2: i32) -> (i32, i32) {
    %c0_i32 = arith.constant 0 : i32
    %c0_i32_0 = arith.constant 0 : i32
    return %c0_i32, %arg1 : i32, i32
  }
  func.func @transform_3(%arg0: i32, %arg1: i32, %arg2: i32) -> (i32, i32, i32) {
    %c0_i32 = arith.constant 0 : i32
    return %arg0, %arg2, %arg1 : i32, i32, i32
  }
}

module attributes {stable_mosaic.version = 11 : i64} {
  func.func @_matmul_kernel(%arg0: i32, %arg1: i32, %arg2: i32, %arg3: memref<1x16x2304xbf16, #tpu.memory_space<vmem>>, %arg4: memref<1x2304x256xbf16, #tpu.memory_space<vmem>>, %arg5: memref<1x256xf32, #tpu.memory_space<vmem>>, %arg6: memref<1x16x256xbf16, #tpu.memory_space<vmem>>) attributes {dimension_semantics = [#tpu.dimension_semantics<parallel>, #tpu.dimension_semantics<parallel>, #tpu.dimension_semantics<parallel>], iteration_bounds = array<i64: 1, 1, 1>, scalar_prefetch = 0 : i64, scratch_operands = 0 : i64, tpu.core_type = #tpu.core_type<tc>, window_params = [{transform_indices = @transform_0, window_bounds = array<i64: 1, 16, 2304>}, {transform_indices = @transform_1, window_bounds = array<i64: 1, 2304, 256>}, {transform_indices = @transform_2, window_bounds = array<i64: 1, 256>}, {transform_indices = @transform_3, window_bounds = array<i64: 1, 16, 256>}]} {
    %c0 = arith.constant 0 : index
    %c0_0 = arith.constant 0 : index
    %c0_1 = arith.constant 0 : index
    %0 = vector.load %arg3[%c0, %c0_0, %c0_1] : memref<1x16x2304xbf16, #tpu.memory_space<vmem>>, vector<1x16x2304xbf16>
    %1 = vector.shape_cast %0 : vector<1x16x2304xbf16> to vector<16x2304xbf16>
    %c0_2 = arith.constant 0 : index
    %c0_3 = arith.constant 0 : index
    %c0_4 = arith.constant 0 : index
    %2 = vector.load %arg4[%c0_2, %c0_3, %c0_4] : memref<1x2304x256xbf16, #tpu.memory_space<vmem>>, vector<1x2304x256xbf16>
    %3 = vector.shape_cast %2 : vector<1x2304x256xbf16> to vector<2304x256xbf16>
    %cst = arith.constant dense<0.000000e+00> : vector<16x256xf32>
    %4 = tpu.matmul %1, %3, %cst {dimension_numbers = #tpu.dot_dimension_numbers<[1], [0], [0], [1], [0, 0, 1, 1], [], []>} : vector<16x2304xbf16>, vector<2304x256xbf16>, vector<16x256xf32> -> vector<16x256xf32>
    %c0_5 = arith.constant 0 : index
    %c0_6 = arith.constant 0 : index
    %5 = vector.load %arg5[%c0_5, %c0_6] : memref<1x256xf32, #tpu.memory_space<vmem>>, vector<1x256xf32>
    %6 = vector.broadcast %5 : vector<1x256xf32> to vector<16x256xf32>
    %7 = arith.addf %4, %6 : vector<16x256xf32>
    %cst_7 = arith.constant 0.000000e+00 : f32
    %8 = vector.broadcast %cst_7 : f32 to vector<16x256xf32>
    %9 = arith.maximumf %7, %8 : vector<16x256xf32>
    %10 = arith.truncf %9 : vector<16x256xf32> to vector<16x256xbf16>
    %c0_8 = arith.constant 0 : index
    %c0_9 = arith.constant 0 : index
    %c0_10 = arith.constant 0 : index
    %11 = vector.load %arg6[%c0_8, %c0_9, %c0_10] : memref<1x16x256xbf16, #tpu.memory_space<vmem>>, vector<1x16x256xbf16>
    %12 = vector.shape_cast %11 : vector<1x16x256xbf16> to vector<16x256xbf16>
    %13 = vector.shape_cast %10 : vector<16x256xbf16> to vector<1x16x256xbf16>
    tpu.vector_store %arg6[%c0_8, %c0_9, %c0_10], %13 {strides = array<i32>} : memref<1x16x256xbf16, #tpu.memory_space<vmem>>, vector<1x16x256xbf16>,
    return
  }
  func.func @transform_0(%arg0: i32, %arg1: i32, %arg2: i32) -> (i32, i32, i32) {
    %c0_i32 = arith.constant 0 : i32
    %c0_i32_0 = arith.constant 0 : i32
    return %arg0, %arg2, %c0_i32 : i32, i32, i32
  }
  func.func @transform_1(%arg0: i32, %arg1: i32, %arg2: i32) -> (i32, i32, i32) {
    %c0_i32 = arith.constant 0 : i32
    %c0_i32_0 = arith.constant 0 : i32
    return %arg0, %c0_i32, %arg1 : i32, i32, i32
  }
  func.func @transform_2(%arg0: i32, %arg1: i32, %arg2: i32) -> (i32, i32) {
    %c0_i32 = arith.constant 0 : i32
    %c0_i32_0 = arith.constant 0 : i32
    return %c0_i32, %arg1 : i32, i32
  }
  func.func @transform_3(%arg0: i32, %arg1: i32, %arg2: i32) -> (i32, i32, i32) {
    %c0_i32 = arith.constant 0 : i32
    return %arg0, %arg2, %arg1 : i32, i32, i32
  }
}

module attributes {stable_mosaic.version = 11 : i64} {
  func.func @_bn_norm_kernel(%arg0: i32, %arg1: i32, %arg2: memref<16x256xbf16, #tpu.memory_space<vmem>>, %arg3: memref<2x256xf32, #tpu.memory_space<vmem>>, %arg4: memref<16x256xbf16, #tpu.memory_space<vmem>>) attributes {dimension_semantics = [#tpu.dimension_semantics<parallel>, #tpu.dimension_semantics<parallel>], iteration_bounds = array<i64: 1, 1>, scalar_prefetch = 0 : i64, scratch_operands = 0 : i64, tpu.core_type = #tpu.core_type<tc>, window_params = [{transform_indices = @transform_0, window_bounds = array<i64: 16, 256>}, {transform_indices = @transform_1, window_bounds = array<i64: 2, 256>}, {transform_indices = @transform_2, window_bounds = array<i64: 16, 256>}]} {
    %c0 = arith.constant 0 : index
    %c0_0 = arith.constant 0 : index
    %0 = vector.load %arg2[%c0, %c0_0] : memref<16x256xbf16, #tpu.memory_space<vmem>>, vector<16x256xbf16>
    %1 = arith.extf %0 : vector<16x256xbf16> to vector<16x256xf32>
    %c0_1 = arith.constant 0 : index
    %c0_2 = arith.constant 0 : index
    %2 = vector.load %arg3[%c0_1, %c0_2] : memref<2x256xf32, #tpu.memory_space<vmem>>, vector<2x256xf32>
    %3 = vector.extract_strided_slice %2 {offsets = [0, 0], sizes = [1, 256], strides = [1, 1]} : vector<2x256xf32> to vector<1x256xf32>
    %cst = arith.constant 6.250000e-02 : f32
    %4 = vector.broadcast %cst : f32 to vector<1x256xf32>
    %5 = arith.mulf %3, %4 : vector<1x256xf32>
    %6 = vector.extract_strided_slice %2 {offsets = [1, 0], sizes = [1, 256], strides = [1, 1]} : vector<2x256xf32> to vector<1x256xf32>
    %cst_3 = arith.constant 6.250000e-02 : f32
    %7 = vector.broadcast %cst_3 : f32 to vector<1x256xf32>
    %8 = arith.mulf %6, %7 : vector<1x256xf32>
    %9 = arith.mulf %5, %5 : vector<1x256xf32>
    %10 = arith.subf %8, %9 : vector<1x256xf32>
    %11 = vector.broadcast %5 : vector<1x256xf32> to vector<16x256xf32>
    %12 = arith.subf %1, %11 : vector<16x256xf32>
    %cst_4 = arith.constant 9.99999974E-6 : f32
    %13 = vector.broadcast %cst_4 : f32 to vector<1x256xf32>
    %14 = arith.addf %10, %13 : vector<1x256xf32>
    %15 = math.rsqrt %14 : vector<1x256xf32>
    %16 = vector.broadcast %15 : vector<1x256xf32> to vector<16x256xf32>
    %17 = arith.mulf %12, %16 : vector<16x256xf32>
    %18 = arith.truncf %17 : vector<16x256xf32> to vector<16x256xbf16>
    %c0_5 = arith.constant 0 : index
    %c0_6 = arith.constant 0 : index
    %19 = vector.load %arg4[%c0_5, %c0_6] : memref<16x256xbf16, #tpu.memory_space<vmem>>, vector<16x256xbf16>
    tpu.vector_store %arg4[%c0_5, %c0_6], %18 {strides = array<i32>} : memref<16x256xbf16, #tpu.memory_space<vmem>>, vector<16x256xbf16>,
    return
  }
  func.func @transform_0(%arg0: i32, %arg1: i32) -> (i32, i32) {
    %c0_i32 = arith.constant 0 : i32
    return %arg0, %arg1 : i32, i32
  }
  func.func @transform_1(%arg0: i32, %arg1: i32) -> (i32, i32) {
    %c0_i32 = arith.constant 0 : i32
    %c0_i32_0 = arith.constant 0 : i32
    return %c0_i32, %arg1 : i32, i32
  }
  func.func @transform_2(%arg0: i32, %arg1: i32) -> (i32, i32) {
    %c0_i32 = arith.constant 0 : i32
    return %arg0, %arg1 : i32, i32
  }
}

module attributes {stable_mosaic.version = 11 : i64} {
  func.func @_bn_stats_kernel(%arg0: i32, %arg1: i32, %arg2: memref<16x256xbf16, #tpu.memory_space<vmem>>, %arg3: memref<2x256xf32, #tpu.memory_space<vmem>>) attributes {dimension_semantics = [#tpu.dimension_semantics<parallel>, #tpu.dimension_semantics<arbitrary>], iteration_bounds = array<i64: 1, 1>, scalar_prefetch = 0 : i64, scratch_operands = 0 : i64, tpu.core_type = #tpu.core_type<tc>, window_params = [{transform_indices = @transform_0, window_bounds = array<i64: 16, 256>}, {transform_indices = @transform_1, window_bounds = array<i64: 2, 256>}]} {
    %c0_i32 = arith.constant 0 : i32
    %0 = arith.cmpi eq, %arg1, %c0_i32 : i32
    %1 = arith.extui %0 : i1 to i32
    %c0_i32_0 = arith.constant 0 : i32
    %2 = arith.cmpi ne, %1, %c0_i32_0 : i32
    scf.if %2 {
      %cst_7 = arith.constant 0.000000e+00 : f32
      %14 = vector.broadcast %cst_7 : f32 to vector<2x256xf32>
      %c0_8 = arith.constant 0 : index
      %c0_9 = arith.constant 0 : index
      %15 = vector.load %arg3[%c0_8, %c0_9] : memref<2x256xf32, #tpu.memory_space<vmem>>, vector<2x256xf32>
      tpu.vector_store %arg3[%c0_8, %c0_9], %14 {strides = array<i32>} : memref<2x256xf32, #tpu.memory_space<vmem>>, vector<2x256xf32>,
    } else {
    }
    %c0 = arith.constant 0 : index
    %c0_1 = arith.constant 0 : index
    %3 = vector.load %arg2[%c0, %c0_1] : memref<16x256xbf16, #tpu.memory_space<vmem>>, vector<16x256xbf16>
    %4 = arith.extf %3 : vector<16x256xbf16> to vector<16x256xf32>
    %cst = arith.constant dense<0.000000e+00> : vector<256xf32>
    %5 = vector.multi_reduction <add>, %4, %cst [0] : vector<16x256xf32> to vector<256xf32>
    %6 = vector.shape_cast %5 : vector<256xf32> to vector<1x256xf32>
    %7 = arith.mulf %4, %4 : vector<16x256xf32>
    %cst_2 = arith.constant dense<0.000000e+00> : vector<256xf32>
    %8 = vector.multi_reduction <add>, %7, %cst_2 [0] : vector<16x256xf32> to vector<256xf32>
    %9 = vector.shape_cast %8 : vector<256xf32> to vector<1x256xf32>
    %c0_3 = arith.constant 0 : index
    %c0_4 = arith.constant 0 : index
    %10 = vector.load %arg3[%c0_3, %c0_4] : memref<2x256xf32, #tpu.memory_space<vmem>>, vector<2x256xf32>
    %11 = tpu.concatenate %6, %9 in 0 : vector<1x256xf32>, vector<1x256xf32> -> vector<2x256xf32>
    %12 = arith.addf %10, %11 : vector<2x256xf32>
    %c0_5 = arith.constant 0 : index
    %c0_6 = arith.constant 0 : index
    %13 = vector.load %arg3[%c0_5, %c0_6] : memref<2x256xf32, #tpu.memory_space<vmem>>, vector<2x256xf32>
    tpu.vector_store %arg3[%c0_5, %c0_6], %12 {strides = array<i32>} : memref<2x256xf32, #tpu.memory_space<vmem>>, vector<2x256xf32>,
    return
  }
  func.func @transform_0(%arg0: i32, %arg1: i32) -> (i32, i32) {
    %c0_i32 = arith.constant 0 : i32
    return %arg1, %arg0 : i32, i32
  }
  func.func @transform_1(%arg0: i32, %arg1: i32) -> (i32, i32) {
    %c0_i32 = arith.constant 0 : i32
    %c0_i32_0 = arith.constant 0 : i32
    return %c0_i32, %arg0 : i32, i32
  }
}

module attributes {stable_mosaic.version = 11 : i64} {
  func.func @_matmul_kernel(%arg0: i32, %arg1: i32, %arg2: i32, %arg3: memref<1x16x2304xbf16, #tpu.memory_space<vmem>>, %arg4: memref<1x2304x128xbf16, #tpu.memory_space<vmem>>, %arg5: memref<1x128xf32, #tpu.memory_space<vmem>>, %arg6: memref<1x16x128xbf16, #tpu.memory_space<vmem>>) attributes {dimension_semantics = [#tpu.dimension_semantics<parallel>, #tpu.dimension_semantics<parallel>, #tpu.dimension_semantics<parallel>], iteration_bounds = array<i64: 1, 1, 1>, scalar_prefetch = 0 : i64, scratch_operands = 0 : i64, tpu.core_type = #tpu.core_type<tc>, window_params = [{transform_indices = @transform_0, window_bounds = array<i64: 1, 16, 2304>}, {transform_indices = @transform_1, window_bounds = array<i64: 1, 2304, 128>}, {transform_indices = @transform_2, window_bounds = array<i64: 1, 128>}, {transform_indices = @transform_3, window_bounds = array<i64: 1, 16, 128>}]} {
    %c0 = arith.constant 0 : index
    %c0_0 = arith.constant 0 : index
    %c0_1 = arith.constant 0 : index
    %0 = vector.load %arg3[%c0, %c0_0, %c0_1] : memref<1x16x2304xbf16, #tpu.memory_space<vmem>>, vector<1x16x2304xbf16>
    %1 = vector.shape_cast %0 : vector<1x16x2304xbf16> to vector<16x2304xbf16>
    %c0_2 = arith.constant 0 : index
    %c0_3 = arith.constant 0 : index
    %c0_4 = arith.constant 0 : index
    %2 = vector.load %arg4[%c0_2, %c0_3, %c0_4] : memref<1x2304x128xbf16, #tpu.memory_space<vmem>>, vector<1x2304x128xbf16>
    %3 = vector.shape_cast %2 : vector<1x2304x128xbf16> to vector<2304x128xbf16>
    %cst = arith.constant dense<0.000000e+00> : vector<16x128xf32>
    %4 = tpu.matmul %1, %3, %cst {dimension_numbers = #tpu.dot_dimension_numbers<[1], [0], [0], [1], [0, 0, 1, 1], [], []>} : vector<16x2304xbf16>, vector<2304x128xbf16>, vector<16x128xf32> -> vector<16x128xf32>
    %c0_5 = arith.constant 0 : index
    %c0_6 = arith.constant 0 : index
    %5 = vector.load %arg5[%c0_5, %c0_6] : memref<1x128xf32, #tpu.memory_space<vmem>>, vector<1x128xf32>
    %6 = vector.broadcast %5 : vector<1x128xf32> to vector<16x128xf32>
    %7 = arith.addf %4, %6 : vector<16x128xf32>
    %cst_7 = arith.constant 0.000000e+00 : f32
    %8 = vector.broadcast %cst_7 : f32 to vector<16x128xf32>
    %9 = arith.maximumf %7, %8 : vector<16x128xf32>
    %10 = arith.truncf %9 : vector<16x128xf32> to vector<16x128xbf16>
    %c0_8 = arith.constant 0 : index
    %c0_9 = arith.constant 0 : index
    %c0_10 = arith.constant 0 : index
    %11 = vector.load %arg6[%c0_8, %c0_9, %c0_10] : memref<1x16x128xbf16, #tpu.memory_space<vmem>>, vector<1x16x128xbf16>
    %12 = vector.shape_cast %11 : vector<1x16x128xbf16> to vector<16x128xbf16>
    %13 = vector.shape_cast %10 : vector<16x128xbf16> to vector<1x16x128xbf16>
    tpu.vector_store %arg6[%c0_8, %c0_9, %c0_10], %13 {strides = array<i32>} : memref<1x16x128xbf16, #tpu.memory_space<vmem>>, vector<1x16x128xbf16>,
    return
  }
  func.func @transform_0(%arg0: i32, %arg1: i32, %arg2: i32) -> (i32, i32, i32) {
    %c0_i32 = arith.constant 0 : i32
    %c0_i32_0 = arith.constant 0 : i32
    return %arg0, %arg2, %c0_i32 : i32, i32, i32
  }
  func.func @transform_1(%arg0: i32, %arg1: i32, %arg2: i32) -> (i32, i32, i32) {
    %c0_i32 = arith.constant 0 : i32
    %c0_i32_0 = arith.constant 0 : i32
    return %arg0, %c0_i32, %arg1 : i32, i32, i32
  }
  func.func @transform_2(%arg0: i32, %arg1: i32, %arg2: i32) -> (i32, i32) {
    %c0_i32 = arith.constant 0 : i32
    %c0_i32_0 = arith.constant 0 : i32
    return %c0_i32, %arg1 : i32, i32
  }
  func.func @transform_3(%arg0: i32, %arg1: i32, %arg2: i32) -> (i32, i32, i32) {
    %c0_i32 = arith.constant 0 : i32
    return %arg0, %arg2, %arg1 : i32, i32, i32
  }
}

module attributes {stable_mosaic.version = 11 : i64} {
  func.func @_matmul_kernel(%arg0: i32, %arg1: i32, %arg2: i32, %arg3: memref<1x8x2304xbf16, #tpu.memory_space<vmem>>, %arg4: memref<1x2304x128xbf16, #tpu.memory_space<vmem>>, %arg5: memref<1x128xf32, #tpu.memory_space<vmem>>, %arg6: memref<1x8x128xbf16, #tpu.memory_space<vmem>>) attributes {dimension_semantics = [#tpu.dimension_semantics<parallel>, #tpu.dimension_semantics<parallel>, #tpu.dimension_semantics<parallel>], iteration_bounds = array<i64: 1, 1, 1>, scalar_prefetch = 0 : i64, scratch_operands = 0 : i64, tpu.core_type = #tpu.core_type<tc>, window_params = [{transform_indices = @transform_0, window_bounds = array<i64: 1, 8, 2304>}, {transform_indices = @transform_1, window_bounds = array<i64: 1, 2304, 128>}, {transform_indices = @transform_2, window_bounds = array<i64: 1, 128>}, {transform_indices = @transform_3, window_bounds = array<i64: 1, 8, 128>}]} {
    %c0 = arith.constant 0 : index
    %c0_0 = arith.constant 0 : index
    %c0_1 = arith.constant 0 : index
    %0 = vector.load %arg3[%c0, %c0_0, %c0_1] : memref<1x8x2304xbf16, #tpu.memory_space<vmem>>, vector<1x8x2304xbf16>
    %1 = vector.shape_cast %0 : vector<1x8x2304xbf16> to vector<8x2304xbf16>
    %c0_2 = arith.constant 0 : index
    %c0_3 = arith.constant 0 : index
    %c0_4 = arith.constant 0 : index
    %2 = vector.load %arg4[%c0_2, %c0_3, %c0_4] : memref<1x2304x128xbf16, #tpu.memory_space<vmem>>, vector<1x2304x128xbf16>
    %3 = vector.shape_cast %2 : vector<1x2304x128xbf16> to vector<2304x128xbf16>
    %cst = arith.constant dense<0.000000e+00> : vector<8x128xf32>
    %4 = tpu.matmul %1, %3, %cst {dimension_numbers = #tpu.dot_dimension_numbers<[1], [0], [0], [1], [0, 0, 1, 1], [], []>} : vector<8x2304xbf16>, vector<2304x128xbf16>, vector<8x128xf32> -> vector<8x128xf32>
    %c0_5 = arith.constant 0 : index
    %c0_6 = arith.constant 0 : index
    %5 = vector.load %arg5[%c0_5, %c0_6] : memref<1x128xf32, #tpu.memory_space<vmem>>, vector<1x128xf32>
    %6 = vector.broadcast %5 : vector<1x128xf32> to vector<8x128xf32>
    %7 = arith.addf %4, %6 : vector<8x128xf32>
    %cst_7 = arith.constant 0.000000e+00 : f32
    %8 = vector.broadcast %cst_7 : f32 to vector<8x128xf32>
    %9 = arith.maximumf %7, %8 : vector<8x128xf32>
    %10 = arith.truncf %9 : vector<8x128xf32> to vector<8x128xbf16>
    %c0_8 = arith.constant 0 : index
    %c0_9 = arith.constant 0 : index
    %c0_10 = arith.constant 0 : index
    %11 = vector.load %arg6[%c0_8, %c0_9, %c0_10] : memref<1x8x128xbf16, #tpu.memory_space<vmem>>, vector<1x8x128xbf16>
    %12 = vector.shape_cast %11 : vector<1x8x128xbf16> to vector<8x128xbf16>
    %13 = vector.shape_cast %10 : vector<8x128xbf16> to vector<1x8x128xbf16>
    tpu.vector_store %arg6[%c0_8, %c0_9, %c0_10], %13 {strides = array<i32>} : memref<1x8x128xbf16, #tpu.memory_space<vmem>>, vector<1x8x128xbf16>,
    return
  }
  func.func @transform_0(%arg0: i32, %arg1: i32, %arg2: i32) -> (i32, i32, i32) {
    %c0_i32 = arith.constant 0 : i32
    %c0_i32_0 = arith.constant 0 : i32
    return %arg0, %arg2, %c0_i32 : i32, i32, i32
  }
  func.func @transform_1(%arg0: i32, %arg1: i32, %arg2: i32) -> (i32, i32, i32) {
    %c0_i32 = arith.constant 0 : i32
    %c0_i32_0 = arith.constant 0 : i32
    return %arg0, %c0_i32, %arg1 : i32, i32, i32
  }
  func.func @transform_2(%arg0: i32, %arg1: i32, %arg2: i32) -> (i32, i32) {
    %c0_i32 = arith.constant 0 : i32
    %c0_i32_0 = arith.constant 0 : i32
    return %c0_i32, %arg1 : i32, i32
  }
  func.func @transform_3(%arg0: i32, %arg1: i32, %arg2: i32) -> (i32, i32, i32) {
    %c0_i32 = arith.constant 0 : i32
    return %arg0, %arg2, %arg1 : i32, i32, i32
  }
}

module attributes {stable_mosaic.version = 11 : i64} {
  func.func @_matmul_kernel(%arg0: i32, %arg1: i32, %arg2: i32, %arg3: memref<1x8x144xbf16, #tpu.memory_space<vmem>>, %arg4: memref<1x144x128xbf16, #tpu.memory_space<vmem>>, %arg5: memref<1x128xf32, #tpu.memory_space<vmem>>, %arg6: memref<1x8x128xbf16, #tpu.memory_space<vmem>>) attributes {dimension_semantics = [#tpu.dimension_semantics<parallel>, #tpu.dimension_semantics<parallel>, #tpu.dimension_semantics<parallel>], iteration_bounds = array<i64: 1, 1, 1>, scalar_prefetch = 0 : i64, scratch_operands = 0 : i64, tpu.core_type = #tpu.core_type<tc>, window_params = [{transform_indices = @transform_0, window_bounds = array<i64: 1, 8, 144>}, {transform_indices = @transform_1, window_bounds = array<i64: 1, 144, 128>}, {transform_indices = @transform_2, window_bounds = array<i64: 1, 128>}, {transform_indices = @transform_3, window_bounds = array<i64: 1, 8, 128>}]} {
    %c0 = arith.constant 0 : index
    %c0_0 = arith.constant 0 : index
    %c0_1 = arith.constant 0 : index
    %0 = vector.load %arg3[%c0, %c0_0, %c0_1] : memref<1x8x144xbf16, #tpu.memory_space<vmem>>, vector<1x8x144xbf16>
    %1 = vector.shape_cast %0 : vector<1x8x144xbf16> to vector<8x144xbf16>
    %c0_2 = arith.constant 0 : index
    %c0_3 = arith.constant 0 : index
    %c0_4 = arith.constant 0 : index
    %2 = vector.load %arg4[%c0_2, %c0_3, %c0_4] : memref<1x144x128xbf16, #tpu.memory_space<vmem>>, vector<1x144x128xbf16>
    %3 = vector.shape_cast %2 : vector<1x144x128xbf16> to vector<144x128xbf16>
    %cst = arith.constant dense<0.000000e+00> : vector<8x128xf32>
    %4 = tpu.matmul %1, %3, %cst {dimension_numbers = #tpu.dot_dimension_numbers<[1], [0], [0], [1], [0, 0, 1, 1], [], []>} : vector<8x144xbf16>, vector<144x128xbf16>, vector<8x128xf32> -> vector<8x128xf32>
    %c0_5 = arith.constant 0 : index
    %c0_6 = arith.constant 0 : index
    %5 = vector.load %arg5[%c0_5, %c0_6] : memref<1x128xf32, #tpu.memory_space<vmem>>, vector<1x128xf32>
    %6 = vector.broadcast %5 : vector<1x128xf32> to vector<8x128xf32>
    %7 = arith.addf %4, %6 : vector<8x128xf32>
    %cst_7 = arith.constant 0.000000e+00 : f32
    %8 = vector.broadcast %cst_7 : f32 to vector<8x128xf32>
    %9 = arith.maximumf %7, %8 : vector<8x128xf32>
    %10 = arith.truncf %9 : vector<8x128xf32> to vector<8x128xbf16>
    %c0_8 = arith.constant 0 : index
    %c0_9 = arith.constant 0 : index
    %c0_10 = arith.constant 0 : index
    %11 = vector.load %arg6[%c0_8, %c0_9, %c0_10] : memref<1x8x128xbf16, #tpu.memory_space<vmem>>, vector<1x8x128xbf16>
    %12 = vector.shape_cast %11 : vector<1x8x128xbf16> to vector<8x128xbf16>
    %13 = vector.shape_cast %10 : vector<8x128xbf16> to vector<1x8x128xbf16>
    tpu.vector_store %arg6[%c0_8, %c0_9, %c0_10], %13 {strides = array<i32>} : memref<1x8x128xbf16, #tpu.memory_space<vmem>>, vector<1x8x128xbf16>,
    return
  }
  func.func @transform_0(%arg0: i32, %arg1: i32, %arg2: i32) -> (i32, i32, i32) {
    %c0_i32 = arith.constant 0 : i32
    %c0_i32_0 = arith.constant 0 : i32
    return %arg0, %arg2, %c0_i32 : i32, i32, i32
  }
  func.func @transform_1(%arg0: i32, %arg1: i32, %arg2: i32) -> (i32, i32, i32) {
    %c0_i32 = arith.constant 0 : i32
    %c0_i32_0 = arith.constant 0 : i32
    return %arg0, %c0_i32, %arg1 : i32, i32, i32
  }
  func.func @transform_2(%arg0: i32, %arg1: i32, %arg2: i32) -> (i32, i32) {
    %c0_i32 = arith.constant 0 : i32
    %c0_i32_0 = arith.constant 0 : i32
    return %c0_i32, %arg1 : i32, i32
  }
  func.func @transform_3(%arg0: i32, %arg1: i32, %arg2: i32) -> (i32, i32, i32) {
    %c0_i32 = arith.constant 0 : i32
    return %arg0, %arg2, %arg1 : i32, i32, i32
  }
}

module attributes {stable_mosaic.version = 11 : i64} {
  func.func @_fuse_kernel(%arg0: i32, %arg1: i32, %arg2: memref<16x2xf32, #tpu.memory_space<vmem>>, %arg3: memref<2x16x256xbf16, #tpu.memory_space<vmem>>, %arg4: memref<16x256xbf16, #tpu.memory_space<vmem>>) attributes {dimension_semantics = [#tpu.dimension_semantics<parallel>, #tpu.dimension_semantics<parallel>], iteration_bounds = array<i64: 1, 1>, scalar_prefetch = 0 : i64, scratch_operands = 0 : i64, tpu.core_type = #tpu.core_type<tc>, window_params = [{transform_indices = @transform_0, window_bounds = array<i64: 16, 2>}, {transform_indices = @transform_1, window_bounds = array<i64: 2, 16, 256>}, {transform_indices = @transform_2, window_bounds = array<i64: 16, 256>}]} {
    %c0 = arith.constant 0 : index
    %c0_0 = arith.constant 0 : index
    %0 = vector.load %arg2[%c0, %c0_0] : memref<16x2xf32, #tpu.memory_space<vmem>>, vector<16x2xf32>
    %cst = arith.constant dense<0xFF800000> : vector<16xf32>
    %1 = vector.multi_reduction <maximumf>, %0, %cst [1] : vector<16x2xf32> to vector<16xf32>
    %2 = vector.shape_cast %1 : vector<16xf32> to vector<16x1xf32>
    %3 = vector.broadcast %2 : vector<16x1xf32> to vector<16x2xf32>
    %4 = arith.subf %0, %3 : vector<16x2xf32>
    %5 = math.exp %4 : vector<16x2xf32>
    %cst_1 = arith.constant dense<0.000000e+00> : vector<16xf32>
    %6 = vector.multi_reduction <add>, %5, %cst_1 [1] : vector<16x2xf32> to vector<16xf32>
    %7 = vector.shape_cast %6 : vector<16xf32> to vector<16x1xf32>
    %8 = tpu.reciprocal %7 {approx = true} : vector<16x1xf32> -> vector<16x1xf32>
    %9 = vector.broadcast %8 : vector<16x1xf32> to vector<16x2xf32>
    %10 = arith.mulf %5, %9 : vector<16x2xf32>
    %cst_2 = arith.constant 0.000000e+00 : f32
    %11 = vector.broadcast %cst_2 : f32 to vector<16x256xf32>
    %12 = vector.extract_strided_slice %10 {offsets = [0, 0], sizes = [16, 1], strides = [1, 1]} : vector<16x2xf32> to vector<16x1xf32>
    %c0_3 = arith.constant 0 : index
    %c0_4 = arith.constant 0 : index
    %c0_5 = arith.constant 0 : index
    %13 = vector.load %arg3[%c0_3, %c0_4, %c0_5] : memref<2x16x256xbf16, #tpu.memory_space<vmem>>, vector<1x16x256xbf16>
    %14 = vector.shape_cast %13 : vector<1x16x256xbf16> to vector<16x256xbf16>
    %15 = arith.extf %14 : vector<16x256xbf16> to vector<16x256xf32>
    %16 = vector.broadcast %12 : vector<16x1xf32> to vector<16x256xf32>
    %17 = arith.mulf %16, %15 : vector<16x256xf32>
    %18 = arith.addf %11, %17 : vector<16x256xf32>
    %19 = vector.extract_strided_slice %10 {offsets = [0, 1], sizes = [16, 1], strides = [1, 1]} : vector<16x2xf32> to vector<16x1xf32>
    %c1 = arith.constant 1 : index
    %c0_6 = arith.constant 0 : index
    %c0_7 = arith.constant 0 : index
    %20 = vector.load %arg3[%c1, %c0_6, %c0_7] : memref<2x16x256xbf16, #tpu.memory_space<vmem>>, vector<1x16x256xbf16>
    %21 = vector.shape_cast %20 : vector<1x16x256xbf16> to vector<16x256xbf16>
    %22 = arith.extf %21 : vector<16x256xbf16> to vector<16x256xf32>
    %23 = vector.broadcast %19 : vector<16x1xf32> to vector<16x256xf32>
    %24 = arith.mulf %23, %22 : vector<16x256xf32>
    %25 = arith.addf %18, %24 : vector<16x256xf32>
    %26 = arith.truncf %25 : vector<16x256xf32> to vector<16x256xbf16>
    %c0_8 = arith.constant 0 : index
    %c0_9 = arith.constant 0 : index
    %27 = vector.load %arg4[%c0_8, %c0_9] : memref<16x256xbf16, #tpu.memory_space<vmem>>, vector<16x256xbf16>
    tpu.vector_store %arg4[%c0_8, %c0_9], %26 {strides = array<i32>} : memref<16x256xbf16, #tpu.memory_space<vmem>>, vector<16x256xbf16>,
    return
  }
  func.func @transform_0(%arg0: i32, %arg1: i32) -> (i32, i32) {
    %c0_i32 = arith.constant 0 : i32
    %c0_i32_0 = arith.constant 0 : i32
    return %arg0, %c0_i32 : i32, i32
  }
  func.func @transform_1(%arg0: i32, %arg1: i32) -> (i32, i32, i32) {
    %c0_i32 = arith.constant 0 : i32
    %c0_i32_0 = arith.constant 0 : i32
    return %c0_i32, %arg0, %arg1 : i32, i32, i32
  }
  func.func @transform_2(%arg0: i32, %arg1: i32) -> (i32, i32) {
    %c0_i32 = arith.constant 0 : i32
    return %arg0, %arg1 : i32, i32
  }
}

module attributes {stable_mosaic.version = 11 : i64} {
  func.func @_matmul_kernel(%arg0: i32, %arg1: i32, %arg2: i32, %arg3: memref<1x8x4608xbf16, #tpu.memory_space<vmem>>, %arg4: memref<1x4608x256xbf16, #tpu.memory_space<vmem>>, %arg5: memref<1x256xf32, #tpu.memory_space<vmem>>, %arg6: memref<1x8x256xbf16, #tpu.memory_space<vmem>>) attributes {dimension_semantics = [#tpu.dimension_semantics<parallel>, #tpu.dimension_semantics<parallel>, #tpu.dimension_semantics<parallel>], iteration_bounds = array<i64: 1, 2, 1>, scalar_prefetch = 0 : i64, scratch_operands = 0 : i64, tpu.core_type = #tpu.core_type<tc>, window_params = [{transform_indices = @transform_0, window_bounds = array<i64: 1, 8, 4608>}, {transform_indices = @transform_1, window_bounds = array<i64: 1, 4608, 256>}, {transform_indices = @transform_2, window_bounds = array<i64: 1, 256>}, {transform_indices = @transform_3, window_bounds = array<i64: 1, 8, 256>}]} {
    %c0 = arith.constant 0 : index
    %c0_0 = arith.constant 0 : index
    %c0_1 = arith.constant 0 : index
    %0 = vector.load %arg3[%c0, %c0_0, %c0_1] : memref<1x8x4608xbf16, #tpu.memory_space<vmem>>, vector<1x8x4608xbf16>
    %1 = vector.shape_cast %0 : vector<1x8x4608xbf16> to vector<8x4608xbf16>
    %c0_2 = arith.constant 0 : index
    %c0_3 = arith.constant 0 : index
    %c0_4 = arith.constant 0 : index
    %2 = vector.load %arg4[%c0_2, %c0_3, %c0_4] : memref<1x4608x256xbf16, #tpu.memory_space<vmem>>, vector<1x4608x256xbf16>
    %3 = vector.shape_cast %2 : vector<1x4608x256xbf16> to vector<4608x256xbf16>
    %cst = arith.constant dense<0.000000e+00> : vector<8x256xf32>
    %4 = tpu.matmul %1, %3, %cst {dimension_numbers = #tpu.dot_dimension_numbers<[1], [0], [0], [1], [0, 0, 1, 1], [], []>} : vector<8x4608xbf16>, vector<4608x256xbf16>, vector<8x256xf32> -> vector<8x256xf32>
    %c0_5 = arith.constant 0 : index
    %c0_6 = arith.constant 0 : index
    %5 = vector.load %arg5[%c0_5, %c0_6] : memref<1x256xf32, #tpu.memory_space<vmem>>, vector<1x256xf32>
    %6 = vector.broadcast %5 : vector<1x256xf32> to vector<8x256xf32>
    %7 = arith.addf %4, %6 : vector<8x256xf32>
    %cst_7 = arith.constant 0.000000e+00 : f32
    %8 = vector.broadcast %cst_7 : f32 to vector<8x256xf32>
    %9 = arith.maximumf %7, %8 : vector<8x256xf32>
    %10 = arith.truncf %9 : vector<8x256xf32> to vector<8x256xbf16>
    %c0_8 = arith.constant 0 : index
    %c0_9 = arith.constant 0 : index
    %c0_10 = arith.constant 0 : index
    %11 = vector.load %arg6[%c0_8, %c0_9, %c0_10] : memref<1x8x256xbf16, #tpu.memory_space<vmem>>, vector<1x8x256xbf16>
    %12 = vector.shape_cast %11 : vector<1x8x256xbf16> to vector<8x256xbf16>
    %13 = vector.shape_cast %10 : vector<8x256xbf16> to vector<1x8x256xbf16>
    tpu.vector_store %arg6[%c0_8, %c0_9, %c0_10], %13 {strides = array<i32>} : memref<1x8x256xbf16, #tpu.memory_space<vmem>>, vector<1x8x256xbf16>,
    return
  }
  func.func @transform_0(%arg0: i32, %arg1: i32, %arg2: i32) -> (i32, i32, i32) {
    %c0_i32 = arith.constant 0 : i32
    %c0_i32_0 = arith.constant 0 : i32
    return %arg0, %arg2, %c0_i32 : i32, i32, i32
  }
  func.func @transform_1(%arg0: i32, %arg1: i32, %arg2: i32) -> (i32, i32, i32) {
    %c0_i32 = arith.constant 0 : i32
    %c0_i32_0 = arith.constant 0 : i32
    return %arg0, %c0_i32, %arg1 : i32, i32, i32
  }
  func.func @transform_2(%arg0: i32, %arg1: i32, %arg2: i32) -> (i32, i32) {
    %c0_i32 = arith.constant 0 : i32
    %c0_i32_0 = arith.constant 0 : i32
    return %c0_i32, %arg1 : i32, i32
  }
  func.func @transform_3(%arg0: i32, %arg1: i32, %arg2: i32) -> (i32, i32, i32) {
    %c0_i32 = arith.constant 0 : i32
    return %arg0, %arg2, %arg1 : i32, i32, i32
  }
}

module attributes {stable_mosaic.version = 11 : i64} {
  func.func @_matmul_kernel(%arg0: i32, %arg1: i32, %arg2: i32, %arg3: memref<1x8x2304xbf16, #tpu.memory_space<vmem>>, %arg4: memref<1x2304x256xbf16, #tpu.memory_space<vmem>>, %arg5: memref<1x256xf32, #tpu.memory_space<vmem>>, %arg6: memref<1x8x256xbf16, #tpu.memory_space<vmem>>) attributes {dimension_semantics = [#tpu.dimension_semantics<parallel>, #tpu.dimension_semantics<parallel>, #tpu.dimension_semantics<parallel>], iteration_bounds = array<i64: 1, 2, 1>, scalar_prefetch = 0 : i64, scratch_operands = 0 : i64, tpu.core_type = #tpu.core_type<tc>, window_params = [{transform_indices = @transform_0, window_bounds = array<i64: 1, 8, 2304>}, {transform_indices = @transform_1, window_bounds = array<i64: 1, 2304, 256>}, {transform_indices = @transform_2, window_bounds = array<i64: 1, 256>}, {transform_indices = @transform_3, window_bounds = array<i64: 1, 8, 256>}]} {
    %c0 = arith.constant 0 : index
    %c0_0 = arith.constant 0 : index
    %c0_1 = arith.constant 0 : index
    %0 = vector.load %arg3[%c0, %c0_0, %c0_1] : memref<1x8x2304xbf16, #tpu.memory_space<vmem>>, vector<1x8x2304xbf16>
    %1 = vector.shape_cast %0 : vector<1x8x2304xbf16> to vector<8x2304xbf16>
    %c0_2 = arith.constant 0 : index
    %c0_3 = arith.constant 0 : index
    %c0_4 = arith.constant 0 : index
    %2 = vector.load %arg4[%c0_2, %c0_3, %c0_4] : memref<1x2304x256xbf16, #tpu.memory_space<vmem>>, vector<1x2304x256xbf16>
    %3 = vector.shape_cast %2 : vector<1x2304x256xbf16> to vector<2304x256xbf16>
    %cst = arith.constant dense<0.000000e+00> : vector<8x256xf32>
    %4 = tpu.matmul %1, %3, %cst {dimension_numbers = #tpu.dot_dimension_numbers<[1], [0], [0], [1], [0, 0, 1, 1], [], []>} : vector<8x2304xbf16>, vector<2304x256xbf16>, vector<8x256xf32> -> vector<8x256xf32>
    %c0_5 = arith.constant 0 : index
    %c0_6 = arith.constant 0 : index
    %5 = vector.load %arg5[%c0_5, %c0_6] : memref<1x256xf32, #tpu.memory_space<vmem>>, vector<1x256xf32>
    %6 = vector.broadcast %5 : vector<1x256xf32> to vector<8x256xf32>
    %7 = arith.addf %4, %6 : vector<8x256xf32>
    %cst_7 = arith.constant 0.000000e+00 : f32
    %8 = vector.broadcast %cst_7 : f32 to vector<8x256xf32>
    %9 = arith.maximumf %7, %8 : vector<8x256xf32>
    %10 = arith.truncf %9 : vector<8x256xf32> to vector<8x256xbf16>
    %c0_8 = arith.constant 0 : index
    %c0_9 = arith.constant 0 : index
    %c0_10 = arith.constant 0 : index
    %11 = vector.load %arg6[%c0_8, %c0_9, %c0_10] : memref<1x8x256xbf16, #tpu.memory_space<vmem>>, vector<1x8x256xbf16>
    %12 = vector.shape_cast %11 : vector<1x8x256xbf16> to vector<8x256xbf16>
    %13 = vector.shape_cast %10 : vector<8x256xbf16> to vector<1x8x256xbf16>
    tpu.vector_store %arg6[%c0_8, %c0_9, %c0_10], %13 {strides = array<i32>} : memref<1x8x256xbf16, #tpu.memory_space<vmem>>, vector<1x8x256xbf16>,
    return
  }
  func.func @transform_0(%arg0: i32, %arg1: i32, %arg2: i32) -> (i32, i32, i32) {
    %c0_i32 = arith.constant 0 : i32
    %c0_i32_0 = arith.constant 0 : i32
    return %arg0, %arg2, %c0_i32 : i32, i32, i32
  }
  func.func @transform_1(%arg0: i32, %arg1: i32, %arg2: i32) -> (i32, i32, i32) {
    %c0_i32 = arith.constant 0 : i32
    %c0_i32_0 = arith.constant 0 : i32
    return %arg0, %c0_i32, %arg1 : i32, i32, i32
  }
  func.func @transform_2(%arg0: i32, %arg1: i32, %arg2: i32) -> (i32, i32) {
    %c0_i32 = arith.constant 0 : i32
    %c0_i32_0 = arith.constant 0 : i32
    return %c0_i32, %arg1 : i32, i32
  }
  func.func @transform_3(%arg0: i32, %arg1: i32, %arg2: i32) -> (i32, i32, i32) {
    %c0_i32 = arith.constant 0 : i32
    return %arg0, %arg2, %arg1 : i32, i32, i32
  }
}

module attributes {stable_mosaic.version = 11 : i64} {
  func.func @_bn_stats_kernel(%arg0: i32, %arg1: i32, %arg2: memref<8x256xbf16, #tpu.memory_space<vmem>>, %arg3: memref<2x256xf32, #tpu.memory_space<vmem>>) attributes {dimension_semantics = [#tpu.dimension_semantics<parallel>, #tpu.dimension_semantics<arbitrary>], iteration_bounds = array<i64: 2, 1>, scalar_prefetch = 0 : i64, scratch_operands = 0 : i64, tpu.core_type = #tpu.core_type<tc>, window_params = [{transform_indices = @transform_0, window_bounds = array<i64: 8, 256>}, {transform_indices = @transform_1, window_bounds = array<i64: 2, 256>}]} {
    %c0_i32 = arith.constant 0 : i32
    %0 = arith.cmpi eq, %arg1, %c0_i32 : i32
    %1 = arith.extui %0 : i1 to i32
    %c0_i32_0 = arith.constant 0 : i32
    %2 = arith.cmpi ne, %1, %c0_i32_0 : i32
    scf.if %2 {
      %cst_7 = arith.constant 0.000000e+00 : f32
      %14 = vector.broadcast %cst_7 : f32 to vector<2x256xf32>
      %c0_8 = arith.constant 0 : index
      %c0_9 = arith.constant 0 : index
      %15 = vector.load %arg3[%c0_8, %c0_9] : memref<2x256xf32, #tpu.memory_space<vmem>>, vector<2x256xf32>
      tpu.vector_store %arg3[%c0_8, %c0_9], %14 {strides = array<i32>} : memref<2x256xf32, #tpu.memory_space<vmem>>, vector<2x256xf32>,
    } else {
    }
    %c0 = arith.constant 0 : index
    %c0_1 = arith.constant 0 : index
    %3 = vector.load %arg2[%c0, %c0_1] : memref<8x256xbf16, #tpu.memory_space<vmem>>, vector<8x256xbf16>
    %4 = arith.extf %3 : vector<8x256xbf16> to vector<8x256xf32>
    %cst = arith.constant dense<0.000000e+00> : vector<256xf32>
    %5 = vector.multi_reduction <add>, %4, %cst [0] : vector<8x256xf32> to vector<256xf32>
    %6 = vector.shape_cast %5 : vector<256xf32> to vector<1x256xf32>
    %7 = arith.mulf %4, %4 : vector<8x256xf32>
    %cst_2 = arith.constant dense<0.000000e+00> : vector<256xf32>
    %8 = vector.multi_reduction <add>, %7, %cst_2 [0] : vector<8x256xf32> to vector<256xf32>
    %9 = vector.shape_cast %8 : vector<256xf32> to vector<1x256xf32>
    %c0_3 = arith.constant 0 : index
    %c0_4 = arith.constant 0 : index
    %10 = vector.load %arg3[%c0_3, %c0_4] : memref<2x256xf32, #tpu.memory_space<vmem>>, vector<2x256xf32>
    %11 = tpu.concatenate %6, %9 in 0 : vector<1x256xf32>, vector<1x256xf32> -> vector<2x256xf32>
    %12 = arith.addf %10, %11 : vector<2x256xf32>
    %c0_5 = arith.constant 0 : index
    %c0_6 = arith.constant 0 : index
    %13 = vector.load %arg3[%c0_5, %c0_6] : memref<2x256xf32, #tpu.memory_space<vmem>>, vector<2x256xf32>
    tpu.vector_store %arg3[%c0_5, %c0_6], %12 {strides = array<i32>} : memref<2x256xf32, #tpu.memory_space<vmem>>, vector<2x256xf32>,
    return
  }
  func.func @transform_0(%arg0: i32, %arg1: i32) -> (i32, i32) {
    %c0_i32 = arith.constant 0 : i32
    return %arg1, %arg0 : i32, i32
  }
  func.func @transform_1(%arg0: i32, %arg1: i32) -> (i32, i32) {
    %c0_i32 = arith.constant 0 : i32
    %c0_i32_0 = arith.constant 0 : i32
    return %c0_i32, %arg0 : i32, i32
  }
}

module attributes {stable_mosaic.version = 11 : i64} {
  func.func @_bn_norm_kernel(%arg0: i32, %arg1: i32, %arg2: memref<8x256xbf16, #tpu.memory_space<vmem>>, %arg3: memref<2x256xf32, #tpu.memory_space<vmem>>, %arg4: memref<8x256xbf16, #tpu.memory_space<vmem>>) attributes {dimension_semantics = [#tpu.dimension_semantics<parallel>, #tpu.dimension_semantics<parallel>], iteration_bounds = array<i64: 1, 2>, scalar_prefetch = 0 : i64, scratch_operands = 0 : i64, tpu.core_type = #tpu.core_type<tc>, window_params = [{transform_indices = @transform_0, window_bounds = array<i64: 8, 256>}, {transform_indices = @transform_1, window_bounds = array<i64: 2, 256>}, {transform_indices = @transform_2, window_bounds = array<i64: 8, 256>}]} {
    %c0 = arith.constant 0 : index
    %c0_0 = arith.constant 0 : index
    %0 = vector.load %arg2[%c0, %c0_0] : memref<8x256xbf16, #tpu.memory_space<vmem>>, vector<8x256xbf16>
    %1 = arith.extf %0 : vector<8x256xbf16> to vector<8x256xf32>
    %c0_1 = arith.constant 0 : index
    %c0_2 = arith.constant 0 : index
    %2 = vector.load %arg3[%c0_1, %c0_2] : memref<2x256xf32, #tpu.memory_space<vmem>>, vector<2x256xf32>
    %3 = vector.extract_strided_slice %2 {offsets = [0, 0], sizes = [1, 256], strides = [1, 1]} : vector<2x256xf32> to vector<1x256xf32>
    %cst = arith.constant 2.500000e-01 : f32
    %4 = vector.broadcast %cst : f32 to vector<1x256xf32>
    %5 = arith.mulf %3, %4 : vector<1x256xf32>
    %6 = vector.extract_strided_slice %2 {offsets = [1, 0], sizes = [1, 256], strides = [1, 1]} : vector<2x256xf32> to vector<1x256xf32>
    %cst_3 = arith.constant 2.500000e-01 : f32
    %7 = vector.broadcast %cst_3 : f32 to vector<1x256xf32>
    %8 = arith.mulf %6, %7 : vector<1x256xf32>
    %9 = arith.mulf %5, %5 : vector<1x256xf32>
    %10 = arith.subf %8, %9 : vector<1x256xf32>
    %11 = vector.broadcast %5 : vector<1x256xf32> to vector<8x256xf32>
    %12 = arith.subf %1, %11 : vector<8x256xf32>
    %cst_4 = arith.constant 9.99999974E-6 : f32
    %13 = vector.broadcast %cst_4 : f32 to vector<1x256xf32>
    %14 = arith.addf %10, %13 : vector<1x256xf32>
    %15 = math.rsqrt %14 : vector<1x256xf32>
    %16 = vector.broadcast %15 : vector<1x256xf32> to vector<8x256xf32>
    %17 = arith.mulf %12, %16 : vector<8x256xf32>
    %18 = arith.truncf %17 : vector<8x256xf32> to vector<8x256xbf16>
    %c0_5 = arith.constant 0 : index
    %c0_6 = arith.constant 0 : index
    %19 = vector.load %arg4[%c0_5, %c0_6] : memref<8x256xbf16, #tpu.memory_space<vmem>>, vector<8x256xbf16>
    tpu.vector_store %arg4[%c0_5, %c0_6], %18 {strides = array<i32>} : memref<8x256xbf16, #tpu.memory_space<vmem>>, vector<8x256xbf16>,
    return
  }
  func.func @transform_0(%arg0: i32, %arg1: i32) -> (i32, i32) {
    %c0_i32 = arith.constant 0 : i32
    return %arg0, %arg1 : i32, i32
  }
  func.func @transform_1(%arg0: i32, %arg1: i32) -> (i32, i32) {
    %c0_i32 = arith.constant 0 : i32
    %c0_i32_0 = arith.constant 0 : i32
    return %c0_i32, %arg1 : i32, i32
  }
  func.func @transform_2(%arg0: i32, %arg1: i32) -> (i32, i32) {
    %c0_i32 = arith.constant 0 : i32
    return %arg0, %arg1 : i32, i32
  }
}

module attributes {stable_mosaic.version = 11 : i64} {
  func.func @_matmul_kernel(%arg0: i32, %arg1: i32, %arg2: i32, %arg3: memref<1x8x4608xbf16, #tpu.memory_space<vmem>>, %arg4: memref<1x4608x128xbf16, #tpu.memory_space<vmem>>, %arg5: memref<1x128xf32, #tpu.memory_space<vmem>>, %arg6: memref<1x8x128xbf16, #tpu.memory_space<vmem>>) attributes {dimension_semantics = [#tpu.dimension_semantics<parallel>, #tpu.dimension_semantics<parallel>, #tpu.dimension_semantics<parallel>], iteration_bounds = array<i64: 1, 1, 1>, scalar_prefetch = 0 : i64, scratch_operands = 0 : i64, tpu.core_type = #tpu.core_type<tc>, window_params = [{transform_indices = @transform_0, window_bounds = array<i64: 1, 8, 4608>}, {transform_indices = @transform_1, window_bounds = array<i64: 1, 4608, 128>}, {transform_indices = @transform_2, window_bounds = array<i64: 1, 128>}, {transform_indices = @transform_3, window_bounds = array<i64: 1, 8, 128>}]} {
    %c0 = arith.constant 0 : index
    %c0_0 = arith.constant 0 : index
    %c0_1 = arith.constant 0 : index
    %0 = vector.load %arg3[%c0, %c0_0, %c0_1] : memref<1x8x4608xbf16, #tpu.memory_space<vmem>>, vector<1x8x4608xbf16>
    %1 = vector.shape_cast %0 : vector<1x8x4608xbf16> to vector<8x4608xbf16>
    %c0_2 = arith.constant 0 : index
    %c0_3 = arith.constant 0 : index
    %c0_4 = arith.constant 0 : index
    %2 = vector.load %arg4[%c0_2, %c0_3, %c0_4] : memref<1x4608x128xbf16, #tpu.memory_space<vmem>>, vector<1x4608x128xbf16>
    %3 = vector.shape_cast %2 : vector<1x4608x128xbf16> to vector<4608x128xbf16>
    %cst = arith.constant dense<0.000000e+00> : vector<8x128xf32>
    %4 = tpu.matmul %1, %3, %cst {dimension_numbers = #tpu.dot_dimension_numbers<[1], [0], [0], [1], [0, 0, 1, 1], [], []>} : vector<8x4608xbf16>, vector<4608x128xbf16>, vector<8x128xf32> -> vector<8x128xf32>
    %c0_5 = arith.constant 0 : index
    %c0_6 = arith.constant 0 : index
    %5 = vector.load %arg5[%c0_5, %c0_6] : memref<1x128xf32, #tpu.memory_space<vmem>>, vector<1x128xf32>
    %6 = vector.broadcast %5 : vector<1x128xf32> to vector<8x128xf32>
    %7 = arith.addf %4, %6 : vector<8x128xf32>
    %cst_7 = arith.constant 0.000000e+00 : f32
    %8 = vector.broadcast %cst_7 : f32 to vector<8x128xf32>
    %9 = arith.maximumf %7, %8 : vector<8x128xf32>
    %10 = arith.truncf %9 : vector<8x128xf32> to vector<8x128xbf16>
    %c0_8 = arith.constant 0 : index
    %c0_9 = arith.constant 0 : index
    %c0_10 = arith.constant 0 : index
    %11 = vector.load %arg6[%c0_8, %c0_9, %c0_10] : memref<1x8x128xbf16, #tpu.memory_space<vmem>>, vector<1x8x128xbf16>
    %12 = vector.shape_cast %11 : vector<1x8x128xbf16> to vector<8x128xbf16>
    %13 = vector.shape_cast %10 : vector<8x128xbf16> to vector<1x8x128xbf16>
    tpu.vector_store %arg6[%c0_8, %c0_9, %c0_10], %13 {strides = array<i32>} : memref<1x8x128xbf16, #tpu.memory_space<vmem>>, vector<1x8x128xbf16>,
    return
  }
  func.func @transform_0(%arg0: i32, %arg1: i32, %arg2: i32) -> (i32, i32, i32) {
    %c0_i32 = arith.constant 0 : i32
    %c0_i32_0 = arith.constant 0 : i32
    return %arg0, %arg2, %c0_i32 : i32, i32, i32
  }
  func.func @transform_1(%arg0: i32, %arg1: i32, %arg2: i32) -> (i32, i32, i32) {
    %c0_i32 = arith.constant 0 : i32
    %c0_i32_0 = arith.constant 0 : i32
    return %arg0, %c0_i32, %arg1 : i32, i32, i32
  }
  func.func @transform_2(%arg0: i32, %arg1: i32, %arg2: i32) -> (i32, i32) {
    %c0_i32 = arith.constant 0 : i32
    %c0_i32_0 = arith.constant 0 : i32
    return %c0_i32, %arg1 : i32, i32
  }
  func.func @transform_3(%arg0: i32, %arg1: i32, %arg2: i32) -> (i32, i32, i32) {
    %c0_i32 = arith.constant 0 : i32
    return %arg0, %arg2, %arg1 : i32, i32, i32
  }
}

module attributes {stable_mosaic.version = 11 : i64} {
  func.func @_matmul_kernel(%arg0: i32, %arg1: i32, %arg2: i32, %arg3: memref<1x8x144xbf16, #tpu.memory_space<vmem>>, %arg4: memref<1x144x128xbf16, #tpu.memory_space<vmem>>, %arg5: memref<1x128xf32, #tpu.memory_space<vmem>>, %arg6: memref<1x8x128xbf16, #tpu.memory_space<vmem>>) attributes {dimension_semantics = [#tpu.dimension_semantics<parallel>, #tpu.dimension_semantics<parallel>, #tpu.dimension_semantics<parallel>], iteration_bounds = array<i64: 1, 1, 1>, scalar_prefetch = 0 : i64, scratch_operands = 0 : i64, tpu.core_type = #tpu.core_type<tc>, window_params = [{transform_indices = @transform_0, window_bounds = array<i64: 1, 8, 144>}, {transform_indices = @transform_1, window_bounds = array<i64: 1, 144, 128>}, {transform_indices = @transform_2, window_bounds = array<i64: 1, 128>}, {transform_indices = @transform_3, window_bounds = array<i64: 1, 8, 128>}]} {
    %c0 = arith.constant 0 : index
    %c0_0 = arith.constant 0 : index
    %c0_1 = arith.constant 0 : index
    %0 = vector.load %arg3[%c0, %c0_0, %c0_1] : memref<1x8x144xbf16, #tpu.memory_space<vmem>>, vector<1x8x144xbf16>
    %1 = vector.shape_cast %0 : vector<1x8x144xbf16> to vector<8x144xbf16>
    %c0_2 = arith.constant 0 : index
    %c0_3 = arith.constant 0 : index
    %c0_4 = arith.constant 0 : index
    %2 = vector.load %arg4[%c0_2, %c0_3, %c0_4] : memref<1x144x128xbf16, #tpu.memory_space<vmem>>, vector<1x144x128xbf16>
    %3 = vector.shape_cast %2 : vector<1x144x128xbf16> to vector<144x128xbf16>
    %cst = arith.constant dense<0.000000e+00> : vector<8x128xf32>
    %4 = tpu.matmul %1, %3, %cst {dimension_numbers = #tpu.dot_dimension_numbers<[1], [0], [0], [1], [0, 0, 1, 1], [], []>} : vector<8x144xbf16>, vector<144x128xbf16>, vector<8x128xf32> -> vector<8x128xf32>
    %c0_5 = arith.constant 0 : index
    %c0_6 = arith.constant 0 : index
    %5 = vector.load %arg5[%c0_5, %c0_6] : memref<1x128xf32, #tpu.memory_space<vmem>>, vector<1x128xf32>
    %6 = vector.broadcast %5 : vector<1x128xf32> to vector<8x128xf32>
    %7 = arith.addf %4, %6 : vector<8x128xf32>
    %cst_7 = arith.constant 0.000000e+00 : f32
    %8 = vector.broadcast %cst_7 : f32 to vector<8x128xf32>
    %9 = arith.maximumf %7, %8 : vector<8x128xf32>
    %10 = arith.truncf %9 : vector<8x128xf32> to vector<8x128xbf16>
    %c0_8 = arith.constant 0 : index
    %c0_9 = arith.constant 0 : index
    %c0_10 = arith.constant 0 : index
    %11 = vector.load %arg6[%c0_8, %c0_9, %c0_10] : memref<1x8x128xbf16, #tpu.memory_space<vmem>>, vector<1x8x128xbf16>
    %12 = vector.shape_cast %11 : vector<1x8x128xbf16> to vector<8x128xbf16>
    %13 = vector.shape_cast %10 : vector<8x128xbf16> to vector<1x8x128xbf16>
    tpu.vector_store %arg6[%c0_8, %c0_9, %c0_10], %13 {strides = array<i32>} : memref<1x8x128xbf16, #tpu.memory_space<vmem>>, vector<1x8x128xbf16>,
    return
  }
  func.func @transform_0(%arg0: i32, %arg1: i32, %arg2: i32) -> (i32, i32, i32) {
    %c0_i32 = arith.constant 0 : i32
    %c0_i32_0 = arith.constant 0 : i32
    return %arg0, %arg2, %c0_i32 : i32, i32, i32
  }
  func.func @transform_1(%arg0: i32, %arg1: i32, %arg2: i32) -> (i32, i32, i32) {
    %c0_i32 = arith.constant 0 : i32
    %c0_i32_0 = arith.constant 0 : i32
    return %arg0, %c0_i32, %arg1 : i32, i32, i32
  }
  func.func @transform_2(%arg0: i32, %arg1: i32, %arg2: i32) -> (i32, i32) {
    %c0_i32 = arith.constant 0 : i32
    %c0_i32_0 = arith.constant 0 : i32
    return %c0_i32, %arg1 : i32, i32
  }
  func.func @transform_3(%arg0: i32, %arg1: i32, %arg2: i32) -> (i32, i32, i32) {
    %c0_i32 = arith.constant 0 : i32
    return %arg0, %arg2, %arg1 : i32, i32, i32
  }
}

module attributes {stable_mosaic.version = 11 : i64} {
  func.func @_fuse_kernel(%arg0: i32, %arg1: i32, %arg2: memref<8x2xf32, #tpu.memory_space<vmem>>, %arg3: memref<2x8x256xbf16, #tpu.memory_space<vmem>>, %arg4: memref<8x256xbf16, #tpu.memory_space<vmem>>) attributes {dimension_semantics = [#tpu.dimension_semantics<parallel>, #tpu.dimension_semantics<parallel>], iteration_bounds = array<i64: 1, 2>, scalar_prefetch = 0 : i64, scratch_operands = 0 : i64, tpu.core_type = #tpu.core_type<tc>, window_params = [{transform_indices = @transform_0, window_bounds = array<i64: 8, 2>}, {transform_indices = @transform_1, window_bounds = array<i64: 2, 8, 256>}, {transform_indices = @transform_2, window_bounds = array<i64: 8, 256>}]} {
    %c0 = arith.constant 0 : index
    %c0_0 = arith.constant 0 : index
    %0 = vector.load %arg2[%c0, %c0_0] : memref<8x2xf32, #tpu.memory_space<vmem>>, vector<8x2xf32>
    %cst = arith.constant dense<0xFF800000> : vector<8xf32>
    %1 = vector.multi_reduction <maximumf>, %0, %cst [1] : vector<8x2xf32> to vector<8xf32>
    %2 = vector.shape_cast %1 : vector<8xf32> to vector<8x1xf32>
    %3 = vector.broadcast %2 : vector<8x1xf32> to vector<8x2xf32>
    %4 = arith.subf %0, %3 : vector<8x2xf32>
    %5 = math.exp %4 : vector<8x2xf32>
    %cst_1 = arith.constant dense<0.000000e+00> : vector<8xf32>
    %6 = vector.multi_reduction <add>, %5, %cst_1 [1] : vector<8x2xf32> to vector<8xf32>
    %7 = vector.shape_cast %6 : vector<8xf32> to vector<8x1xf32>
    %8 = tpu.reciprocal %7 {approx = true} : vector<8x1xf32> -> vector<8x1xf32>
    %9 = vector.broadcast %8 : vector<8x1xf32> to vector<8x2xf32>
    %10 = arith.mulf %5, %9 : vector<8x2xf32>
    %cst_2 = arith.constant 0.000000e+00 : f32
    %11 = vector.broadcast %cst_2 : f32 to vector<8x256xf32>
    %12 = vector.extract_strided_slice %10 {offsets = [0, 0], sizes = [8, 1], strides = [1, 1]} : vector<8x2xf32> to vector<8x1xf32>
    %c0_3 = arith.constant 0 : index
    %c0_4 = arith.constant 0 : index
    %c0_5 = arith.constant 0 : index
    %13 = vector.load %arg3[%c0_3, %c0_4, %c0_5] : memref<2x8x256xbf16, #tpu.memory_space<vmem>>, vector<1x8x256xbf16>
    %14 = vector.shape_cast %13 : vector<1x8x256xbf16> to vector<8x256xbf16>
    %15 = arith.extf %14 : vector<8x256xbf16> to vector<8x256xf32>
    %16 = vector.broadcast %12 : vector<8x1xf32> to vector<8x256xf32>
    %17 = arith.mulf %16, %15 : vector<8x256xf32>
    %18 = arith.addf %11, %17 : vector<8x256xf32>
    %19 = vector.extract_strided_slice %10 {offsets = [0, 1], sizes = [8, 1], strides = [1, 1]} : vector<8x2xf32> to vector<8x1xf32>
    %c1 = arith.constant 1 : index
    %c0_6 = arith.constant 0 : index
    %c0_7 = arith.constant 0 : index
    %20 = vector.load %arg3[%c1, %c0_6, %c0_7] : memref<2x8x256xbf16, #tpu.memory_space<vmem>>, vector<1x8x256xbf16>
    %21 = vector.shape_cast %20 : vector<1x8x256xbf16> to vector<8x256xbf16>
    %22 = arith.extf %21 : vector<8x256xbf16> to vector<8x256xf32>
    %23 = vector.broadcast %19 : vector<8x1xf32> to vector<8x256xf32>
    %24 = arith.mulf %23, %22 : vector<8x256xf32>
    %25 = arith.addf %18, %24 : vector<8x256xf32>
    %26 = arith.truncf %25 : vector<8x256xf32> to vector<8x256xbf16>
    %c0_8 = arith.constant 0 : index
    %c0_9 = arith.constant 0 : index
    %27 = vector.load %arg4[%c0_8, %c0_9] : memref<8x256xbf16, #tpu.memory_space<vmem>>, vector<8x256xbf16>
    tpu.vector_store %arg4[%c0_8, %c0_9], %26 {strides = array<i32>} : memref<8x256xbf16, #tpu.memory_space<vmem>>, vector<8x256xbf16>,
    return
  }
  func.func @transform_0(%arg0: i32, %arg1: i32) -> (i32, i32) {
    %c0_i32 = arith.constant 0 : i32
    %c0_i32_0 = arith.constant 0 : i32
    return %arg0, %c0_i32 : i32, i32
  }
  func.func @transform_1(%arg0: i32, %arg1: i32) -> (i32, i32, i32) {
    %c0_i32 = arith.constant 0 : i32
    %c0_i32_0 = arith.constant 0 : i32
    return %c0_i32, %arg0, %arg1 : i32, i32, i32
  }
  func.func @transform_2(%arg0: i32, %arg1: i32) -> (i32, i32) {
    %c0_i32 = arith.constant 0 : i32
    return %arg0, %arg1 : i32, i32
  }
}

module attributes {stable_mosaic.version = 11 : i64} {
  func.func @_matmul_kernel(%arg0: i32, %arg1: i32, %arg2: i32, %arg3: memref<1x8x4608xbf16, #tpu.memory_space<vmem>>, %arg4: memref<1x4608x256xbf16, #tpu.memory_space<vmem>>, %arg5: memref<1x256xf32, #tpu.memory_space<vmem>>, %arg6: memref<1x8x256xbf16, #tpu.memory_space<vmem>>) attributes {dimension_semantics = [#tpu.dimension_semantics<parallel>, #tpu.dimension_semantics<parallel>, #tpu.dimension_semantics<parallel>], iteration_bounds = array<i64: 1, 2, 1>, scalar_prefetch = 0 : i64, scratch_operands = 0 : i64, tpu.core_type = #tpu.core_type<tc>, window_params = [{transform_indices = @transform_0, window_bounds = array<i64: 1, 8, 4608>}, {transform_indices = @transform_1, window_bounds = array<i64: 1, 4608, 256>}, {transform_indices = @transform_2, window_bounds = array<i64: 1, 256>}, {transform_indices = @transform_3, window_bounds = array<i64: 1, 8, 256>}]} {
    %c0 = arith.constant 0 : index
    %c0_0 = arith.constant 0 : index
    %c0_1 = arith.constant 0 : index
    %0 = vector.load %arg3[%c0, %c0_0, %c0_1] : memref<1x8x4608xbf16, #tpu.memory_space<vmem>>, vector<1x8x4608xbf16>
    %1 = vector.shape_cast %0 : vector<1x8x4608xbf16> to vector<8x4608xbf16>
    %c0_2 = arith.constant 0 : index
    %c0_3 = arith.constant 0 : index
    %c0_4 = arith.constant 0 : index
    %2 = vector.load %arg4[%c0_2, %c0_3, %c0_4] : memref<1x4608x256xbf16, #tpu.memory_space<vmem>>, vector<1x4608x256xbf16>
    %3 = vector.shape_cast %2 : vector<1x4608x256xbf16> to vector<4608x256xbf16>
    %cst = arith.constant dense<0.000000e+00> : vector<8x256xf32>
    %4 = tpu.matmul %1, %3, %cst {dimension_numbers = #tpu.dot_dimension_numbers<[1], [0], [0], [1], [0, 0, 1, 1], [], []>} : vector<8x4608xbf16>, vector<4608x256xbf16>, vector<8x256xf32> -> vector<8x256xf32>
    %c0_5 = arith.constant 0 : index
    %c0_6 = arith.constant 0 : index
    %5 = vector.load %arg5[%c0_5, %c0_6] : memref<1x256xf32, #tpu.memory_space<vmem>>, vector<1x256xf32>
    %6 = vector.broadcast %5 : vector<1x256xf32> to vector<8x256xf32>
    %7 = arith.addf %4, %6 : vector<8x256xf32>
    %cst_7 = arith.constant 0.000000e+00 : f32
    %8 = vector.broadcast %cst_7 : f32 to vector<8x256xf32>
    %9 = arith.maximumf %7, %8 : vector<8x256xf32>
    %10 = arith.truncf %9 : vector<8x256xf32> to vector<8x256xbf16>
    %c0_8 = arith.constant 0 : index
    %c0_9 = arith.constant 0 : index
    %c0_10 = arith.constant 0 : index
    %11 = vector.load %arg6[%c0_8, %c0_9, %c0_10] : memref<1x8x256xbf16, #tpu.memory_space<vmem>>, vector<1x8x256xbf16>
    %12 = vector.shape_cast %11 : vector<1x8x256xbf16> to vector<8x256xbf16>
    %13 = vector.shape_cast %10 : vector<8x256xbf16> to vector<1x8x256xbf16>
    tpu.vector_store %arg6[%c0_8, %c0_9, %c0_10], %13 {strides = array<i32>} : memref<1x8x256xbf16, #tpu.memory_space<vmem>>, vector<1x8x256xbf16>,
    return
  }
  func.func @transform_0(%arg0: i32, %arg1: i32, %arg2: i32) -> (i32, i32, i32) {
    %c0_i32 = arith.constant 0 : i32
    %c0_i32_0 = arith.constant 0 : i32
    return %arg0, %arg2, %c0_i32 : i32, i32, i32
  }
  func.func @transform_1(%arg0: i32, %arg1: i32, %arg2: i32) -> (i32, i32, i32) {
    %c0_i32 = arith.constant 0 : i32
    %c0_i32_0 = arith.constant 0 : i32
    return %arg0, %c0_i32, %arg1 : i32, i32, i32
  }
  func.func @transform_2(%arg0: i32, %arg1: i32, %arg2: i32) -> (i32, i32) {
    %c0_i32 = arith.constant 0 : i32
    %c0_i32_0 = arith.constant 0 : i32
    return %c0_i32, %arg1 : i32, i32
  }
  func.func @transform_3(%arg0: i32, %arg1: i32, %arg2: i32) -> (i32, i32, i32) {
    %c0_i32 = arith.constant 0 : i32
    return %arg0, %arg2, %arg1 : i32, i32, i32
  }
}

module attributes {stable_mosaic.version = 11 : i64} {
  func.func @_matmul_kernel(%arg0: i32, %arg1: i32, %arg2: i32, %arg3: memref<1x8x2048xbf16, #tpu.memory_space<vmem>>, %arg4: memref<1x2048x256xbf16, #tpu.memory_space<vmem>>, %arg5: memref<1x256xf32, #tpu.memory_space<vmem>>, %arg6: memref<1x8x256xbf16, #tpu.memory_space<vmem>>) attributes {dimension_semantics = [#tpu.dimension_semantics<parallel>, #tpu.dimension_semantics<parallel>, #tpu.dimension_semantics<parallel>], iteration_bounds = array<i64: 4, 1, 1>, scalar_prefetch = 0 : i64, scratch_operands = 0 : i64, tpu.core_type = #tpu.core_type<tc>, window_params = [{transform_indices = @transform_0, window_bounds = array<i64: 1, 8, 2048>}, {transform_indices = @transform_1, window_bounds = array<i64: 1, 2048, 256>}, {transform_indices = @transform_2, window_bounds = array<i64: 1, 256>}, {transform_indices = @transform_3, window_bounds = array<i64: 1, 8, 256>}]} {
    %c0 = arith.constant 0 : index
    %c0_0 = arith.constant 0 : index
    %c0_1 = arith.constant 0 : index
    %0 = vector.load %arg3[%c0, %c0_0, %c0_1] : memref<1x8x2048xbf16, #tpu.memory_space<vmem>>, vector<1x8x2048xbf16>
    %1 = vector.shape_cast %0 : vector<1x8x2048xbf16> to vector<8x2048xbf16>
    %c0_2 = arith.constant 0 : index
    %c0_3 = arith.constant 0 : index
    %c0_4 = arith.constant 0 : index
    %2 = vector.load %arg4[%c0_2, %c0_3, %c0_4] : memref<1x2048x256xbf16, #tpu.memory_space<vmem>>, vector<1x2048x256xbf16>
    %3 = vector.shape_cast %2 : vector<1x2048x256xbf16> to vector<2048x256xbf16>
    %cst = arith.constant dense<0.000000e+00> : vector<8x256xf32>
    %4 = tpu.matmul %1, %3, %cst {dimension_numbers = #tpu.dot_dimension_numbers<[1], [0], [0], [1], [0, 0, 1, 1], [], []>} : vector<8x2048xbf16>, vector<2048x256xbf16>, vector<8x256xf32> -> vector<8x256xf32>
    %c0_5 = arith.constant 0 : index
    %c0_6 = arith.constant 0 : index
    %5 = vector.load %arg5[%c0_5, %c0_6] : memref<1x256xf32, #tpu.memory_space<vmem>>, vector<1x256xf32>
    %6 = vector.broadcast %5 : vector<1x256xf32> to vector<8x256xf32>
    %7 = arith.addf %4, %6 : vector<8x256xf32>
    %8 = arith.truncf %7 : vector<8x256xf32> to vector<8x256xbf16>
    %c0_7 = arith.constant 0 : index
    %c0_8 = arith.constant 0 : index
    %c0_9 = arith.constant 0 : index
    %9 = vector.load %arg6[%c0_7, %c0_8, %c0_9] : memref<1x8x256xbf16, #tpu.memory_space<vmem>>, vector<1x8x256xbf16>
    %10 = vector.shape_cast %9 : vector<1x8x256xbf16> to vector<8x256xbf16>
    %11 = vector.shape_cast %8 : vector<8x256xbf16> to vector<1x8x256xbf16>
    tpu.vector_store %arg6[%c0_7, %c0_8, %c0_9], %11 {strides = array<i32>} : memref<1x8x256xbf16, #tpu.memory_space<vmem>>, vector<1x8x256xbf16>,
    return
  }
  func.func @transform_0(%arg0: i32, %arg1: i32, %arg2: i32) -> (i32, i32, i32) {
    %c0_i32 = arith.constant 0 : i32
    %c0_i32_0 = arith.constant 0 : i32
    return %arg0, %arg2, %c0_i32 : i32, i32, i32
  }
  func.func @transform_1(%arg0: i32, %arg1: i32, %arg2: i32) -> (i32, i32, i32) {
    %c0_i32 = arith.constant 0 : i32
    %c0_i32_0 = arith.constant 0 : i32
    return %arg0, %c0_i32, %arg1 : i32, i32, i32
  }
  func.func @transform_2(%arg0: i32, %arg1: i32, %arg2: i32) -> (i32, i32) {
    %c0_i32 = arith.constant 0 : i32
    %c0_i32_0 = arith.constant 0 : i32
    return %c0_i32, %arg1 : i32, i32
  }
  func.func @transform_3(%arg0: i32, %arg1: i32, %arg2: i32) -> (i32, i32, i32) {
    %c0_i32 = arith.constant 0 : i32
    return %arg0, %arg2, %arg1 : i32, i32, i32
  }
}

module attributes {stable_mosaic.version = 11 : i64} {
  func.func @_matmul_kernel(%arg0: i32, %arg1: i32, %arg2: i32, %arg3: memref<1x16x2304xbf16, #tpu.memory_space<vmem>>, %arg4: memref<1x2304x256xbf16, #tpu.memory_space<vmem>>, %arg5: memref<1x256xf32, #tpu.memory_space<vmem>>, %arg6: memref<1x16x256xbf16, #tpu.memory_space<vmem>>, %arg7: memref<1x16x256xbf16, #tpu.memory_space<vmem>>) attributes {dimension_semantics = [#tpu.dimension_semantics<parallel>, #tpu.dimension_semantics<parallel>, #tpu.dimension_semantics<parallel>], iteration_bounds = array<i64: 1, 1, 1>, scalar_prefetch = 0 : i64, scratch_operands = 0 : i64, tpu.core_type = #tpu.core_type<tc>, window_params = [{transform_indices = @transform_0, window_bounds = array<i64: 1, 16, 2304>}, {transform_indices = @transform_1, window_bounds = array<i64: 1, 2304, 256>}, {transform_indices = @transform_2, window_bounds = array<i64: 1, 256>}, {transform_indices = @transform_3, window_bounds = array<i64: 1, 16, 256>}, {transform_indices = @transform_4, window_bounds = array<i64: 1, 16, 256>}]} {
    %c0 = arith.constant 0 : index
    %c0_0 = arith.constant 0 : index
    %c0_1 = arith.constant 0 : index
    %0 = vector.load %arg3[%c0, %c0_0, %c0_1] : memref<1x16x2304xbf16, #tpu.memory_space<vmem>>, vector<1x16x2304xbf16>
    %1 = vector.shape_cast %0 : vector<1x16x2304xbf16> to vector<16x2304xbf16>
    %c0_2 = arith.constant 0 : index
    %c0_3 = arith.constant 0 : index
    %c0_4 = arith.constant 0 : index
    %2 = vector.load %arg4[%c0_2, %c0_3, %c0_4] : memref<1x2304x256xbf16, #tpu.memory_space<vmem>>, vector<1x2304x256xbf16>
    %3 = vector.shape_cast %2 : vector<1x2304x256xbf16> to vector<2304x256xbf16>
    %cst = arith.constant dense<0.000000e+00> : vector<16x256xf32>
    %4 = tpu.matmul %1, %3, %cst {dimension_numbers = #tpu.dot_dimension_numbers<[1], [0], [0], [1], [0, 0, 1, 1], [], []>} : vector<16x2304xbf16>, vector<2304x256xbf16>, vector<16x256xf32> -> vector<16x256xf32>
    %c0_5 = arith.constant 0 : index
    %c0_6 = arith.constant 0 : index
    %5 = vector.load %arg5[%c0_5, %c0_6] : memref<1x256xf32, #tpu.memory_space<vmem>>, vector<1x256xf32>
    %6 = vector.broadcast %5 : vector<1x256xf32> to vector<16x256xf32>
    %7 = arith.addf %4, %6 : vector<16x256xf32>
    %c0_7 = arith.constant 0 : index
    %c0_8 = arith.constant 0 : index
    %c0_9 = arith.constant 0 : index
    %8 = vector.load %arg6[%c0_7, %c0_8, %c0_9] : memref<1x16x256xbf16, #tpu.memory_space<vmem>>, vector<1x16x256xbf16>
    %9 = vector.shape_cast %8 : vector<1x16x256xbf16> to vector<16x256xbf16>
    %10 = arith.extf %9 : vector<16x256xbf16> to vector<16x256xf32>
    %11 = arith.addf %7, %10 : vector<16x256xf32>
    %12 = arith.truncf %11 : vector<16x256xf32> to vector<16x256xbf16>
    %c0_10 = arith.constant 0 : index
    %c0_11 = arith.constant 0 : index
    %c0_12 = arith.constant 0 : index
    %13 = vector.load %arg7[%c0_10, %c0_11, %c0_12] : memref<1x16x256xbf16, #tpu.memory_space<vmem>>, vector<1x16x256xbf16>
    %14 = vector.shape_cast %13 : vector<1x16x256xbf16> to vector<16x256xbf16>
    %15 = vector.shape_cast %12 : vector<16x256xbf16> to vector<1x16x256xbf16>
    tpu.vector_store %arg7[%c0_10, %c0_11, %c0_12], %15 {strides = array<i32>} : memref<1x16x256xbf16, #tpu.memory_space<vmem>>, vector<1x16x256xbf16>,
    return
  }
  func.func @transform_0(%arg0: i32, %arg1: i32, %arg2: i32) -> (i32, i32, i32) {
    %c0_i32 = arith.constant 0 : i32
    %c0_i32_0 = arith.constant 0 : i32
    return %arg0, %arg2, %c0_i32 : i32, i32, i32
  }
  func.func @transform_1(%arg0: i32, %arg1: i32, %arg2: i32) -> (i32, i32, i32) {
    %c0_i32 = arith.constant 0 : i32
    %c0_i32_0 = arith.constant 0 : i32
    return %arg0, %c0_i32, %arg1 : i32, i32, i32
  }
  func.func @transform_2(%arg0: i32, %arg1: i32, %arg2: i32) -> (i32, i32) {
    %c0_i32 = arith.constant 0 : i32
    %c0_i32_0 = arith.constant 0 : i32
    return %c0_i32, %arg1 : i32, i32
  }
  func.func @transform_3(%arg0: i32, %arg1: i32, %arg2: i32) -> (i32, i32, i32) {
    %c0_i32 = arith.constant 0 : i32
    return %arg0, %arg2, %arg1 : i32, i32, i32
  }
  func.func @transform_4(%arg0: i32, %arg1: i32, %arg2: i32) -> (i32, i32, i32) {
    %c0_i32 = arith.constant 0 : i32
    return %arg0, %arg2, %arg1 : i32, i32, i32
  }
}

module attributes {stable_mosaic.version = 11 : i64} {
  func.func @_matmul_kernel(%arg0: i32, %arg1: i32, %arg2: i32, %arg3: memref<1x16x2304xbf16, #tpu.memory_space<vmem>>, %arg4: memref<1x2304x128xbf16, #tpu.memory_space<vmem>>, %arg5: memref<1x128xf32, #tpu.memory_space<vmem>>, %arg6: memref<1x16x128xbf16, #tpu.memory_space<vmem>>) attributes {dimension_semantics = [#tpu.dimension_semantics<parallel>, #tpu.dimension_semantics<parallel>, #tpu.dimension_semantics<parallel>], iteration_bounds = array<i64: 1, 1, 1>, scalar_prefetch = 0 : i64, scratch_operands = 0 : i64, tpu.core_type = #tpu.core_type<tc>, window_params = [{transform_indices = @transform_0, window_bounds = array<i64: 1, 16, 2304>}, {transform_indices = @transform_1, window_bounds = array<i64: 1, 2304, 128>}, {transform_indices = @transform_2, window_bounds = array<i64: 1, 128>}, {transform_indices = @transform_3, window_bounds = array<i64: 1, 16, 128>}]} {
    %c0 = arith.constant 0 : index
    %c0_0 = arith.constant 0 : index
    %c0_1 = arith.constant 0 : index
    %0 = vector.load %arg3[%c0, %c0_0, %c0_1] : memref<1x16x2304xbf16, #tpu.memory_space<vmem>>, vector<1x16x2304xbf16>
    %1 = vector.shape_cast %0 : vector<1x16x2304xbf16> to vector<16x2304xbf16>
    %c0_2 = arith.constant 0 : index
    %c0_3 = arith.constant 0 : index
    %c0_4 = arith.constant 0 : index
    %2 = vector.load %arg4[%c0_2, %c0_3, %c0_4] : memref<1x2304x128xbf16, #tpu.memory_space<vmem>>, vector<1x2304x128xbf16>
    %3 = vector.shape_cast %2 : vector<1x2304x128xbf16> to vector<2304x128xbf16>
    %cst = arith.constant dense<0.000000e+00> : vector<16x128xf32>
    %4 = tpu.matmul %1, %3, %cst {dimension_numbers = #tpu.dot_dimension_numbers<[1], [0], [0], [1], [0, 0, 1, 1], [], []>} : vector<16x2304xbf16>, vector<2304x128xbf16>, vector<16x128xf32> -> vector<16x128xf32>
    %c0_5 = arith.constant 0 : index
    %c0_6 = arith.constant 0 : index
    %5 = vector.load %arg5[%c0_5, %c0_6] : memref<1x128xf32, #tpu.memory_space<vmem>>, vector<1x128xf32>
    %6 = vector.broadcast %5 : vector<1x128xf32> to vector<16x128xf32>
    %7 = arith.addf %4, %6 : vector<16x128xf32>
    %cst_7 = arith.constant 0.000000e+00 : f32
    %8 = vector.broadcast %cst_7 : f32 to vector<16x128xf32>
    %9 = arith.maximumf %7, %8 : vector<16x128xf32>
    %10 = arith.truncf %9 : vector<16x128xf32> to vector<16x128xbf16>
    %c0_8 = arith.constant 0 : index
    %c0_9 = arith.constant 0 : index
    %c0_10 = arith.constant 0 : index
    %11 = vector.load %arg6[%c0_8, %c0_9, %c0_10] : memref<1x16x128xbf16, #tpu.memory_space<vmem>>, vector<1x16x128xbf16>
    %12 = vector.shape_cast %11 : vector<1x16x128xbf16> to vector<16x128xbf16>
    %13 = vector.shape_cast %10 : vector<16x128xbf16> to vector<1x16x128xbf16>
    tpu.vector_store %arg6[%c0_8, %c0_9, %c0_10], %13 {strides = array<i32>} : memref<1x16x128xbf16, #tpu.memory_space<vmem>>, vector<1x16x128xbf16>,
    return
  }
  func.func @transform_0(%arg0: i32, %arg1: i32, %arg2: i32) -> (i32, i32, i32) {
    %c0_i32 = arith.constant 0 : i32
    %c0_i32_0 = arith.constant 0 : i32
    return %arg0, %arg2, %c0_i32 : i32, i32, i32
  }
  func.func @transform_1(%arg0: i32, %arg1: i32, %arg2: i32) -> (i32, i32, i32) {
    %c0_i32 = arith.constant 0 : i32
    %c0_i32_0 = arith.constant 0 : i32
    return %arg0, %c0_i32, %arg1 : i32, i32, i32
  }
  func.func @transform_2(%arg0: i32, %arg1: i32, %arg2: i32) -> (i32, i32) {
    %c0_i32 = arith.constant 0 : i32
    %c0_i32_0 = arith.constant 0 : i32
    return %c0_i32, %arg1 : i32, i32
  }
  func.func @transform_3(%arg0: i32, %arg1: i32, %arg2: i32) -> (i32, i32, i32) {
    %c0_i32 = arith.constant 0 : i32
    return %arg0, %arg2, %arg1 : i32, i32, i32
  }
}

module attributes {stable_mosaic.version = 11 : i64} {
  func.func @_matmul_kernel(%arg0: i32, %arg1: i32, %arg2: i32, %arg3: memref<1x8x2304xbf16, #tpu.memory_space<vmem>>, %arg4: memref<1x2304x128xbf16, #tpu.memory_space<vmem>>, %arg5: memref<1x128xf32, #tpu.memory_space<vmem>>, %arg6: memref<1x8x128xbf16, #tpu.memory_space<vmem>>) attributes {dimension_semantics = [#tpu.dimension_semantics<parallel>, #tpu.dimension_semantics<parallel>, #tpu.dimension_semantics<parallel>], iteration_bounds = array<i64: 1, 1, 1>, scalar_prefetch = 0 : i64, scratch_operands = 0 : i64, tpu.core_type = #tpu.core_type<tc>, window_params = [{transform_indices = @transform_0, window_bounds = array<i64: 1, 8, 2304>}, {transform_indices = @transform_1, window_bounds = array<i64: 1, 2304, 128>}, {transform_indices = @transform_2, window_bounds = array<i64: 1, 128>}, {transform_indices = @transform_3, window_bounds = array<i64: 1, 8, 128>}]} {
    %c0 = arith.constant 0 : index
    %c0_0 = arith.constant 0 : index
    %c0_1 = arith.constant 0 : index
    %0 = vector.load %arg3[%c0, %c0_0, %c0_1] : memref<1x8x2304xbf16, #tpu.memory_space<vmem>>, vector<1x8x2304xbf16>
    %1 = vector.shape_cast %0 : vector<1x8x2304xbf16> to vector<8x2304xbf16>
    %c0_2 = arith.constant 0 : index
    %c0_3 = arith.constant 0 : index
    %c0_4 = arith.constant 0 : index
    %2 = vector.load %arg4[%c0_2, %c0_3, %c0_4] : memref<1x2304x128xbf16, #tpu.memory_space<vmem>>, vector<1x2304x128xbf16>
    %3 = vector.shape_cast %2 : vector<1x2304x128xbf16> to vector<2304x128xbf16>
    %cst = arith.constant dense<0.000000e+00> : vector<8x128xf32>
    %4 = tpu.matmul %1, %3, %cst {dimension_numbers = #tpu.dot_dimension_numbers<[1], [0], [0], [1], [0, 0, 1, 1], [], []>} : vector<8x2304xbf16>, vector<2304x128xbf16>, vector<8x128xf32> -> vector<8x128xf32>
    %c0_5 = arith.constant 0 : index
    %c0_6 = arith.constant 0 : index
    %5 = vector.load %arg5[%c0_5, %c0_6] : memref<1x128xf32, #tpu.memory_space<vmem>>, vector<1x128xf32>
    %6 = vector.broadcast %5 : vector<1x128xf32> to vector<8x128xf32>
    %7 = arith.addf %4, %6 : vector<8x128xf32>
    %cst_7 = arith.constant 0.000000e+00 : f32
    %8 = vector.broadcast %cst_7 : f32 to vector<8x128xf32>
    %9 = arith.maximumf %7, %8 : vector<8x128xf32>
    %10 = arith.truncf %9 : vector<8x128xf32> to vector<8x128xbf16>
    %c0_8 = arith.constant 0 : index
    %c0_9 = arith.constant 0 : index
    %c0_10 = arith.constant 0 : index
    %11 = vector.load %arg6[%c0_8, %c0_9, %c0_10] : memref<1x8x128xbf16, #tpu.memory_space<vmem>>, vector<1x8x128xbf16>
    %12 = vector.shape_cast %11 : vector<1x8x128xbf16> to vector<8x128xbf16>
    %13 = vector.shape_cast %10 : vector<8x128xbf16> to vector<1x8x128xbf16>
    tpu.vector_store %arg6[%c0_8, %c0_9, %c0_10], %13 {strides = array<i32>} : memref<1x8x128xbf16, #tpu.memory_space<vmem>>, vector<1x8x128xbf16>,
    return
  }
  func.func @transform_0(%arg0: i32, %arg1: i32, %arg2: i32) -> (i32, i32, i32) {
    %c0_i32 = arith.constant 0 : i32
    %c0_i32_0 = arith.constant 0 : i32
    return %arg0, %arg2, %c0_i32 : i32, i32, i32
  }
  func.func @transform_1(%arg0: i32, %arg1: i32, %arg2: i32) -> (i32, i32, i32) {
    %c0_i32 = arith.constant 0 : i32
    %c0_i32_0 = arith.constant 0 : i32
    return %arg0, %c0_i32, %arg1 : i32, i32, i32
  }
  func.func @transform_2(%arg0: i32, %arg1: i32, %arg2: i32) -> (i32, i32) {
    %c0_i32 = arith.constant 0 : i32
    %c0_i32_0 = arith.constant 0 : i32
    return %c0_i32, %arg1 : i32, i32
  }
  func.func @transform_3(%arg0: i32, %arg1: i32, %arg2: i32) -> (i32, i32, i32) {
    %c0_i32 = arith.constant 0 : i32
    return %arg0, %arg2, %arg1 : i32, i32, i32
  }
}

module attributes {stable_mosaic.version = 11 : i64} {
  func.func @_matmul_kernel(%arg0: i32, %arg1: i32, %arg2: i32, %arg3: memref<1x16x2304xbf16, #tpu.memory_space<vmem>>, %arg4: memref<1x2304x256xbf16, #tpu.memory_space<vmem>>, %arg5: memref<1x256xf32, #tpu.memory_space<vmem>>, %arg6: memref<1x16x256xbf16, #tpu.memory_space<vmem>>) attributes {dimension_semantics = [#tpu.dimension_semantics<parallel>, #tpu.dimension_semantics<parallel>, #tpu.dimension_semantics<parallel>], iteration_bounds = array<i64: 1, 1, 1>, scalar_prefetch = 0 : i64, scratch_operands = 0 : i64, tpu.core_type = #tpu.core_type<tc>, window_params = [{transform_indices = @transform_0, window_bounds = array<i64: 1, 16, 2304>}, {transform_indices = @transform_1, window_bounds = array<i64: 1, 2304, 256>}, {transform_indices = @transform_2, window_bounds = array<i64: 1, 256>}, {transform_indices = @transform_3, window_bounds = array<i64: 1, 16, 256>}]} {
    %c0 = arith.constant 0 : index
    %c0_0 = arith.constant 0 : index
    %c0_1 = arith.constant 0 : index
    %0 = vector.load %arg3[%c0, %c0_0, %c0_1] : memref<1x16x2304xbf16, #tpu.memory_space<vmem>>, vector<1x16x2304xbf16>
    %1 = vector.shape_cast %0 : vector<1x16x2304xbf16> to vector<16x2304xbf16>
    %cst = arith.constant 0.000000e+00 : bf16
    %2 = vector.broadcast %cst : bf16 to vector<16x2304xbf16>
    %3 = arith.maximumf %1, %2 : vector<16x2304xbf16>
    %c0_2 = arith.constant 0 : index
    %c0_3 = arith.constant 0 : index
    %c0_4 = arith.constant 0 : index
    %4 = vector.load %arg4[%c0_2, %c0_3, %c0_4] : memref<1x2304x256xbf16, #tpu.memory_space<vmem>>, vector<1x2304x256xbf16>
    %5 = vector.shape_cast %4 : vector<1x2304x256xbf16> to vector<2304x256xbf16>
    %cst_5 = arith.constant dense<0.000000e+00> : vector<16x256xf32>
    %6 = tpu.matmul %3, %5, %cst_5 {dimension_numbers = #tpu.dot_dimension_numbers<[1], [0], [0], [1], [0, 0, 1, 1], [], []>} : vector<16x2304xbf16>, vector<2304x256xbf16>, vector<16x256xf32> -> vector<16x256xf32>
    %c0_6 = arith.constant 0 : index
    %c0_7 = arith.constant 0 : index
    %7 = vector.load %arg5[%c0_6, %c0_7] : memref<1x256xf32, #tpu.memory_space<vmem>>, vector<1x256xf32>
    %8 = vector.broadcast %7 : vector<1x256xf32> to vector<16x256xf32>
    %9 = arith.addf %6, %8 : vector<16x256xf32>
    %cst_8 = arith.constant 0.000000e+00 : f32
    %10 = vector.broadcast %cst_8 : f32 to vector<16x256xf32>
    %11 = arith.maximumf %9, %10 : vector<16x256xf32>
    %12 = arith.truncf %11 : vector<16x256xf32> to vector<16x256xbf16>
    %c0_9 = arith.constant 0 : index
    %c0_10 = arith.constant 0 : index
    %c0_11 = arith.constant 0 : index
    %13 = vector.load %arg6[%c0_9, %c0_10, %c0_11] : memref<1x16x256xbf16, #tpu.memory_space<vmem>>, vector<1x16x256xbf16>
    %14 = vector.shape_cast %13 : vector<1x16x256xbf16> to vector<16x256xbf16>
    %15 = vector.shape_cast %12 : vector<16x256xbf16> to vector<1x16x256xbf16>
    tpu.vector_store %arg6[%c0_9, %c0_10, %c0_11], %15 {strides = array<i32>} : memref<1x16x256xbf16, #tpu.memory_space<vmem>>, vector<1x16x256xbf16>,
    return
  }
  func.func @transform_0(%arg0: i32, %arg1: i32, %arg2: i32) -> (i32, i32, i32) {
    %c0_i32 = arith.constant 0 : i32
    %c0_i32_0 = arith.constant 0 : i32
    return %arg0, %arg2, %c0_i32 : i32, i32, i32
  }
  func.func @transform_1(%arg0: i32, %arg1: i32, %arg2: i32) -> (i32, i32, i32) {
    %c0_i32 = arith.constant 0 : i32
    %c0_i32_0 = arith.constant 0 : i32
    return %arg0, %c0_i32, %arg1 : i32, i32, i32
  }
  func.func @transform_2(%arg0: i32, %arg1: i32, %arg2: i32) -> (i32, i32) {
    %c0_i32 = arith.constant 0 : i32
    %c0_i32_0 = arith.constant 0 : i32
    return %c0_i32, %arg1 : i32, i32
  }
  func.func @transform_3(%arg0: i32, %arg1: i32, %arg2: i32) -> (i32, i32, i32) {
    %c0_i32 = arith.constant 0 : i32
    return %arg0, %arg2, %arg1 : i32, i32, i32
  }
}

module attributes {stable_mosaic.version = 11 : i64} {
  func.func @_matmul_kernel(%arg0: i32, %arg1: i32, %arg2: i32, %arg3: memref<1x16x2304xbf16, #tpu.memory_space<vmem>>, %arg4: memref<1x2304x256xbf16, #tpu.memory_space<vmem>>, %arg5: memref<1x256xf32, #tpu.memory_space<vmem>>, %arg6: memref<1x16x256xbf16, #tpu.memory_space<vmem>>) attributes {dimension_semantics = [#tpu.dimension_semantics<parallel>, #tpu.dimension_semantics<parallel>, #tpu.dimension_semantics<parallel>], iteration_bounds = array<i64: 1, 1, 1>, scalar_prefetch = 0 : i64, scratch_operands = 0 : i64, tpu.core_type = #tpu.core_type<tc>, window_params = [{transform_indices = @transform_0, window_bounds = array<i64: 1, 16, 2304>}, {transform_indices = @transform_1, window_bounds = array<i64: 1, 2304, 256>}, {transform_indices = @transform_2, window_bounds = array<i64: 1, 256>}, {transform_indices = @transform_3, window_bounds = array<i64: 1, 16, 256>}]} {
    %c0 = arith.constant 0 : index
    %c0_0 = arith.constant 0 : index
    %c0_1 = arith.constant 0 : index
    %0 = vector.load %arg3[%c0, %c0_0, %c0_1] : memref<1x16x2304xbf16, #tpu.memory_space<vmem>>, vector<1x16x2304xbf16>
    %1 = vector.shape_cast %0 : vector<1x16x2304xbf16> to vector<16x2304xbf16>
    %c0_2 = arith.constant 0 : index
    %c0_3 = arith.constant 0 : index
    %c0_4 = arith.constant 0 : index
    %2 = vector.load %arg4[%c0_2, %c0_3, %c0_4] : memref<1x2304x256xbf16, #tpu.memory_space<vmem>>, vector<1x2304x256xbf16>
    %3 = vector.shape_cast %2 : vector<1x2304x256xbf16> to vector<2304x256xbf16>
    %cst = arith.constant dense<0.000000e+00> : vector<16x256xf32>
    %4 = tpu.matmul %1, %3, %cst {dimension_numbers = #tpu.dot_dimension_numbers<[1], [0], [0], [1], [0, 0, 1, 1], [], []>} : vector<16x2304xbf16>, vector<2304x256xbf16>, vector<16x256xf32> -> vector<16x256xf32>
    %c0_5 = arith.constant 0 : index
    %c0_6 = arith.constant 0 : index
    %5 = vector.load %arg5[%c0_5, %c0_6] : memref<1x256xf32, #tpu.memory_space<vmem>>, vector<1x256xf32>
    %6 = vector.broadcast %5 : vector<1x256xf32> to vector<16x256xf32>
    %7 = arith.addf %4, %6 : vector<16x256xf32>
    %cst_7 = arith.constant 0.000000e+00 : f32
    %8 = vector.broadcast %cst_7 : f32 to vector<16x256xf32>
    %9 = arith.maximumf %7, %8 : vector<16x256xf32>
    %10 = arith.truncf %9 : vector<16x256xf32> to vector<16x256xbf16>
    %c0_8 = arith.constant 0 : index
    %c0_9 = arith.constant 0 : index
    %c0_10 = arith.constant 0 : index
    %11 = vector.load %arg6[%c0_8, %c0_9, %c0_10] : memref<1x16x256xbf16, #tpu.memory_space<vmem>>, vector<1x16x256xbf16>
    %12 = vector.shape_cast %11 : vector<1x16x256xbf16> to vector<16x256xbf16>
    %13 = vector.shape_cast %10 : vector<16x256xbf16> to vector<1x16x256xbf16>
    tpu.vector_store %arg6[%c0_8, %c0_9, %c0_10], %13 {strides = array<i32>} : memref<1x16x256xbf16, #tpu.memory_space<vmem>>, vector<1x16x256xbf16>,
    return
  }
  func.func @transform_0(%arg0: i32, %arg1: i32, %arg2: i32) -> (i32, i32, i32) {
    %c0_i32 = arith.constant 0 : i32
    %c0_i32_0 = arith.constant 0 : i32
    return %arg0, %arg2, %c0_i32 : i32, i32, i32
  }
  func.func @transform_1(%arg0: i32, %arg1: i32, %arg2: i32) -> (i32, i32, i32) {
    %c0_i32 = arith.constant 0 : i32
    %c0_i32_0 = arith.constant 0 : i32
    return %arg0, %c0_i32, %arg1 : i32, i32, i32
  }
  func.func @transform_2(%arg0: i32, %arg1: i32, %arg2: i32) -> (i32, i32) {
    %c0_i32 = arith.constant 0 : i32
    %c0_i32_0 = arith.constant 0 : i32
    return %c0_i32, %arg1 : i32, i32
  }
  func.func @transform_3(%arg0: i32, %arg1: i32, %arg2: i32) -> (i32, i32, i32) {
    %c0_i32 = arith.constant 0 : i32
    return %arg0, %arg2, %arg1 : i32, i32, i32
  }
}

module attributes {stable_mosaic.version = 11 : i64} {
  func.func @_matmul_kernel(%arg0: i32, %arg1: i32, %arg2: i32, %arg3: memref<1x16x144xbf16, #tpu.memory_space<vmem>>, %arg4: memref<1x144x128xbf16, #tpu.memory_space<vmem>>, %arg5: memref<1x128xf32, #tpu.memory_space<vmem>>, %arg6: memref<1x16x128xbf16, #tpu.memory_space<vmem>>) attributes {dimension_semantics = [#tpu.dimension_semantics<parallel>, #tpu.dimension_semantics<parallel>, #tpu.dimension_semantics<parallel>], iteration_bounds = array<i64: 1, 1, 1>, scalar_prefetch = 0 : i64, scratch_operands = 0 : i64, tpu.core_type = #tpu.core_type<tc>, window_params = [{transform_indices = @transform_0, window_bounds = array<i64: 1, 16, 144>}, {transform_indices = @transform_1, window_bounds = array<i64: 1, 144, 128>}, {transform_indices = @transform_2, window_bounds = array<i64: 1, 128>}, {transform_indices = @transform_3, window_bounds = array<i64: 1, 16, 128>}]} {
    %c0 = arith.constant 0 : index
    %c0_0 = arith.constant 0 : index
    %c0_1 = arith.constant 0 : index
    %0 = vector.load %arg3[%c0, %c0_0, %c0_1] : memref<1x16x144xbf16, #tpu.memory_space<vmem>>, vector<1x16x144xbf16>
    %1 = vector.shape_cast %0 : vector<1x16x144xbf16> to vector<16x144xbf16>
    %c0_2 = arith.constant 0 : index
    %c0_3 = arith.constant 0 : index
    %c0_4 = arith.constant 0 : index
    %2 = vector.load %arg4[%c0_2, %c0_3, %c0_4] : memref<1x144x128xbf16, #tpu.memory_space<vmem>>, vector<1x144x128xbf16>
    %3 = vector.shape_cast %2 : vector<1x144x128xbf16> to vector<144x128xbf16>
    %cst = arith.constant dense<0.000000e+00> : vector<16x128xf32>
    %4 = tpu.matmul %1, %3, %cst {dimension_numbers = #tpu.dot_dimension_numbers<[1], [0], [0], [1], [0, 0, 1, 1], [], []>} : vector<16x144xbf16>, vector<144x128xbf16>, vector<16x128xf32> -> vector<16x128xf32>
    %c0_5 = arith.constant 0 : index
    %c0_6 = arith.constant 0 : index
    %5 = vector.load %arg5[%c0_5, %c0_6] : memref<1x128xf32, #tpu.memory_space<vmem>>, vector<1x128xf32>
    %6 = vector.broadcast %5 : vector<1x128xf32> to vector<16x128xf32>
    %7 = arith.addf %4, %6 : vector<16x128xf32>
    %cst_7 = arith.constant 0.000000e+00 : f32
    %8 = vector.broadcast %cst_7 : f32 to vector<16x128xf32>
    %9 = arith.maximumf %7, %8 : vector<16x128xf32>
    %10 = arith.truncf %9 : vector<16x128xf32> to vector<16x128xbf16>
    %c0_8 = arith.constant 0 : index
    %c0_9 = arith.constant 0 : index
    %c0_10 = arith.constant 0 : index
    %11 = vector.load %arg6[%c0_8, %c0_9, %c0_10] : memref<1x16x128xbf16, #tpu.memory_space<vmem>>, vector<1x16x128xbf16>
    %12 = vector.shape_cast %11 : vector<1x16x128xbf16> to vector<16x128xbf16>
    %13 = vector.shape_cast %10 : vector<16x128xbf16> to vector<1x16x128xbf16>
    tpu.vector_store %arg6[%c0_8, %c0_9, %c0_10], %13 {strides = array<i32>} : memref<1x16x128xbf16, #tpu.memory_space<vmem>>, vector<1x16x128xbf16>,
    return
  }
  func.func @transform_0(%arg0: i32, %arg1: i32, %arg2: i32) -> (i32, i32, i32) {
    %c0_i32 = arith.constant 0 : i32
    %c0_i32_0 = arith.constant 0 : i32
    return %arg0, %arg2, %c0_i32 : i32, i32, i32
  }
  func.func @transform_1(%arg0: i32, %arg1: i32, %arg2: i32) -> (i32, i32, i32) {
    %c0_i32 = arith.constant 0 : i32
    %c0_i32_0 = arith.constant 0 : i32
    return %arg0, %c0_i32, %arg1 : i32, i32, i32
  }
  func.func @transform_2(%arg0: i32, %arg1: i32, %arg2: i32) -> (i32, i32) {
    %c0_i32 = arith.constant 0 : i32
    %c0_i32_0 = arith.constant 0 : i32
    return %c0_i32, %arg1 : i32, i32
  }
  func.func @transform_3(%arg0: i32, %arg1: i32, %arg2: i32) -> (i32, i32, i32) {
    %c0_i32 = arith.constant 0 : i32
    return %arg0, %arg2, %arg1 : i32, i32, i32
  }
}

module attributes {stable_mosaic.version = 11 : i64} {
  func.func @_matmul_kernel(%arg0: i32, %arg1: i32, %arg2: i32, %arg3: memref<1x16x1024xbf16, #tpu.memory_space<vmem>>, %arg4: memref<1x1024x128xbf16, #tpu.memory_space<vmem>>, %arg5: memref<1x128xf32, #tpu.memory_space<vmem>>, %arg6: memref<1x16x128xbf16, #tpu.memory_space<vmem>>) attributes {dimension_semantics = [#tpu.dimension_semantics<parallel>, #tpu.dimension_semantics<parallel>, #tpu.dimension_semantics<parallel>], iteration_bounds = array<i64: 4, 1, 1>, scalar_prefetch = 0 : i64, scratch_operands = 0 : i64, tpu.core_type = #tpu.core_type<tc>, window_params = [{transform_indices = @transform_0, window_bounds = array<i64: 1, 16, 1024>}, {transform_indices = @transform_1, window_bounds = array<i64: 1, 1024, 128>}, {transform_indices = @transform_2, window_bounds = array<i64: 1, 128>}, {transform_indices = @transform_3, window_bounds = array<i64: 1, 16, 128>}]} {
    %c0 = arith.constant 0 : index
    %c0_0 = arith.constant 0 : index
    %c0_1 = arith.constant 0 : index
    %0 = vector.load %arg3[%c0, %c0_0, %c0_1] : memref<1x16x1024xbf16, #tpu.memory_space<vmem>>, vector<1x16x1024xbf16>
    %1 = vector.shape_cast %0 : vector<1x16x1024xbf16> to vector<16x1024xbf16>
    %c0_2 = arith.constant 0 : index
    %c0_3 = arith.constant 0 : index
    %c0_4 = arith.constant 0 : index
    %2 = vector.load %arg4[%c0_2, %c0_3, %c0_4] : memref<1x1024x128xbf16, #tpu.memory_space<vmem>>, vector<1x1024x128xbf16>
    %3 = vector.shape_cast %2 : vector<1x1024x128xbf16> to vector<1024x128xbf16>
    %cst = arith.constant dense<0.000000e+00> : vector<16x128xf32>
    %4 = tpu.matmul %1, %3, %cst {dimension_numbers = #tpu.dot_dimension_numbers<[1], [0], [0], [1], [0, 0, 1, 1], [], []>} : vector<16x1024xbf16>, vector<1024x128xbf16>, vector<16x128xf32> -> vector<16x128xf32>
    %c0_5 = arith.constant 0 : index
    %c0_6 = arith.constant 0 : index
    %5 = vector.load %arg5[%c0_5, %c0_6] : memref<1x128xf32, #tpu.memory_space<vmem>>, vector<1x128xf32>
    %6 = vector.broadcast %5 : vector<1x128xf32> to vector<16x128xf32>
    %7 = arith.addf %4, %6 : vector<16x128xf32>
    %8 = arith.truncf %7 : vector<16x128xf32> to vector<16x128xbf16>
    %c0_7 = arith.constant 0 : index
    %c0_8 = arith.constant 0 : index
    %c0_9 = arith.constant 0 : index
    %9 = vector.load %arg6[%c0_7, %c0_8, %c0_9] : memref<1x16x128xbf16, #tpu.memory_space<vmem>>, vector<1x16x128xbf16>
    %10 = vector.shape_cast %9 : vector<1x16x128xbf16> to vector<16x128xbf16>
    %11 = vector.shape_cast %8 : vector<16x128xbf16> to vector<1x16x128xbf16>
    tpu.vector_store %arg6[%c0_7, %c0_8, %c0_9], %11 {strides = array<i32>} : memref<1x16x128xbf16, #tpu.memory_space<vmem>>, vector<1x16x128xbf16>,
    return
  }
  func.func @transform_0(%arg0: i32, %arg1: i32, %arg2: i32) -> (i32, i32, i32) {
    %c0_i32 = arith.constant 0 : i32
    %c0_i32_0 = arith.constant 0 : i32
    return %arg0, %arg2, %c0_i32 : i32, i32, i32
  }
  func.func @transform_1(%arg0: i32, %arg1: i32, %arg2: i32) -> (i32, i32, i32) {
    %c0_i32 = arith.constant 0 : i32
    %c0_i32_0 = arith.constant 0 : i32
    return %arg0, %c0_i32, %arg1 : i32, i32, i32
  }
  func.func @transform_2(%arg0: i32, %arg1: i32, %arg2: i32) -> (i32, i32) {
    %c0_i32 = arith.constant 0 : i32
    %c0_i32_0 = arith.constant 0 : i32
    return %c0_i32, %arg1 : i32, i32
  }
  func.func @transform_3(%arg0: i32, %arg1: i32, %arg2: i32) -> (i32, i32, i32) {
    %c0_i32 = arith.constant 0 : i32
    return %arg0, %arg2, %arg1 : i32, i32, i32
  }
}

module attributes {stable_mosaic.version = 11 : i64} {
  func.func @_matmul_kernel(%arg0: i32, %arg1: i32, %arg2: i32, %arg3: memref<1x64x1152xbf16, #tpu.memory_space<vmem>>, %arg4: memref<1x1152x128xbf16, #tpu.memory_space<vmem>>, %arg5: memref<1x128xf32, #tpu.memory_space<vmem>>, %arg6: memref<1x64x128xbf16, #tpu.memory_space<vmem>>, %arg7: memref<1x64x128xbf16, #tpu.memory_space<vmem>>) attributes {dimension_semantics = [#tpu.dimension_semantics<parallel>, #tpu.dimension_semantics<parallel>, #tpu.dimension_semantics<parallel>], iteration_bounds = array<i64: 1, 1, 1>, scalar_prefetch = 0 : i64, scratch_operands = 0 : i64, tpu.core_type = #tpu.core_type<tc>, window_params = [{transform_indices = @transform_0, window_bounds = array<i64: 1, 64, 1152>}, {transform_indices = @transform_1, window_bounds = array<i64: 1, 1152, 128>}, {transform_indices = @transform_2, window_bounds = array<i64: 1, 128>}, {transform_indices = @transform_3, window_bounds = array<i64: 1, 64, 128>}, {transform_indices = @transform_4, window_bounds = array<i64: 1, 64, 128>}]} {
    %c0 = arith.constant 0 : index
    %c0_0 = arith.constant 0 : index
    %c0_1 = arith.constant 0 : index
    %0 = vector.load %arg3[%c0, %c0_0, %c0_1] : memref<1x64x1152xbf16, #tpu.memory_space<vmem>>, vector<1x64x1152xbf16>
    %1 = vector.shape_cast %0 : vector<1x64x1152xbf16> to vector<64x1152xbf16>
    %c0_2 = arith.constant 0 : index
    %c0_3 = arith.constant 0 : index
    %c0_4 = arith.constant 0 : index
    %2 = vector.load %arg4[%c0_2, %c0_3, %c0_4] : memref<1x1152x128xbf16, #tpu.memory_space<vmem>>, vector<1x1152x128xbf16>
    %3 = vector.shape_cast %2 : vector<1x1152x128xbf16> to vector<1152x128xbf16>
    %cst = arith.constant dense<0.000000e+00> : vector<64x128xf32>
    %4 = tpu.matmul %1, %3, %cst {dimension_numbers = #tpu.dot_dimension_numbers<[1], [0], [0], [1], [0, 0, 1, 1], [], []>} : vector<64x1152xbf16>, vector<1152x128xbf16>, vector<64x128xf32> -> vector<64x128xf32>
    %c0_5 = arith.constant 0 : index
    %c0_6 = arith.constant 0 : index
    %5 = vector.load %arg5[%c0_5, %c0_6] : memref<1x128xf32, #tpu.memory_space<vmem>>, vector<1x128xf32>
    %6 = vector.broadcast %5 : vector<1x128xf32> to vector<64x128xf32>
    %7 = arith.addf %4, %6 : vector<64x128xf32>
    %c0_7 = arith.constant 0 : index
    %c0_8 = arith.constant 0 : index
    %c0_9 = arith.constant 0 : index
    %8 = vector.load %arg6[%c0_7, %c0_8, %c0_9] : memref<1x64x128xbf16, #tpu.memory_space<vmem>>, vector<1x64x128xbf16>
    %9 = vector.shape_cast %8 : vector<1x64x128xbf16> to vector<64x128xbf16>
    %10 = arith.extf %9 : vector<64x128xbf16> to vector<64x128xf32>
    %11 = arith.addf %7, %10 : vector<64x128xf32>
    %12 = arith.truncf %11 : vector<64x128xf32> to vector<64x128xbf16>
    %c0_10 = arith.constant 0 : index
    %c0_11 = arith.constant 0 : index
    %c0_12 = arith.constant 0 : index
    %13 = vector.load %arg7[%c0_10, %c0_11, %c0_12] : memref<1x64x128xbf16, #tpu.memory_space<vmem>>, vector<1x64x128xbf16>
    %14 = vector.shape_cast %13 : vector<1x64x128xbf16> to vector<64x128xbf16>
    %15 = vector.shape_cast %12 : vector<64x128xbf16> to vector<1x64x128xbf16>
    tpu.vector_store %arg7[%c0_10, %c0_11, %c0_12], %15 {strides = array<i32>} : memref<1x64x128xbf16, #tpu.memory_space<vmem>>, vector<1x64x128xbf16>,
    return
  }
  func.func @transform_0(%arg0: i32, %arg1: i32, %arg2: i32) -> (i32, i32, i32) {
    %c0_i32 = arith.constant 0 : i32
    %c0_i32_0 = arith.constant 0 : i32
    return %arg0, %arg2, %c0_i32 : i32, i32, i32
  }
  func.func @transform_1(%arg0: i32, %arg1: i32, %arg2: i32) -> (i32, i32, i32) {
    %c0_i32 = arith.constant 0 : i32
    %c0_i32_0 = arith.constant 0 : i32
    return %arg0, %c0_i32, %arg1 : i32, i32, i32
  }
  func.func @transform_2(%arg0: i32, %arg1: i32, %arg2: i32) -> (i32, i32) {
    %c0_i32 = arith.constant 0 : i32
    %c0_i32_0 = arith.constant 0 : i32
    return %c0_i32, %arg1 : i32, i32
  }
  func.func @transform_3(%arg0: i32, %arg1: i32, %arg2: i32) -> (i32, i32, i32) {
    %c0_i32 = arith.constant 0 : i32
    return %arg0, %arg2, %arg1 : i32, i32, i32
  }
  func.func @transform_4(%arg0: i32, %arg1: i32, %arg2: i32) -> (i32, i32, i32) {
    %c0_i32 = arith.constant 0 : i32
    return %arg0, %arg2, %arg1 : i32, i32, i32
  }
}

module attributes {stable_mosaic.version = 11 : i64} {
  func.func @_matmul_kernel(%arg0: i32, %arg1: i32, %arg2: i32, %arg3: memref<1x64x1152xbf16, #tpu.memory_space<vmem>>, %arg4: memref<1x1152x128xbf16, #tpu.memory_space<vmem>>, %arg5: memref<1x128xf32, #tpu.memory_space<vmem>>, %arg6: memref<1x64x128xbf16, #tpu.memory_space<vmem>>) attributes {dimension_semantics = [#tpu.dimension_semantics<parallel>, #tpu.dimension_semantics<parallel>, #tpu.dimension_semantics<parallel>], iteration_bounds = array<i64: 1, 1, 1>, scalar_prefetch = 0 : i64, scratch_operands = 0 : i64, tpu.core_type = #tpu.core_type<tc>, window_params = [{transform_indices = @transform_0, window_bounds = array<i64: 1, 64, 1152>}, {transform_indices = @transform_1, window_bounds = array<i64: 1, 1152, 128>}, {transform_indices = @transform_2, window_bounds = array<i64: 1, 128>}, {transform_indices = @transform_3, window_bounds = array<i64: 1, 64, 128>}]} {
    %c0 = arith.constant 0 : index
    %c0_0 = arith.constant 0 : index
    %c0_1 = arith.constant 0 : index
    %0 = vector.load %arg3[%c0, %c0_0, %c0_1] : memref<1x64x1152xbf16, #tpu.memory_space<vmem>>, vector<1x64x1152xbf16>
    %1 = vector.shape_cast %0 : vector<1x64x1152xbf16> to vector<64x1152xbf16>
    %c0_2 = arith.constant 0 : index
    %c0_3 = arith.constant 0 : index
    %c0_4 = arith.constant 0 : index
    %2 = vector.load %arg4[%c0_2, %c0_3, %c0_4] : memref<1x1152x128xbf16, #tpu.memory_space<vmem>>, vector<1x1152x128xbf16>
    %3 = vector.shape_cast %2 : vector<1x1152x128xbf16> to vector<1152x128xbf16>
    %cst = arith.constant dense<0.000000e+00> : vector<64x128xf32>
    %4 = tpu.matmul %1, %3, %cst {dimension_numbers = #tpu.dot_dimension_numbers<[1], [0], [0], [1], [0, 0, 1, 1], [], []>} : vector<64x1152xbf16>, vector<1152x128xbf16>, vector<64x128xf32> -> vector<64x128xf32>
    %c0_5 = arith.constant 0 : index
    %c0_6 = arith.constant 0 : index
    %5 = vector.load %arg5[%c0_5, %c0_6] : memref<1x128xf32, #tpu.memory_space<vmem>>, vector<1x128xf32>
    %6 = vector.broadcast %5 : vector<1x128xf32> to vector<64x128xf32>
    %7 = arith.addf %4, %6 : vector<64x128xf32>
    %cst_7 = arith.constant 0.000000e+00 : f32
    %8 = vector.broadcast %cst_7 : f32 to vector<64x128xf32>
    %9 = arith.maximumf %7, %8 : vector<64x128xf32>
    %10 = arith.truncf %9 : vector<64x128xf32> to vector<64x128xbf16>
    %c0_8 = arith.constant 0 : index
    %c0_9 = arith.constant 0 : index
    %c0_10 = arith.constant 0 : index
    %11 = vector.load %arg6[%c0_8, %c0_9, %c0_10] : memref<1x64x128xbf16, #tpu.memory_space<vmem>>, vector<1x64x128xbf16>
    %12 = vector.shape_cast %11 : vector<1x64x128xbf16> to vector<64x128xbf16>
    %13 = vector.shape_cast %10 : vector<64x128xbf16> to vector<1x64x128xbf16>
    tpu.vector_store %arg6[%c0_8, %c0_9, %c0_10], %13 {strides = array<i32>} : memref<1x64x128xbf16, #tpu.memory_space<vmem>>, vector<1x64x128xbf16>,
    return
  }
  func.func @transform_0(%arg0: i32, %arg1: i32, %arg2: i32) -> (i32, i32, i32) {
    %c0_i32 = arith.constant 0 : i32
    %c0_i32_0 = arith.constant 0 : i32
    return %arg0, %arg2, %c0_i32 : i32, i32, i32
  }
  func.func @transform_1(%arg0: i32, %arg1: i32, %arg2: i32) -> (i32, i32, i32) {
    %c0_i32 = arith.constant 0 : i32
    %c0_i32_0 = arith.constant 0 : i32
    return %arg0, %c0_i32, %arg1 : i32, i32, i32
  }
  func.func @transform_2(%arg0: i32, %arg1: i32, %arg2: i32) -> (i32, i32) {
    %c0_i32 = arith.constant 0 : i32
    %c0_i32_0 = arith.constant 0 : i32
    return %c0_i32, %arg1 : i32, i32
  }
  func.func @transform_3(%arg0: i32, %arg1: i32, %arg2: i32) -> (i32, i32, i32) {
    %c0_i32 = arith.constant 0 : i32
    return %arg0, %arg2, %arg1 : i32, i32, i32
  }
}

module attributes {stable_mosaic.version = 11 : i64} {
  func.func @_matmul_kernel(%arg0: i32, %arg1: i32, %arg2: i32, %arg3: memref<1x16x1152xbf16, #tpu.memory_space<vmem>>, %arg4: memref<1x1152x128xbf16, #tpu.memory_space<vmem>>, %arg5: memref<1x128xf32, #tpu.memory_space<vmem>>, %arg6: memref<1x16x128xbf16, #tpu.memory_space<vmem>>) attributes {dimension_semantics = [#tpu.dimension_semantics<parallel>, #tpu.dimension_semantics<parallel>, #tpu.dimension_semantics<parallel>], iteration_bounds = array<i64: 1, 1, 1>, scalar_prefetch = 0 : i64, scratch_operands = 0 : i64, tpu.core_type = #tpu.core_type<tc>, window_params = [{transform_indices = @transform_0, window_bounds = array<i64: 1, 16, 1152>}, {transform_indices = @transform_1, window_bounds = array<i64: 1, 1152, 128>}, {transform_indices = @transform_2, window_bounds = array<i64: 1, 128>}, {transform_indices = @transform_3, window_bounds = array<i64: 1, 16, 128>}]} {
    %c0 = arith.constant 0 : index
    %c0_0 = arith.constant 0 : index
    %c0_1 = arith.constant 0 : index
    %0 = vector.load %arg3[%c0, %c0_0, %c0_1] : memref<1x16x1152xbf16, #tpu.memory_space<vmem>>, vector<1x16x1152xbf16>
    %1 = vector.shape_cast %0 : vector<1x16x1152xbf16> to vector<16x1152xbf16>
    %c0_2 = arith.constant 0 : index
    %c0_3 = arith.constant 0 : index
    %c0_4 = arith.constant 0 : index
    %2 = vector.load %arg4[%c0_2, %c0_3, %c0_4] : memref<1x1152x128xbf16, #tpu.memory_space<vmem>>, vector<1x1152x128xbf16>
    %3 = vector.shape_cast %2 : vector<1x1152x128xbf16> to vector<1152x128xbf16>
    %cst = arith.constant dense<0.000000e+00> : vector<16x128xf32>
    %4 = tpu.matmul %1, %3, %cst {dimension_numbers = #tpu.dot_dimension_numbers<[1], [0], [0], [1], [0, 0, 1, 1], [], []>} : vector<16x1152xbf16>, vector<1152x128xbf16>, vector<16x128xf32> -> vector<16x128xf32>
    %c0_5 = arith.constant 0 : index
    %c0_6 = arith.constant 0 : index
    %5 = vector.load %arg5[%c0_5, %c0_6] : memref<1x128xf32, #tpu.memory_space<vmem>>, vector<1x128xf32>
    %6 = vector.broadcast %5 : vector<1x128xf32> to vector<16x128xf32>
    %7 = arith.addf %4, %6 : vector<16x128xf32>
    %cst_7 = arith.constant 0.000000e+00 : f32
    %8 = vector.broadcast %cst_7 : f32 to vector<16x128xf32>
    %9 = arith.maximumf %7, %8 : vector<16x128xf32>
    %10 = arith.truncf %9 : vector<16x128xf32> to vector<16x128xbf16>
    %c0_8 = arith.constant 0 : index
    %c0_9 = arith.constant 0 : index
    %c0_10 = arith.constant 0 : index
    %11 = vector.load %arg6[%c0_8, %c0_9, %c0_10] : memref<1x16x128xbf16, #tpu.memory_space<vmem>>, vector<1x16x128xbf16>
    %12 = vector.shape_cast %11 : vector<1x16x128xbf16> to vector<16x128xbf16>
    %13 = vector.shape_cast %10 : vector<16x128xbf16> to vector<1x16x128xbf16>
    tpu.vector_store %arg6[%c0_8, %c0_9, %c0_10], %13 {strides = array<i32>} : memref<1x16x128xbf16, #tpu.memory_space<vmem>>, vector<1x16x128xbf16>,
    return
  }
  func.func @transform_0(%arg0: i32, %arg1: i32, %arg2: i32) -> (i32, i32, i32) {
    %c0_i32 = arith.constant 0 : i32
    %c0_i32_0 = arith.constant 0 : i32
    return %arg0, %arg2, %c0_i32 : i32, i32, i32
  }
  func.func @transform_1(%arg0: i32, %arg1: i32, %arg2: i32) -> (i32, i32, i32) {
    %c0_i32 = arith.constant 0 : i32
    %c0_i32_0 = arith.constant 0 : i32
    return %arg0, %c0_i32, %arg1 : i32, i32, i32
  }
  func.func @transform_2(%arg0: i32, %arg1: i32, %arg2: i32) -> (i32, i32) {
    %c0_i32 = arith.constant 0 : i32
    %c0_i32_0 = arith.constant 0 : i32
    return %c0_i32, %arg1 : i32, i32
  }
  func.func @transform_3(%arg0: i32, %arg1: i32, %arg2: i32) -> (i32, i32, i32) {
    %c0_i32 = arith.constant 0 : i32
    return %arg0, %arg2, %arg1 : i32, i32, i32
  }
}

module attributes {stable_mosaic.version = 11 : i64} {
  func.func @_matmul_kernel(%arg0: i32, %arg1: i32, %arg2: i32, %arg3: memref<1x64x144xbf16, #tpu.memory_space<vmem>>, %arg4: memref<1x144x128xbf16, #tpu.memory_space<vmem>>, %arg5: memref<1x128xf32, #tpu.memory_space<vmem>>, %arg6: memref<1x64x128xbf16, #tpu.memory_space<vmem>>) attributes {dimension_semantics = [#tpu.dimension_semantics<parallel>, #tpu.dimension_semantics<parallel>, #tpu.dimension_semantics<parallel>], iteration_bounds = array<i64: 1, 1, 1>, scalar_prefetch = 0 : i64, scratch_operands = 0 : i64, tpu.core_type = #tpu.core_type<tc>, window_params = [{transform_indices = @transform_0, window_bounds = array<i64: 1, 64, 144>}, {transform_indices = @transform_1, window_bounds = array<i64: 1, 144, 128>}, {transform_indices = @transform_2, window_bounds = array<i64: 1, 128>}, {transform_indices = @transform_3, window_bounds = array<i64: 1, 64, 128>}]} {
    %c0 = arith.constant 0 : index
    %c0_0 = arith.constant 0 : index
    %c0_1 = arith.constant 0 : index
    %0 = vector.load %arg3[%c0, %c0_0, %c0_1] : memref<1x64x144xbf16, #tpu.memory_space<vmem>>, vector<1x64x144xbf16>
    %1 = vector.shape_cast %0 : vector<1x64x144xbf16> to vector<64x144xbf16>
    %c0_2 = arith.constant 0 : index
    %c0_3 = arith.constant 0 : index
    %c0_4 = arith.constant 0 : index
    %2 = vector.load %arg4[%c0_2, %c0_3, %c0_4] : memref<1x144x128xbf16, #tpu.memory_space<vmem>>, vector<1x144x128xbf16>
    %3 = vector.shape_cast %2 : vector<1x144x128xbf16> to vector<144x128xbf16>
    %cst = arith.constant dense<0.000000e+00> : vector<64x128xf32>
    %4 = tpu.matmul %1, %3, %cst {dimension_numbers = #tpu.dot_dimension_numbers<[1], [0], [0], [1], [0, 0, 1, 1], [], []>} : vector<64x144xbf16>, vector<144x128xbf16>, vector<64x128xf32> -> vector<64x128xf32>
    %c0_5 = arith.constant 0 : index
    %c0_6 = arith.constant 0 : index
    %5 = vector.load %arg5[%c0_5, %c0_6] : memref<1x128xf32, #tpu.memory_space<vmem>>, vector<1x128xf32>
    %6 = vector.broadcast %5 : vector<1x128xf32> to vector<64x128xf32>
    %7 = arith.addf %4, %6 : vector<64x128xf32>
    %cst_7 = arith.constant 0.000000e+00 : f32
    %8 = vector.broadcast %cst_7 : f32 to vector<64x128xf32>
    %9 = arith.maximumf %7, %8 : vector<64x128xf32>
    %10 = arith.truncf %9 : vector<64x128xf32> to vector<64x128xbf16>
    %c0_8 = arith.constant 0 : index
    %c0_9 = arith.constant 0 : index
    %c0_10 = arith.constant 0 : index
    %11 = vector.load %arg6[%c0_8, %c0_9, %c0_10] : memref<1x64x128xbf16, #tpu.memory_space<vmem>>, vector<1x64x128xbf16>
    %12 = vector.shape_cast %11 : vector<1x64x128xbf16> to vector<64x128xbf16>
    %13 = vector.shape_cast %10 : vector<64x128xbf16> to vector<1x64x128xbf16>
    tpu.vector_store %arg6[%c0_8, %c0_9, %c0_10], %13 {strides = array<i32>} : memref<1x64x128xbf16, #tpu.memory_space<vmem>>, vector<1x64x128xbf16>,
    return
  }
  func.func @transform_0(%arg0: i32, %arg1: i32, %arg2: i32) -> (i32, i32, i32) {
    %c0_i32 = arith.constant 0 : i32
    %c0_i32_0 = arith.constant 0 : i32
    return %arg0, %arg2, %c0_i32 : i32, i32, i32
  }
  func.func @transform_1(%arg0: i32, %arg1: i32, %arg2: i32) -> (i32, i32, i32) {
    %c0_i32 = arith.constant 0 : i32
    %c0_i32_0 = arith.constant 0 : i32
    return %arg0, %c0_i32, %arg1 : i32, i32, i32
  }
  func.func @transform_2(%arg0: i32, %arg1: i32, %arg2: i32) -> (i32, i32) {
    %c0_i32 = arith.constant 0 : i32
    %c0_i32_0 = arith.constant 0 : i32
    return %c0_i32, %arg1 : i32, i32
  }
  func.func @transform_3(%arg0: i32, %arg1: i32, %arg2: i32) -> (i32, i32, i32) {
    %c0_i32 = arith.constant 0 : i32
    return %arg0, %arg2, %arg1 : i32, i32, i32
  }
}

module attributes {stable_mosaic.version = 11 : i64} {
  func.func @_matmul_kernel(%arg0: i32, %arg1: i32, %arg2: i32, %arg3: memref<1x64x1152xbf16, #tpu.memory_space<vmem>>, %arg4: memref<1x1152x128xbf16, #tpu.memory_space<vmem>>, %arg5: memref<1x128xf32, #tpu.memory_space<vmem>>, %arg6: memref<1x64x128xbf16, #tpu.memory_space<vmem>>) attributes {dimension_semantics = [#tpu.dimension_semantics<parallel>, #tpu.dimension_semantics<parallel>, #tpu.dimension_semantics<parallel>], iteration_bounds = array<i64: 1, 1, 1>, scalar_prefetch = 0 : i64, scratch_operands = 0 : i64, tpu.core_type = #tpu.core_type<tc>, window_params = [{transform_indices = @transform_0, window_bounds = array<i64: 1, 64, 1152>}, {transform_indices = @transform_1, window_bounds = array<i64: 1, 1152, 128>}, {transform_indices = @transform_2, window_bounds = array<i64: 1, 128>}, {transform_indices = @transform_3, window_bounds = array<i64: 1, 64, 128>}]} {
    %c0 = arith.constant 0 : index
    %c0_0 = arith.constant 0 : index
    %c0_1 = arith.constant 0 : index
    %0 = vector.load %arg3[%c0, %c0_0, %c0_1] : memref<1x64x1152xbf16, #tpu.memory_space<vmem>>, vector<1x64x1152xbf16>
    %1 = vector.shape_cast %0 : vector<1x64x1152xbf16> to vector<64x1152xbf16>
    %cst = arith.constant 0.000000e+00 : bf16
    %2 = vector.broadcast %cst : bf16 to vector<64x1152xbf16>
    %3 = arith.maximumf %1, %2 : vector<64x1152xbf16>
    %c0_2 = arith.constant 0 : index
    %c0_3 = arith.constant 0 : index
    %c0_4 = arith.constant 0 : index
    %4 = vector.load %arg4[%c0_2, %c0_3, %c0_4] : memref<1x1152x128xbf16, #tpu.memory_space<vmem>>, vector<1x1152x128xbf16>
    %5 = vector.shape_cast %4 : vector<1x1152x128xbf16> to vector<1152x128xbf16>
    %cst_5 = arith.constant dense<0.000000e+00> : vector<64x128xf32>
    %6 = tpu.matmul %3, %5, %cst_5 {dimension_numbers = #tpu.dot_dimension_numbers<[1], [0], [0], [1], [0, 0, 1, 1], [], []>} : vector<64x1152xbf16>, vector<1152x128xbf16>, vector<64x128xf32> -> vector<64x128xf32>
    %c0_6 = arith.constant 0 : index
    %c0_7 = arith.constant 0 : index
    %7 = vector.load %arg5[%c0_6, %c0_7] : memref<1x128xf32, #tpu.memory_space<vmem>>, vector<1x128xf32>
    %8 = vector.broadcast %7 : vector<1x128xf32> to vector<64x128xf32>
    %9 = arith.addf %6, %8 : vector<64x128xf32>
    %cst_8 = arith.constant 0.000000e+00 : f32
    %10 = vector.broadcast %cst_8 : f32 to vector<64x128xf32>
    %11 = arith.maximumf %9, %10 : vector<64x128xf32>
    %12 = arith.truncf %11 : vector<64x128xf32> to vector<64x128xbf16>
    %c0_9 = arith.constant 0 : index
    %c0_10 = arith.constant 0 : index
    %c0_11 = arith.constant 0 : index
    %13 = vector.load %arg6[%c0_9, %c0_10, %c0_11] : memref<1x64x128xbf16, #tpu.memory_space<vmem>>, vector<1x64x128xbf16>
    %14 = vector.shape_cast %13 : vector<1x64x128xbf16> to vector<64x128xbf16>
    %15 = vector.shape_cast %12 : vector<64x128xbf16> to vector<1x64x128xbf16>
    tpu.vector_store %arg6[%c0_9, %c0_10, %c0_11], %15 {strides = array<i32>} : memref<1x64x128xbf16, #tpu.memory_space<vmem>>, vector<1x64x128xbf16>,
    return
  }
  func.func @transform_0(%arg0: i32, %arg1: i32, %arg2: i32) -> (i32, i32, i32) {
    %c0_i32 = arith.constant 0 : i32
    %c0_i32_0 = arith.constant 0 : i32
    return %arg0, %arg2, %c0_i32 : i32, i32, i32
  }
  func.func @transform_1(%arg0: i32, %arg1: i32, %arg2: i32) -> (i32, i32, i32) {
    %c0_i32 = arith.constant 0 : i32
    %c0_i32_0 = arith.constant 0 : i32
    return %arg0, %c0_i32, %arg1 : i32, i32, i32
  }
  func.func @transform_2(%arg0: i32, %arg1: i32, %arg2: i32) -> (i32, i32) {
    %c0_i32 = arith.constant 0 : i32
    %c0_i32_0 = arith.constant 0 : i32
    return %c0_i32, %arg1 : i32, i32
  }
  func.func @transform_3(%arg0: i32, %arg1: i32, %arg2: i32) -> (i32, i32, i32) {
    %c0_i32 = arith.constant 0 : i32
    return %arg0, %arg2, %arg1 : i32, i32, i32
  }
}

module attributes {stable_mosaic.version = 11 : i64} {
  func.func @_matmul_kernel(%arg0: i32, %arg1: i32, %arg2: i32, %arg3: memref<1x64x512xbf16, #tpu.memory_space<vmem>>, %arg4: memref<1x512x128xbf16, #tpu.memory_space<vmem>>, %arg5: memref<1x128xf32, #tpu.memory_space<vmem>>, %arg6: memref<1x64x128xbf16, #tpu.memory_space<vmem>>) attributes {dimension_semantics = [#tpu.dimension_semantics<parallel>, #tpu.dimension_semantics<parallel>, #tpu.dimension_semantics<parallel>], iteration_bounds = array<i64: 4, 1, 1>, scalar_prefetch = 0 : i64, scratch_operands = 0 : i64, tpu.core_type = #tpu.core_type<tc>, window_params = [{transform_indices = @transform_0, window_bounds = array<i64: 1, 64, 512>}, {transform_indices = @transform_1, window_bounds = array<i64: 1, 512, 128>}, {transform_indices = @transform_2, window_bounds = array<i64: 1, 128>}, {transform_indices = @transform_3, window_bounds = array<i64: 1, 64, 128>}]} {
    %c0 = arith.constant 0 : index
    %c0_0 = arith.constant 0 : index
    %c0_1 = arith.constant 0 : index
    %0 = vector.load %arg3[%c0, %c0_0, %c0_1] : memref<1x64x512xbf16, #tpu.memory_space<vmem>>, vector<1x64x512xbf16>
    %1 = vector.shape_cast %0 : vector<1x64x512xbf16> to vector<64x512xbf16>
    %c0_2 = arith.constant 0 : index
    %c0_3 = arith.constant 0 : index
    %c0_4 = arith.constant 0 : index
    %2 = vector.load %arg4[%c0_2, %c0_3, %c0_4] : memref<1x512x128xbf16, #tpu.memory_space<vmem>>, vector<1x512x128xbf16>
    %3 = vector.shape_cast %2 : vector<1x512x128xbf16> to vector<512x128xbf16>
    %cst = arith.constant dense<0.000000e+00> : vector<64x128xf32>
    %4 = tpu.matmul %1, %3, %cst {dimension_numbers = #tpu.dot_dimension_numbers<[1], [0], [0], [1], [0, 0, 1, 1], [], []>} : vector<64x512xbf16>, vector<512x128xbf16>, vector<64x128xf32> -> vector<64x128xf32>
    %c0_5 = arith.constant 0 : index
    %c0_6 = arith.constant 0 : index
    %5 = vector.load %arg5[%c0_5, %c0_6] : memref<1x128xf32, #tpu.memory_space<vmem>>, vector<1x128xf32>
    %6 = vector.broadcast %5 : vector<1x128xf32> to vector<64x128xf32>
    %7 = arith.addf %4, %6 : vector<64x128xf32>
    %8 = arith.truncf %7 : vector<64x128xf32> to vector<64x128xbf16>
    %c0_7 = arith.constant 0 : index
    %c0_8 = arith.constant 0 : index
    %c0_9 = arith.constant 0 : index
    %9 = vector.load %arg6[%c0_7, %c0_8, %c0_9] : memref<1x64x128xbf16, #tpu.memory_space<vmem>>, vector<1x64x128xbf16>
    %10 = vector.shape_cast %9 : vector<1x64x128xbf16> to vector<64x128xbf16>
    %11 = vector.shape_cast %8 : vector<64x128xbf16> to vector<1x64x128xbf16>
    tpu.vector_store %arg6[%c0_7, %c0_8, %c0_9], %11 {strides = array<i32>} : memref<1x64x128xbf16, #tpu.memory_space<vmem>>, vector<1x64x128xbf16>,
    return
  }
  func.func @transform_0(%arg0: i32, %arg1: i32, %arg2: i32) -> (i32, i32, i32) {
    %c0_i32 = arith.constant 0 : i32
    %c0_i32_0 = arith.constant 0 : i32
    return %arg0, %arg2, %c0_i32 : i32, i32, i32
  }
  func.func @transform_1(%arg0: i32, %arg1: i32, %arg2: i32) -> (i32, i32, i32) {
    %c0_i32 = arith.constant 0 : i32
    %c0_i32_0 = arith.constant 0 : i32
    return %arg0, %c0_i32, %arg1 : i32, i32, i32
  }
  func.func @transform_2(%arg0: i32, %arg1: i32, %arg2: i32) -> (i32, i32) {
    %c0_i32 = arith.constant 0 : i32
    %c0_i32_0 = arith.constant 0 : i32
    return %c0_i32, %arg1 : i32, i32
  }
  func.func @transform_3(%arg0: i32, %arg1: i32, %arg2: i32) -> (i32, i32, i32) {
    %c0_i32 = arith.constant 0 : i32
    return %arg0, %arg2, %arg1 : i32, i32, i32
  }
}

module attributes {stable_mosaic.version = 11 : i64} {
  func.func @_matmul_kernel(%arg0: i32, %arg1: i32, %arg2: i32, %arg3: memref<1x256x576xbf16, #tpu.memory_space<vmem>>, %arg4: memref<1x576x128xbf16, #tpu.memory_space<vmem>>, %arg5: memref<1x128xf32, #tpu.memory_space<vmem>>, %arg6: memref<1x256x128xbf16, #tpu.memory_space<vmem>>, %arg7: memref<1x256x128xbf16, #tpu.memory_space<vmem>>) attributes {dimension_semantics = [#tpu.dimension_semantics<parallel>, #tpu.dimension_semantics<parallel>, #tpu.dimension_semantics<parallel>], iteration_bounds = array<i64: 1, 1, 1>, scalar_prefetch = 0 : i64, scratch_operands = 0 : i64, tpu.core_type = #tpu.core_type<tc>, window_params = [{transform_indices = @transform_0, window_bounds = array<i64: 1, 256, 576>}, {transform_indices = @transform_1, window_bounds = array<i64: 1, 576, 128>}, {transform_indices = @transform_2, window_bounds = array<i64: 1, 128>}, {transform_indices = @transform_3, window_bounds = array<i64: 1, 256, 128>}, {transform_indices = @transform_4, window_bounds = array<i64: 1, 256, 128>}]} {
    %c0 = arith.constant 0 : index
    %c0_0 = arith.constant 0 : index
    %c0_1 = arith.constant 0 : index
    %0 = vector.load %arg3[%c0, %c0_0, %c0_1] : memref<1x256x576xbf16, #tpu.memory_space<vmem>>, vector<1x256x576xbf16>
    %1 = vector.shape_cast %0 : vector<1x256x576xbf16> to vector<256x576xbf16>
    %c0_2 = arith.constant 0 : index
    %c0_3 = arith.constant 0 : index
    %c0_4 = arith.constant 0 : index
    %2 = vector.load %arg4[%c0_2, %c0_3, %c0_4] : memref<1x576x128xbf16, #tpu.memory_space<vmem>>, vector<1x576x128xbf16>
    %3 = vector.shape_cast %2 : vector<1x576x128xbf16> to vector<576x128xbf16>
    %cst = arith.constant dense<0.000000e+00> : vector<256x128xf32>
    %4 = tpu.matmul %1, %3, %cst {dimension_numbers = #tpu.dot_dimension_numbers<[1], [0], [0], [1], [0, 0, 1, 1], [], []>} : vector<256x576xbf16>, vector<576x128xbf16>, vector<256x128xf32> -> vector<256x128xf32>
    %c0_5 = arith.constant 0 : index
    %c0_6 = arith.constant 0 : index
    %5 = vector.load %arg5[%c0_5, %c0_6] : memref<1x128xf32, #tpu.memory_space<vmem>>, vector<1x128xf32>
    %6 = vector.broadcast %5 : vector<1x128xf32> to vector<256x128xf32>
    %7 = arith.addf %4, %6 : vector<256x128xf32>
    %c0_7 = arith.constant 0 : index
    %c0_8 = arith.constant 0 : index
    %c0_9 = arith.constant 0 : index
    %8 = vector.load %arg6[%c0_7, %c0_8, %c0_9] : memref<1x256x128xbf16, #tpu.memory_space<vmem>>, vector<1x256x128xbf16>
    %9 = vector.shape_cast %8 : vector<1x256x128xbf16> to vector<256x128xbf16>
    %10 = arith.extf %9 : vector<256x128xbf16> to vector<256x128xf32>
    %11 = arith.addf %7, %10 : vector<256x128xf32>
    %12 = arith.truncf %11 : vector<256x128xf32> to vector<256x128xbf16>
    %c0_10 = arith.constant 0 : index
    %c0_11 = arith.constant 0 : index
    %c0_12 = arith.constant 0 : index
    %13 = vector.load %arg7[%c0_10, %c0_11, %c0_12] : memref<1x256x128xbf16, #tpu.memory_space<vmem>>, vector<1x256x128xbf16>
    %14 = vector.shape_cast %13 : vector<1x256x128xbf16> to vector<256x128xbf16>
    %15 = vector.shape_cast %12 : vector<256x128xbf16> to vector<1x256x128xbf16>
    tpu.vector_store %arg7[%c0_10, %c0_11, %c0_12], %15 {strides = array<i32>} : memref<1x256x128xbf16, #tpu.memory_space<vmem>>, vector<1x256x128xbf16>,
    return
  }
  func.func @transform_0(%arg0: i32, %arg1: i32, %arg2: i32) -> (i32, i32, i32) {
    %c0_i32 = arith.constant 0 : i32
    %c0_i32_0 = arith.constant 0 : i32
    return %arg0, %arg2, %c0_i32 : i32, i32, i32
  }
  func.func @transform_1(%arg0: i32, %arg1: i32, %arg2: i32) -> (i32, i32, i32) {
    %c0_i32 = arith.constant 0 : i32
    %c0_i32_0 = arith.constant 0 : i32
    return %arg0, %c0_i32, %arg1 : i32, i32, i32
  }
  func.func @transform_2(%arg0: i32, %arg1: i32, %arg2: i32) -> (i32, i32) {
    %c0_i32 = arith.constant 0 : i32
    %c0_i32_0 = arith.constant 0 : i32
    return %c0_i32, %arg1 : i32, i32
  }
  func.func @transform_3(%arg0: i32, %arg1: i32, %arg2: i32) -> (i32, i32, i32) {
    %c0_i32 = arith.constant 0 : i32
    return %arg0, %arg2, %arg1 : i32, i32, i32
  }
  func.func @transform_4(%arg0: i32, %arg1: i32, %arg2: i32) -> (i32, i32, i32) {
    %c0_i32 = arith.constant 0 : i32
    return %arg0, %arg2, %arg1 : i32, i32, i32
  }
}

module attributes {stable_mosaic.version = 11 : i64} {
  func.func @_matmul_kernel(%arg0: i32, %arg1: i32, %arg2: i32, %arg3: memref<1x256x1152xbf16, #tpu.memory_space<vmem>>, %arg4: memref<1x1152x128xbf16, #tpu.memory_space<vmem>>, %arg5: memref<1x128xf32, #tpu.memory_space<vmem>>, %arg6: memref<1x256x128xbf16, #tpu.memory_space<vmem>>) attributes {dimension_semantics = [#tpu.dimension_semantics<parallel>, #tpu.dimension_semantics<parallel>, #tpu.dimension_semantics<parallel>], iteration_bounds = array<i64: 1, 1, 1>, scalar_prefetch = 0 : i64, scratch_operands = 0 : i64, tpu.core_type = #tpu.core_type<tc>, window_params = [{transform_indices = @transform_0, window_bounds = array<i64: 1, 256, 1152>}, {transform_indices = @transform_1, window_bounds = array<i64: 1, 1152, 128>}, {transform_indices = @transform_2, window_bounds = array<i64: 1, 128>}, {transform_indices = @transform_3, window_bounds = array<i64: 1, 256, 128>}]} {
    %c0 = arith.constant 0 : index
    %c0_0 = arith.constant 0 : index
    %c0_1 = arith.constant 0 : index
    %0 = vector.load %arg3[%c0, %c0_0, %c0_1] : memref<1x256x1152xbf16, #tpu.memory_space<vmem>>, vector<1x256x1152xbf16>
    %1 = vector.shape_cast %0 : vector<1x256x1152xbf16> to vector<256x1152xbf16>
    %c0_2 = arith.constant 0 : index
    %c0_3 = arith.constant 0 : index
    %c0_4 = arith.constant 0 : index
    %2 = vector.load %arg4[%c0_2, %c0_3, %c0_4] : memref<1x1152x128xbf16, #tpu.memory_space<vmem>>, vector<1x1152x128xbf16>
    %3 = vector.shape_cast %2 : vector<1x1152x128xbf16> to vector<1152x128xbf16>
    %cst = arith.constant dense<0.000000e+00> : vector<256x128xf32>
    %4 = tpu.matmul %1, %3, %cst {dimension_numbers = #tpu.dot_dimension_numbers<[1], [0], [0], [1], [0, 0, 1, 1], [], []>} : vector<256x1152xbf16>, vector<1152x128xbf16>, vector<256x128xf32> -> vector<256x128xf32>
    %c0_5 = arith.constant 0 : index
    %c0_6 = arith.constant 0 : index
    %5 = vector.load %arg5[%c0_5, %c0_6] : memref<1x128xf32, #tpu.memory_space<vmem>>, vector<1x128xf32>
    %6 = vector.broadcast %5 : vector<1x128xf32> to vector<256x128xf32>
    %7 = arith.addf %4, %6 : vector<256x128xf32>
    %cst_7 = arith.constant 0.000000e+00 : f32
    %8 = vector.broadcast %cst_7 : f32 to vector<256x128xf32>
    %9 = arith.maximumf %7, %8 : vector<256x128xf32>
    %10 = arith.truncf %9 : vector<256x128xf32> to vector<256x128xbf16>
    %c0_8 = arith.constant 0 : index
    %c0_9 = arith.constant 0 : index
    %c0_10 = arith.constant 0 : index
    %11 = vector.load %arg6[%c0_8, %c0_9, %c0_10] : memref<1x256x128xbf16, #tpu.memory_space<vmem>>, vector<1x256x128xbf16>
    %12 = vector.shape_cast %11 : vector<1x256x128xbf16> to vector<256x128xbf16>
    %13 = vector.shape_cast %10 : vector<256x128xbf16> to vector<1x256x128xbf16>
    tpu.vector_store %arg6[%c0_8, %c0_9, %c0_10], %13 {strides = array<i32>} : memref<1x256x128xbf16, #tpu.memory_space<vmem>>, vector<1x256x128xbf16>,
    return
  }
  func.func @transform_0(%arg0: i32, %arg1: i32, %arg2: i32) -> (i32, i32, i32) {
    %c0_i32 = arith.constant 0 : i32
    %c0_i32_0 = arith.constant 0 : i32
    return %arg0, %arg2, %c0_i32 : i32, i32, i32
  }
  func.func @transform_1(%arg0: i32, %arg1: i32, %arg2: i32) -> (i32, i32, i32) {
    %c0_i32 = arith.constant 0 : i32
    %c0_i32_0 = arith.constant 0 : i32
    return %arg0, %c0_i32, %arg1 : i32, i32, i32
  }
  func.func @transform_2(%arg0: i32, %arg1: i32, %arg2: i32) -> (i32, i32) {
    %c0_i32 = arith.constant 0 : i32
    %c0_i32_0 = arith.constant 0 : i32
    return %c0_i32, %arg1 : i32, i32
  }
  func.func @transform_3(%arg0: i32, %arg1: i32, %arg2: i32) -> (i32, i32, i32) {
    %c0_i32 = arith.constant 0 : i32
    return %arg0, %arg2, %arg1 : i32, i32, i32
  }
}

module attributes {stable_mosaic.version = 11 : i64} {
  func.func @_fuse_kernel(%arg0: i32, %arg1: i32, %arg2: memref<256x2xf32, #tpu.memory_space<vmem>>, %arg3: memref<2x256x128xbf16, #tpu.memory_space<vmem>>, %arg4: memref<256x128xbf16, #tpu.memory_space<vmem>>) attributes {dimension_semantics = [#tpu.dimension_semantics<parallel>, #tpu.dimension_semantics<parallel>], iteration_bounds = array<i64: 1, 1>, scalar_prefetch = 0 : i64, scratch_operands = 0 : i64, tpu.core_type = #tpu.core_type<tc>, window_params = [{transform_indices = @transform_0, window_bounds = array<i64: 256, 2>}, {transform_indices = @transform_1, window_bounds = array<i64: 2, 256, 128>}, {transform_indices = @transform_2, window_bounds = array<i64: 256, 128>}]} {
    %c0 = arith.constant 0 : index
    %c0_0 = arith.constant 0 : index
    %0 = vector.load %arg2[%c0, %c0_0] : memref<256x2xf32, #tpu.memory_space<vmem>>, vector<256x2xf32>
    %cst = arith.constant dense<0xFF800000> : vector<256xf32>
    %1 = vector.multi_reduction <maximumf>, %0, %cst [1] : vector<256x2xf32> to vector<256xf32>
    %2 = vector.shape_cast %1 : vector<256xf32> to vector<256x1xf32>
    %3 = vector.broadcast %2 : vector<256x1xf32> to vector<256x2xf32>
    %4 = arith.subf %0, %3 : vector<256x2xf32>
    %5 = math.exp %4 : vector<256x2xf32>
    %cst_1 = arith.constant dense<0.000000e+00> : vector<256xf32>
    %6 = vector.multi_reduction <add>, %5, %cst_1 [1] : vector<256x2xf32> to vector<256xf32>
    %7 = vector.shape_cast %6 : vector<256xf32> to vector<256x1xf32>
    %8 = tpu.reciprocal %7 {approx = true} : vector<256x1xf32> -> vector<256x1xf32>
    %9 = vector.broadcast %8 : vector<256x1xf32> to vector<256x2xf32>
    %10 = arith.mulf %5, %9 : vector<256x2xf32>
    %cst_2 = arith.constant 0.000000e+00 : f32
    %11 = vector.broadcast %cst_2 : f32 to vector<256x128xf32>
    %12 = vector.extract_strided_slice %10 {offsets = [0, 0], sizes = [256, 1], strides = [1, 1]} : vector<256x2xf32> to vector<256x1xf32>
    %c0_3 = arith.constant 0 : index
    %c0_4 = arith.constant 0 : index
    %c0_5 = arith.constant 0 : index
    %13 = vector.load %arg3[%c0_3, %c0_4, %c0_5] : memref<2x256x128xbf16, #tpu.memory_space<vmem>>, vector<1x256x128xbf16>
    %14 = vector.shape_cast %13 : vector<1x256x128xbf16> to vector<256x128xbf16>
    %15 = arith.extf %14 : vector<256x128xbf16> to vector<256x128xf32>
    %16 = vector.broadcast %12 : vector<256x1xf32> to vector<256x128xf32>
    %17 = arith.mulf %16, %15 : vector<256x128xf32>
    %18 = arith.addf %11, %17 : vector<256x128xf32>
    %19 = vector.extract_strided_slice %10 {offsets = [0, 1], sizes = [256, 1], strides = [1, 1]} : vector<256x2xf32> to vector<256x1xf32>
    %c1 = arith.constant 1 : index
    %c0_6 = arith.constant 0 : index
    %c0_7 = arith.constant 0 : index
    %20 = vector.load %arg3[%c1, %c0_6, %c0_7] : memref<2x256x128xbf16, #tpu.memory_space<vmem>>, vector<1x256x128xbf16>
    %21 = vector.shape_cast %20 : vector<1x256x128xbf16> to vector<256x128xbf16>
    %22 = arith.extf %21 : vector<256x128xbf16> to vector<256x128xf32>
    %23 = vector.broadcast %19 : vector<256x1xf32> to vector<256x128xf32>
    %24 = arith.mulf %23, %22 : vector<256x128xf32>
    %25 = arith.addf %18, %24 : vector<256x128xf32>
    %26 = arith.truncf %25 : vector<256x128xf32> to vector<256x128xbf16>
    %c0_8 = arith.constant 0 : index
    %c0_9 = arith.constant 0 : index
    %27 = vector.load %arg4[%c0_8, %c0_9] : memref<256x128xbf16, #tpu.memory_space<vmem>>, vector<256x128xbf16>
    tpu.vector_store %arg4[%c0_8, %c0_9], %26 {strides = array<i32>} : memref<256x128xbf16, #tpu.memory_space<vmem>>, vector<256x128xbf16>,
    return
  }
  func.func @transform_0(%arg0: i32, %arg1: i32) -> (i32, i32) {
    %c0_i32 = arith.constant 0 : i32
    %c0_i32_0 = arith.constant 0 : i32
    return %arg0, %c0_i32 : i32, i32
  }
  func.func @transform_1(%arg0: i32, %arg1: i32) -> (i32, i32, i32) {
    %c0_i32 = arith.constant 0 : i32
    %c0_i32_0 = arith.constant 0 : i32
    return %c0_i32, %arg0, %arg1 : i32, i32, i32
  }
  func.func @transform_2(%arg0: i32, %arg1: i32) -> (i32, i32) {
    %c0_i32 = arith.constant 0 : i32
    return %arg0, %arg1 : i32, i32
  }
}

module attributes {stable_mosaic.version = 11 : i64} {
  func.func @_matmul_kernel(%arg0: i32, %arg1: i32, %arg2: i32, %arg3: memref<1x256x1152xbf16, #tpu.memory_space<vmem>>, %arg4: memref<1x1152x128xbf16, #tpu.memory_space<vmem>>, %arg5: memref<1x128xf32, #tpu.memory_space<vmem>>, %arg6: memref<1x256x128xbf16, #tpu.memory_space<vmem>>) attributes {dimension_semantics = [#tpu.dimension_semantics<parallel>, #tpu.dimension_semantics<parallel>, #tpu.dimension_semantics<parallel>], iteration_bounds = array<i64: 1, 1, 1>, scalar_prefetch = 0 : i64, scratch_operands = 0 : i64, tpu.core_type = #tpu.core_type<tc>, window_params = [{transform_indices = @transform_0, window_bounds = array<i64: 1, 256, 1152>}, {transform_indices = @transform_1, window_bounds = array<i64: 1, 1152, 128>}, {transform_indices = @transform_2, window_bounds = array<i64: 1, 128>}, {transform_indices = @transform_3, window_bounds = array<i64: 1, 256, 128>}]} {
    %c0 = arith.constant 0 : index
    %c0_0 = arith.constant 0 : index
    %c0_1 = arith.constant 0 : index
    %0 = vector.load %arg3[%c0, %c0_0, %c0_1] : memref<1x256x1152xbf16, #tpu.memory_space<vmem>>, vector<1x256x1152xbf16>
    %1 = vector.shape_cast %0 : vector<1x256x1152xbf16> to vector<256x1152xbf16>
    %cst = arith.constant 0.000000e+00 : bf16
    %2 = vector.broadcast %cst : bf16 to vector<256x1152xbf16>
    %3 = arith.maximumf %1, %2 : vector<256x1152xbf16>
    %c0_2 = arith.constant 0 : index
    %c0_3 = arith.constant 0 : index
    %c0_4 = arith.constant 0 : index
    %4 = vector.load %arg4[%c0_2, %c0_3, %c0_4] : memref<1x1152x128xbf16, #tpu.memory_space<vmem>>, vector<1x1152x128xbf16>
    %5 = vector.shape_cast %4 : vector<1x1152x128xbf16> to vector<1152x128xbf16>
    %cst_5 = arith.constant dense<0.000000e+00> : vector<256x128xf32>
    %6 = tpu.matmul %3, %5, %cst_5 {dimension_numbers = #tpu.dot_dimension_numbers<[1], [0], [0], [1], [0, 0, 1, 1], [], []>} : vector<256x1152xbf16>, vector<1152x128xbf16>, vector<256x128xf32> -> vector<256x128xf32>
    %c0_6 = arith.constant 0 : index
    %c0_7 = arith.constant 0 : index
    %7 = vector.load %arg5[%c0_6, %c0_7] : memref<1x128xf32, #tpu.memory_space<vmem>>, vector<1x128xf32>
    %8 = vector.broadcast %7 : vector<1x128xf32> to vector<256x128xf32>
    %9 = arith.addf %6, %8 : vector<256x128xf32>
    %cst_8 = arith.constant 0.000000e+00 : f32
    %10 = vector.broadcast %cst_8 : f32 to vector<256x128xf32>
    %11 = arith.cmpf ogt, %9, %10 : vector<256x128xf32>
    %cst_9 = arith.constant 2.000000e-01 : f32
    %12 = vector.broadcast %cst_9 : f32 to vector<256x128xf32>
    %13 = arith.mulf %12, %9 : vector<256x128xf32>
    %14 = arith.select %11, %9, %13 : vector<256x128xi1>, vector<256x128xf32>
    %15 = arith.truncf %14 : vector<256x128xf32> to vector<256x128xbf16>
    %c0_10 = arith.constant 0 : index
    %c0_11 = arith.constant 0 : index
    %c0_12 = arith.constant 0 : index
    %16 = vector.load %arg6[%c0_10, %c0_11, %c0_12] : memref<1x256x128xbf16, #tpu.memory_space<vmem>>, vector<1x256x128xbf16>
    %17 = vector.shape_cast %16 : vector<1x256x128xbf16> to vector<256x128xbf16>
    %18 = vector.shape_cast %15 : vector<256x128xbf16> to vector<1x256x128xbf16>
    tpu.vector_store %arg6[%c0_10, %c0_11, %c0_12], %18 {strides = array<i32>} : memref<1x256x128xbf16, #tpu.memory_space<vmem>>, vector<1x256x128xbf16>,
    return
  }
  func.func @transform_0(%arg0: i32, %arg1: i32, %arg2: i32) -> (i32, i32, i32) {
    %c0_i32 = arith.constant 0 : i32
    %c0_i32_0 = arith.constant 0 : i32
    return %arg0, %arg2, %c0_i32 : i32, i32, i32
  }
  func.func @transform_1(%arg0: i32, %arg1: i32, %arg2: i32) -> (i32, i32, i32) {
    %c0_i32 = arith.constant 0 : i32
    %c0_i32_0 = arith.constant 0 : i32
    return %arg0, %c0_i32, %arg1 : i32, i32, i32
  }
  func.func @transform_2(%arg0: i32, %arg1: i32, %arg2: i32) -> (i32, i32) {
    %c0_i32 = arith.constant 0 : i32
    %c0_i32_0 = arith.constant 0 : i32
    return %c0_i32, %arg1 : i32, i32
  }
  func.func @transform_3(%arg0: i32, %arg1: i32, %arg2: i32) -> (i32, i32, i32) {
    %c0_i32 = arith.constant 0 : i32
    return %arg0, %arg2, %arg1 : i32, i32, i32
  }
}

module attributes {stable_mosaic.version = 11 : i64} {
  func.func @_matmul_kernel(%arg0: i32, %arg1: i32, %arg2: i32, %arg3: memref<1x256x128xbf16, #tpu.memory_space<vmem>>, %arg4: memref<1x128x128xbf16, #tpu.memory_space<vmem>>, %arg5: memref<1x128xf32, #tpu.memory_space<vmem>>, %arg6: memref<1x256x128xbf16, #tpu.memory_space<vmem>>) attributes {dimension_semantics = [#tpu.dimension_semantics<parallel>, #tpu.dimension_semantics<parallel>, #tpu.dimension_semantics<parallel>], iteration_bounds = array<i64: 1, 1, 1>, scalar_prefetch = 0 : i64, scratch_operands = 0 : i64, tpu.core_type = #tpu.core_type<tc>, window_params = [{transform_indices = @transform_0, window_bounds = array<i64: 1, 256, 128>}, {transform_indices = @transform_1, window_bounds = array<i64: 1, 128, 128>}, {transform_indices = @transform_2, window_bounds = array<i64: 1, 128>}, {transform_indices = @transform_3, window_bounds = array<i64: 1, 256, 128>}]} {
    %c0 = arith.constant 0 : index
    %c0_0 = arith.constant 0 : index
    %c0_1 = arith.constant 0 : index
    %0 = vector.load %arg3[%c0, %c0_0, %c0_1] : memref<1x256x128xbf16, #tpu.memory_space<vmem>>, vector<1x256x128xbf16>
    %1 = vector.shape_cast %0 : vector<1x256x128xbf16> to vector<256x128xbf16>
    %c0_2 = arith.constant 0 : index
    %c0_3 = arith.constant 0 : index
    %c0_4 = arith.constant 0 : index
    %2 = vector.load %arg4[%c0_2, %c0_3, %c0_4] : memref<1x128x128xbf16, #tpu.memory_space<vmem>>, vector<1x128x128xbf16>
    %3 = vector.shape_cast %2 : vector<1x128x128xbf16> to vector<128x128xbf16>
    %cst = arith.constant dense<0.000000e+00> : vector<256x128xf32>
    %4 = tpu.matmul %1, %3, %cst {dimension_numbers = #tpu.dot_dimension_numbers<[1], [0], [0], [1], [0, 0, 1, 1], [], []>} : vector<256x128xbf16>, vector<128x128xbf16>, vector<256x128xf32> -> vector<256x128xf32>
    %c0_5 = arith.constant 0 : index
    %c0_6 = arith.constant 0 : index
    %5 = vector.load %arg5[%c0_5, %c0_6] : memref<1x128xf32, #tpu.memory_space<vmem>>, vector<1x128xf32>
    %6 = vector.broadcast %5 : vector<1x128xf32> to vector<256x128xf32>
    %7 = arith.addf %4, %6 : vector<256x128xf32>
    %8 = math.tanh %7 : vector<256x128xf32>
    %9 = arith.truncf %8 : vector<256x128xf32> to vector<256x128xbf16>
    %c0_7 = arith.constant 0 : index
    %c0_8 = arith.constant 0 : index
    %c0_9 = arith.constant 0 : index
    %10 = vector.load %arg6[%c0_7, %c0_8, %c0_9] : memref<1x256x128xbf16, #tpu.memory_space<vmem>>, vector<1x256x128xbf16>
    %11 = vector.shape_cast %10 : vector<1x256x128xbf16> to vector<256x128xbf16>
    %12 = vector.shape_cast %9 : vector<256x128xbf16> to vector<1x256x128xbf16>
    tpu.vector_store %arg6[%c0_7, %c0_8, %c0_9], %12 {strides = array<i32>} : memref<1x256x128xbf16, #tpu.memory_space<vmem>>, vector<1x256x128xbf16>,
    return
  }
  func.func @transform_0(%arg0: i32, %arg1: i32, %arg2: i32) -> (i32, i32, i32) {
    %c0_i32 = arith.constant 0 : i32
    %c0_i32_0 = arith.constant 0 : i32
    return %arg0, %arg2, %c0_i32 : i32, i32, i32
  }
  func.func @transform_1(%arg0: i32, %arg1: i32, %arg2: i32) -> (i32, i32, i32) {
    %c0_i32 = arith.constant 0 : i32
    %c0_i32_0 = arith.constant 0 : i32
    return %arg0, %c0_i32, %arg1 : i32, i32, i32
  }
  func.func @transform_2(%arg0: i32, %arg1: i32, %arg2: i32) -> (i32, i32) {
    %c0_i32 = arith.constant 0 : i32
    %c0_i32_0 = arith.constant 0 : i32
    return %c0_i32, %arg1 : i32, i32
  }
  func.func @transform_3(%arg0: i32, %arg1: i32, %arg2: i32) -> (i32, i32, i32) {
    %c0_i32 = arith.constant 0 : i32
    return %arg0, %arg2, %arg1 : i32, i32, i32
  }
}

</mosaic_0001>

<llo_original>
// kernel: squeeze.134
$region0: #{squeeze.134}
  %s0 = inlined_call_operand.vmem [shape: bf16[1,16,256], index: 0, kind: input, shape index: {}]
  %s1 = inlined_call_operand.vmem [shape: bf16[4,4,256], index: 1, kind: output, shape index: {}]
  $region1: #{squeeze.134} parent=0
    #allocation0 [shape = 'u8[32768]{0}', space=vmem, size = 0x8000, scoped, tag = 'scoped mem for output reshape']
    #allocation1 [shape = 'u8[16384]{0}', space=vmem, size = 0x4000, scoped, tag = 'scoped mem for input reshape']
    %s3 = ssub.s32 256, 1
    %s4 = scalar_lea.vmem %s0, 12
    %s5 = sshrl.u32 %s3, 1
    %s6 = sor.u32 %s3, %s5
    %s7 = sand.u32 %s6, 85
    %s8 = sshrl.u32 %s7, 1
    %s9 = sor.u32 %s7, %s8
    %s10 = sand.u32 51, %s9
    %s11 = sshrl.u32 %s10, 2
    %s12 = sor.u32 %s10, %s11
    %s13 = sand.u32 15, %s12
    %v14 = vld [vmem:[%s4] sm:%s13]
    %v15 = vunpack.c.l.bf16 %v14
    %v16 = vunpack.c.h.bf16 %v14
    %s17 = scalar_lea.vmem [#allocation1], 24
    %18 = vst [vmem:[%s17] sm:%s3] %v15
    %s19 = scalar_lea.vmem %s0, 8
    %s20 = sshrl.u32 %s3, 1
    %s21 = sor.u32 %s3, %s20
    %s22 = sand.u32 %s21, 85
    %s23 = sshrl.u32 %s22, 1
    %s24 = sor.u32 %s22, %s23
    %s25 = sand.u32 51, %s24
    %s26 = sshrl.u32 %s25, 2
    %s27 = sor.u32 %s25, %s26
    %s28 = sand.u32 15, %s27
    %v29 = vld [vmem:[%s19] sm:%s28]
    %v30 = vunpack.c.l.bf16 %v29
    %v31 = vunpack.c.h.bf16 %v29
    %s32 = scalar_lea.vmem [#allocation1], 16
    %33 = vst [vmem:[%s32] sm:%s3] %v30
    %s34 = scalar_lea.vmem %s0, 4
    %s35 = sshrl.u32 %s3, 1
    %s36 = sor.u32 %s3, %s35
    %s37 = sand.u32 %s36, 85
    %s38 = sshrl.u32 %s37, 1
    %s39 = sor.u32 %s37, %s38
    %s40 = sand.u32 51, %s39
    %s41 = sshrl.u32 %s40, 2
    %s42 = sor.u32 %s40, %s41
    %s43 = sand.u32 15, %s42
    %v44 = vld [vmem:[%s34] sm:%s43]
    %v45 = vunpack.c.l.bf16 %v44
    %v46 = vunpack.c.h.bf16 %v44
    %s47 = scalar_lea.vmem [#allocation1], 8
    %48 = vst [vmem:[%s47] sm:%s3] %v45
    %s49 = sshrl.u32 %s3, 1
    %s50 = sor.u32 %s3, %s49
    %s51 = sand.u32 %s50, 85
    %s52 = sshrl.u32 %s51, 1
    %s53 = sor.u32 %s51, %s52
    %s54 = sand.u32 51, %s53
    %s55 = sshrl.u32 %s54, 2
    %s56 = sor.u32 %s54, %s55
    %s57 = sand.u32 15, %s56
    %v58 = vld [vmem:[%s0] sm:%s57]
    %v59 = vunpack.c.l.bf16 %v58
    %v60 = vunpack.c.h.bf16 %v58
    %61 = vst [vmem:[#allocation1] sm:%s3] %v59
    %v62 = vld [vmem:[#allocation1] sm:$0xff]
    %63 = vst [vmem:[#allocation0] sm:$0xf] %v62
    %s64 = scalar_lea.vmem [#allocation0], 12
    %65 = vst [vmem:[%s64] sm:$0xf0] %v62
    %s66 = scalar_lea.vmem [#allocation1], 8
    %v67 = vld [vmem:[%s66] sm:$0xff]
    %s68 = scalar_lea.vmem [#allocation0], 8
    %69 = vst [vmem:[%s68] sm:$0xf] %v67
    %s70 = scalar_lea.vmem [#allocation0], 20
    %71 = vst [vmem:[%s70] sm:$0xf0] %v67
    %s72 = scalar_lea.vmem [#allocation1], 16
    %v73 = vld [vmem:[%s72] sm:$0xff]
    %s74 = scalar_lea.vmem [#allocation0], 32
    %75 = vst [vmem:[%s74] sm:$0xf] %v73
    %s76 = scalar_lea.vmem [#allocation0], 44
    %77 = vst [vmem:[%s76] sm:$0xf0] %v73
    %s78 = scalar_lea.vmem [#allocation1], 24
    %v79 = vld [vmem:[%s78] sm:$0xff]
    %s80 = scalar_lea.vmem [#allocation0], 40
    %81 = vst [vmem:[%s80] sm:$0xf] %v79
    %s82 = scalar_lea.vmem [#allocation0], 52
    %83 = vst [vmem:[%s82] sm:$0xf0] %v79
    %s85 = ssub.s32 16, 1
    %v86 = vld [vmem:[#allocation0] sm:%s85]
    %v87 = vpack.c.bf16 0.0, %v86
    %s89 = ssub.s32 4, 1
    %90 = vst [vmem:[%s1] sm:%s89] %v87
    %s91 = scalar_lea.vmem [#allocation0], 8
    %v92 = vld [vmem:[%s91] sm:%s85]
    %v93 = vpack.c.bf16 0.0, %v92
    %s95 = ssub.s32 4, 1
    %s96 = scalar_lea.vmem %s1, 2
    %97 = vst [vmem:[%s96] sm:%s95] %v93
    %s98 = scalar_lea.vmem [#allocation0], 16
    %v99 = vld [vmem:[%s98] sm:%s85]
    %v100 = vpack.c.bf16 0.0, %v99
    %s102 = ssub.s32 4, 1
    %s103 = scalar_lea.vmem %s1, 4
    %104 = vst [vmem:[%s103] sm:%s102] %v100
    %s105 = scalar_lea.vmem [#allocation0], 24
    %v106 = vld [vmem:[%s105] sm:%s85]
    %v107 = vpack.c.bf16 0.0, %v106
    %s109 = ssub.s32 4, 1
    %s110 = scalar_lea.vmem %s1, 6
    %111 = vst [vmem:[%s110] sm:%s109] %v107
    %s112 = scalar_lea.vmem [#allocation0], 32
    %v113 = vld [vmem:[%s112] sm:%s85]
    %v114 = vpack.c.bf16 0.0, %v113
    %s116 = ssub.s32 4, 1
    %s117 = scalar_lea.vmem %s1, 8
    %118 = vst [vmem:[%s117] sm:%s116] %v114
    %s119 = scalar_lea.vmem [#allocation0], 40
    %v120 = vld [vmem:[%s119] sm:%s85]
    %v121 = vpack.c.bf16 0.0, %v120
    %s123 = ssub.s32 4, 1
    %s124 = scalar_lea.vmem %s1, 10
    %125 = vst [vmem:[%s124] sm:%s123] %v121
    %s126 = scalar_lea.vmem [#allocation0], 48
    %v127 = vld [vmem:[%s126] sm:%s85]
    %v128 = vpack.c.bf16 0.0, %v127
    %s130 = ssub.s32 4, 1
    %s131 = scalar_lea.vmem %s1, 12
    %132 = vst [vmem:[%s131] sm:%s130] %v128
    %s133 = scalar_lea.vmem [#allocation0], 56
    %v134 = vld [vmem:[%s133] sm:%s85]
    %v135 = vpack.c.bf16 0.0, %v134
    %s137 = ssub.s32 4, 1
    %s138 = scalar_lea.vmem %s1, 14
    %139 = vst [vmem:[%s138] sm:%s137] %v135

// kernel: squeeze.144
$region0: #{squeeze.144}
  %s0 = inlined_call_operand.vmem [shape: bf16[1,4,512], index: 0, kind: input, shape index: {}]
  %s1 = inlined_call_operand.vmem [shape: bf16[2,2,512], index: 1, kind: output, shape index: {}]
  $region1: #{squeeze.144} parent=0
    #allocation0 [shape = 'u8[32768]{0}', space=vmem, size = 0x8000, scoped, tag = 'scoped mem for output reshape']
    #allocation1 [shape = 'u8[16384]{0}', space=vmem, size = 0x4000, scoped, tag = 'scoped mem for input reshape']
    %s3 = ssub.s32 16, 1
    %s4 = scalar_lea.vmem %s0, 6
    %s5 = sshrl.u32 %s3, 1
    %s6 = sor.u32 %s3, %s5
    %s7 = sand.u32 %s6, 85
    %s8 = sshrl.u32 %s7, 1
    %s9 = sor.u32 %s7, %s8
    %s10 = sand.u32 51, %s9
    %s11 = sshrl.u32 %s10, 2
    %s12 = sor.u32 %s10, %s11
    %s13 = sand.u32 15, %s12
    %v14 = vld [vmem:[%s4] sm:%s13]
    %v15 = vunpack.c.l.bf16 %v14
    %v16 = vunpack.c.h.bf16 %v14
    %s17 = scalar_lea.vmem [#allocation1], 24
    %18 = vst [vmem:[%s17] sm:%s3] %v15
    %s19 = scalar_lea.vmem %s0, 4
    %s20 = sshrl.u32 %s3, 1
    %s21 = sor.u32 %s3, %s20
    %s22 = sand.u32 %s21, 85
    %s23 = sshrl.u32 %s22, 1
    %s24 = sor.u32 %s22, %s23
    %s25 = sand.u32 51, %s24
    %s26 = sshrl.u32 %s25, 2
    %s27 = sor.u32 %s25, %s26
    %s28 = sand.u32 15, %s27
    %v29 = vld [vmem:[%s19] sm:%s28]
    %v30 = vunpack.c.l.bf16 %v29
    %v31 = vunpack.c.h.bf16 %v29
    %s32 = scalar_lea.vmem [#allocation1], 16
    %33 = vst [vmem:[%s32] sm:%s3] %v30
    %s34 = scalar_lea.vmem %s0, 2
    %s35 = sshrl.u32 %s3, 1
    %s36 = sor.u32 %s3, %s35
    %s37 = sand.u32 %s36, 85
    %s38 = sshrl.u32 %s37, 1
    %s39 = sor.u32 %s37, %s38
    %s40 = sand.u32 51, %s39
    %s41 = sshrl.u32 %s40, 2
    %s42 = sor.u32 %s40, %s41
    %s43 = sand.u32 15, %s42
    %v44 = vld [vmem:[%s34] sm:%s43]
    %v45 = vunpack.c.l.bf16 %v44
    %v46 = vunpack.c.h.bf16 %v44
    %s47 = scalar_lea.vmem [#allocation1], 8
    %48 = vst [vmem:[%s47] sm:%s3] %v45
    %s49 = sshrl.u32 %s3, 1
    %s50 = sor.u32 %s3, %s49
    %s51 = sand.u32 %s50, 85
    %s52 = sshrl.u32 %s51, 1
    %s53 = sor.u32 %s51, %s52
    %s54 = sand.u32 51, %s53
    %s55 = sshrl.u32 %s54, 2
    %s56 = sor.u32 %s54, %s55
    %s57 = sand.u32 15, %s56
    %v58 = vld [vmem:[%s0] sm:%s57]
    %v59 = vunpack.c.l.bf16 %v58
    %v60 = vunpack.c.h.bf16 %v58
    %61 = vst [vmem:[#allocation1] sm:%s3] %v59
    %v62 = vld [vmem:[#allocation1] sm:$0xf]
    %63 = vst [vmem:[#allocation0] sm:$0x3] %v62
    %s64 = scalar_lea.vmem [#allocation0], 30
    %65 = vst [vmem:[%s64] sm:$0xc] %v62
    %s66 = scalar_lea.vmem [#allocation1], 8
    %v67 = vld [vmem:[%s66] sm:$0xf]
    %s68 = scalar_lea.vmem [#allocation0], 8
    %69 = vst [vmem:[%s68] sm:$0x3] %v67
    %s70 = scalar_lea.vmem [#allocation0], 38
    %71 = vst [vmem:[%s70] sm:$0xc] %v67
    %s72 = scalar_lea.vmem [#allocation1], 16
    %v73 = vld [vmem:[%s72] sm:$0xf]
    %s74 = scalar_lea.vmem [#allocation0], 16
    %75 = vst [vmem:[%s74] sm:$0x3] %v73
    %s76 = scalar_lea.vmem [#allocation0], 46
    %77 = vst [vmem:[%s76] sm:$0xc] %v73
    %s78 = scalar_lea.vmem [#allocation1], 24
    %v79 = vld [vmem:[%s78] sm:$0xf]
    %s80 = scalar_lea.vmem [#allocation0], 24
    %81 = vst [vmem:[%s80] sm:$0x3] %v79
    %s82 = scalar_lea.vmem [#allocation0], 54
    %83 = vst [vmem:[%s82] sm:$0xc] %v79
    %s85 = ssub.s32 4, 1
    %v86 = vld [vmem:[#allocation0] sm:%s85]
    %v87 = vpack.c.bf16 0.0, %v86
    %s89 = ssub.s32 2, 1
    %90 = vst [vmem:[%s1] sm:%s89] %v87
    %s91 = scalar_lea.vmem [#allocation0], 8
    %v92 = vld [vmem:[%s91] sm:%s85]
    %v93 = vpack.c.bf16 0.0, %v92
    %s95 = ssub.s32 2, 1
    %s96 = scalar_lea.vmem %s1, 1
    %97 = vst [vmem:[%s96] sm:%s95] %v93
    %s98 = scalar_lea.vmem [#allocation0], 16
    %v99 = vld [vmem:[%s98] sm:%s85]
    %v100 = vpack.c.bf16 0.0, %v99
    %s102 = ssub.s32 2, 1
    %s103 = scalar_lea.vmem %s1, 2
    %104 = vst [vmem:[%s103] sm:%s102] %v100
    %s105 = scalar_lea.vmem [#allocation0], 24
    %v106 = vld [vmem:[%s105] sm:%s85]
    %v107 = vpack.c.bf16 0.0, %v106
    %s109 = ssub.s32 2, 1
    %s110 = scalar_lea.vmem %s1, 3
    %111 = vst [vmem:[%s110] sm:%s109] %v107
    %s112 = scalar_lea.vmem [#allocation0], 32
    %v113 = vld [vmem:[%s112] sm:%s85]
    %v114 = vpack.c.bf16 0.0, %v113
    %s116 = ssub.s32 2, 1
    %s117 = scalar_lea.vmem %s1, 4
    %118 = vst [vmem:[%s117] sm:%s116] %v114
    %s119 = scalar_lea.vmem [#allocation0], 40
    %v120 = vld [vmem:[%s119] sm:%s85]
    %v121 = vpack.c.bf16 0.0, %v120
    %s123 = ssub.s32 2, 1
    %s124 = scalar_lea.vmem %s1, 5
    %125 = vst [vmem:[%s124] sm:%s123] %v121
    %s126 = scalar_lea.vmem [#allocation0], 48
    %v127 = vld [vmem:[%s126] sm:%s85]
    %v128 = vpack.c.bf16 0.0, %v127
    %s130 = ssub.s32 2, 1
    %s131 = scalar_lea.vmem %s1, 6
    %132 = vst [vmem:[%s131] sm:%s130] %v128
    %s133 = scalar_lea.vmem [#allocation0], 56
    %v134 = vld [vmem:[%s133] sm:%s85]
    %v135 = vpack.c.bf16 0.0, %v134
    %s137 = ssub.s32 2, 1
    %s138 = scalar_lea.vmem %s1, 7
    %139 = vst [vmem:[%s138] sm:%s137] %v135

</llo_original>
